<compile_context>
chip_gen: v5e
topology: v5e:2x2
jax: 0.10.0
libtpu: 0.0.40
codegen_flags: <defaults>
</compile_context>

<pallas_src>
import jax
import jax.numpy as jnp
import numpy as np
from jax import lax
from jax.experimental import pallas as pl
from jax.experimental.pallas import tpu as pltpu  # noqa: F401  (TPU backend)

# ---- model hyper-parameters (small, consistent with the module's __init__) ----
D_MODEL = 32
D_INNER = 64
N_HEAD = 4
D_K = 8
D_V = 8

B = 2        # batch
LEN_Q = 8    # decoder sequence length
LEN_E = 16   # encoder sequence length

NEG_INF = -1e9
EPS = 1e-6
SCALE = 1.0 / (D_K ** 0.5)


# ============================ Fused Pallas kernel ============================

def _layernorm(x, gamma, beta):
    mean = jnp.mean(x, axis=-1, keepdims=True)
    var = jnp.mean((x - mean) ** 2, axis=-1, keepdims=True)
    return (x - mean) * lax.rsqrt(var + EPS) * gamma + beta


def _mha_block(x, kv, mask, wq_ref, wk_ref, wv_ref, wo_ref, g_ref, b_ref, attn_ref):
    """Multi-head attention + residual + LayerNorm on batch-folded activations.

    x    : (N, D)  queries (N = B*Lq rows)
    kv   : (M, D)  keys/values (M = B*Lk rows)
    mask : (N, M)  0/1 mask, block-diagonal across batch (cross-batch entries are 0)
    wq/wk/wv refs: (H, D, d_k|d_v) per-head weights; wo ref: (H, d_v, D)
    attn_ref: (H, N, M) output ref for attention probabilities.
    """
    # Hoisted out of the head loop: one compare+select for all heads.
    bias = jnp.where(mask < 0.5, NEG_INF, 0.0)

    acc = jnp.zeros((x.shape[0], D_MODEL), jnp.float32)
    for h in range(N_HEAD):  # static unroll (H = 4); leading-dim ref indexing only
        qh = jnp.dot(x, wq_ref[h], preferred_element_type=jnp.float32)    # (N, dk)
        kh = jnp.dot(kv, wk_ref[h], preferred_element_type=jnp.float32)   # (M, dk)
        vh = jnp.dot(kv, wv_ref[h], preferred_element_type=jnp.float32)   # (M, dv)

        # q @ k^T without materializing a transpose: contract last dims directly.
        s = lax.dot_general(qh, kh, (((1,), (1,)), ((), ())),
                            preferred_element_type=jnp.float32)           # (N, M)
        s = s * SCALE + bias

        m = jnp.max(s, axis=-1, keepdims=True)
        e = jnp.exp(s - m)
        denom = jnp.sum(e, axis=-1, keepdims=True)
        inv = pl.reciprocal(denom, approx=True)          # EUP slot (cheap)
        inv = inv * (2.0 - denom * inv)                  # one Newton step -> f32-accurate
        p = e * inv                                      # softmax probabilities

        attn_ref[h] = p                                  # one contiguous store per head
        ctx = jnp.dot(p, vh, preferred_element_type=jnp.float32)           # (N, dv)
        # Output projection accumulated per head: sum_h ctx_h @ Wo_h == concat(ctx) @ Wo
        acc = acc + jnp.dot(ctx, wo_ref[h], preferred_element_type=jnp.float32)

    return _layernorm(acc + x, g_ref[...], b_ref[...])   # residual + post-LN


def decoder_layer_kernel(
        dec_ref, enc_ref, mslf_ref, menc_ref,
        # self-attention params
        wq1_ref, wk1_ref, wv1_ref, wo1_ref, ln1g_ref, ln1b_ref,
        # cross-attention params
        wq2_ref, wk2_ref, wv2_ref, wo2_ref, ln2g_ref, ln2b_ref,
        # position-wise FFN params
        fw1_ref, fb1_ref, fw2_ref, fb2_ref, ln3g_ref, ln3b_ref,
        # outputs
        out_ref, slf_attn_ref, enc_attn_ref):
    x = dec_ref[...]        # (N, D)   N = B*Lq
    enc = enc_ref[...]      # (Me, D)  Me = B*Le

    # 1) masked self-attention + residual + LN
    x = _mha_block(x, x, mslf_ref[...],
                   wq1_ref, wk1_ref, wv1_ref, wo1_ref, ln1g_ref, ln1b_ref, slf_attn_ref)
    # 2) encoder-decoder attention + residual + LN
    x = _mha_block(x, enc, menc_ref[...],
                   wq2_ref, wk2_ref, wv2_ref, wo2_ref, ln2g_ref, ln2b_ref, enc_attn_ref)
    # 3) position-wise FFN + residual + LN
    hdn = jnp.dot(x, fw1_ref[...], preferred_element_type=jnp.float32) + fb1_ref[...]
    hdn = jnp.maximum(hdn, 0.0)
    y = jnp.dot(hdn, fw2_ref[...], preferred_element_type=jnp.float32) + fb2_ref[...] + x
    out_ref[...] = _layernorm(y, ln3g_ref[...], ln3b_ref[...])


# ============================ Wrapper (single pallas_call) ============================

def _per_head_weights(p):
    """Reshape (in,out)-layout projection weights to per-head arrays (done outside kernel)."""
    wq, wk, wv, wo, g, b = p
    wq_h = wq.reshape(D_MODEL, N_HEAD, D_K).transpose(1, 0, 2)   # (H, D, dk)
    wk_h = wk.reshape(D_MODEL, N_HEAD, D_K).transpose(1, 0, 2)   # (H, D, dk)
    wv_h = wv.reshape(D_MODEL, N_HEAD, D_V).transpose(1, 0, 2)   # (H, D, dv)
    wo_h = wo.reshape(N_HEAD, D_V, D_MODEL)                      # (H, dv, D)
    return wq_h, wk_h, wv_h, wo_h, g, b


@jax.jit
def decoder_layer(dec_input, enc_output, slf_attn_mask, dec_enc_attn_mask, params):
    """Mirrors DecoderLayer.forward: self-attn -> enc-dec attn -> pos FFN (one fused kernel)."""
    slf_p, enc_p, ffn_p = params
    B_, Lq, D = dec_input.shape
    Le = enc_output.shape[1]
    N = B_ * Lq
    Me = B_ * Le

    # Fold batch into rows; make masks block-diagonal so cross-batch attention is disabled
    # (masked scores hit -1e9 -> exp underflows to exactly 0, matching per-batch softmax).
    dec_flat = dec_input.reshape(N, D)
    enc_flat = enc_output.reshape(Me, D)
    eye = jnp.eye(B_, dtype=jnp.float32)
    mslf = (slf_attn_mask[:, :, None, :] * eye[:, None, :, None]).reshape(N, N)
    menc = (dec_enc_attn_mask[:, :, None, :] * eye[:, None, :, None]).reshape(N, Me)

    slf_w = _per_head_weights(slf_p)
    enc_w = _per_head_weights(enc_p)

    out_flat, slf_full, enc_full = pl.pallas_call(
        decoder_layer_kernel,
        out_shape=(
            jax.ShapeDtypeStruct((N, D), jnp.float32),
            jax.ShapeDtypeStruct((N_HEAD, N, N), jnp.float32),
            jax.ShapeDtypeStruct((N_HEAD, N, Me), jnp.float32),
        ),
        # No grid, no BlockSpecs: every (tiny) operand is a single full-array VMEM block.
    )(dec_flat, enc_flat, mslf, menc, *slf_w, *enc_w, *ffn_p)

    # Layout plumbing back to the PyTorch output shapes (outside the kernel).
    out = out_flat.reshape(B_, Lq, D)
    idx = jnp.arange(B_)
    slf_attn = slf_full.reshape(N_HEAD, B_, Lq, B_, Lq)[:, idx, :, idx, :]   # (B, H, Lq, Lq)
    enc_attn = enc_full.reshape(N_HEAD, B_, Lq, B_, Le)[:, idx, :, idx, :]   # (B, H, Lq, Le)
    return out, slf_attn, enc_attn


# ============================ Pure-JAX reference ============================

def _layernorm_ref(x, gamma, beta):
    mean = x.mean(-1, keepdims=True)
    var = ((x - mean) ** 2).mean(-1, keepdims=True)
    return (x - mean) / jnp.sqrt(var + EPS) * gamma + beta


def mha_ref(xq, xkv, mask, params):
    wq, wk, wv, wo, gamma, beta = params
    B_, Lq, D = xq.shape
    Lk = xkv.shape[1]
    q = (xq @ wq).reshape(B_, Lq, N_HEAD, D_K).transpose(0, 2, 1, 3)
    k = (xkv @ wk).reshape(B_, Lk, N_HEAD, D_K).transpose(0, 2, 1, 3)
    v = (xkv @ wv).reshape(B_, Lk, N_HEAD, D_V).transpose(0, 2, 1, 3)
    s = jnp.einsum('bhqd,bhkd->bhqk', q, k) / (D_K ** 0.5)
    s = jnp.where(mask[:, None, :, :] < 0.5, NEG_INF, s)
    p = jax.nn.softmax(s, axis=-1)
    ctx = jnp.einsum('bhqk,bhkd->bhqd', p, v).transpose(0, 2, 1, 3).reshape(B_, Lq, N_HEAD * D_V)
    o = ctx @ wo + xq
    return _layernorm_ref(o, gamma, beta), p


def ffn_ref(x, params):
    w1, b1, w2, b2, gamma, beta = params
    h = jax.nn.relu(x @ w1 + b1)
    y = h @ w2 + b2 + x
    return _layernorm_ref(y, gamma, beta)


def decoder_layer_ref(dec_input, enc_output, slf_mask, enc_mask, params):
    slf_params, enc_params, ffn_params = params
    o, a1 = mha_ref(dec_input, dec_input, slf_mask, slf_params)
    o, a2 = mha_ref(o, enc_output, enc_mask, enc_params)
    o = ffn_ref(o, ffn_params)
    return o, a1, a2


# ============================ Parameter init ============================

def init_params(key):
    def norm(k, shape, scale=0.05):
        return (scale * jax.random.normal(k, shape)).astype(jnp.float32)

    def mha_params(k):
        ks = jax.random.split(k, 4)
        # weights stored in (in, out) layout (PyTorch nn.Linear weight is (out, in); y = x @ W.T)
        wq = norm(ks[0], (D_MODEL, N_HEAD * D_K))
        wk = norm(ks[1], (D_MODEL, N_HEAD * D_K))
        wv = norm(ks[2], (D_MODEL, N_HEAD * D_V))
        wo = norm(ks[3], (N_HEAD * D_V, D_MODEL))
        gamma = jnp.ones((1, D_MODEL), jnp.float32)
        beta = jnp.zeros((1, D_MODEL), jnp.float32)
        return (wq, wk, wv, wo, gamma, beta)

    def ffn_params(k):
        ks = jax.random.split(k, 4)
        w1 = norm(ks[0], (D_MODEL, D_INNER))
        b1 = norm(ks[1], (1, D_INNER))
        w2 = norm(ks[2], (D_INNER, D_MODEL))
        b2 = norm(ks[3], (1, D_MODEL))
        gamma = jnp.ones((1, D_MODEL), jnp.float32)
        beta = jnp.zeros((1, D_MODEL), jnp.float32)
        return (w1, b1, w2, b2, gamma, beta)

    k1, k2, k3 = jax.random.split(key, 3)
    return (mha_params(k1), mha_params(k2), ffn_params(k3))


# ============================ Main ============================

if __name__ == "__main__":
    key = jax.random.PRNGKey(0)
    kp, kd, ke = jax.random.split(key, 3)

    params = init_params(kp)
    dec_input = jax.random.normal(kd, (B, LEN_Q, D_MODEL), jnp.float32)
    enc_output = jax.random.normal(ke, (B, LEN_E, D_MODEL), jnp.float32)

    # self-attention mask: causal (1.0 = attend, 0.0 = masked), broadcast over batch
    causal = jnp.tril(jnp.ones((LEN_Q, LEN_Q), jnp.float32))
    slf_attn_mask = jnp.broadcast_to(causal, (B, LEN_Q, LEN_Q))
    # encoder-decoder mask: no masking (all ones) -> equivalent to mask=None
    dec_enc_attn_mask = jnp.ones((B, LEN_Q, LEN_E), jnp.float32)

    out, slf_attn, enc_attn = decoder_layer(
        dec_input, enc_output, slf_attn_mask, dec_enc_attn_mask, params)
    out, slf_attn, enc_attn = jax.block_until_ready((out, slf_attn, enc_attn))

    # correctness check vs pure-JAX reference (tolerance covers default-precision MXU
    # matmul differences between the Mosaic kernel and XLA's reference path)
    ref_out, ref_slf, ref_enc = decoder_layer_ref(
        dec_input, enc_output, slf_attn_mask, dec_enc_attn_mask, params)
    assert out.shape == (B, LEN_Q, D_MODEL)
    assert slf_attn.shape == (B, N_HEAD, LEN_Q, LEN_Q)
    assert enc_attn.shape == (B, N_HEAD, LEN_Q, LEN_E)
    np.testing.assert_allclose(np.asarray(out), np.asarray(ref_out), atol=2e-3, rtol=2e-3)
    np.testing.assert_allclose(np.asarray(slf_attn), np.asarray(ref_slf), atol=2e-3, rtol=2e-3)
    np.testing.assert_allclose(np.asarray(enc_attn), np.asarray(ref_enc), atol=2e-3, rtol=2e-3)

    print("KERNEL_OK")
</pallas_src>

<mosaic_0001>
module attributes {stable_mosaic.version = 11 : i64} {
  func.func @decoder_layer_kernel(%arg0: memref<16x32xf32, #tpu.memory_space<vmem>>, %arg1: memref<32x32xf32, #tpu.memory_space<vmem>>, %arg2: memref<16x16xf32, #tpu.memory_space<vmem>>, %arg3: memref<16x32xf32, #tpu.memory_space<vmem>>, %arg4: memref<4x32x8xf32, #tpu.memory_space<vmem>>, %arg5: memref<4x32x8xf32, #tpu.memory_space<vmem>>, %arg6: memref<4x32x8xf32, #tpu.memory_space<vmem>>, %arg7: memref<4x8x32xf32, #tpu.memory_space<vmem>>, %arg8: memref<1x32xf32, #tpu.memory_space<vmem>>, %arg9: memref<1x32xf32, #tpu.memory_space<vmem>>, %arg10: memref<4x32x8xf32, #tpu.memory_space<vmem>>, %arg11: memref<4x32x8xf32, #tpu.memory_space<vmem>>, %arg12: memref<4x32x8xf32, #tpu.memory_space<vmem>>, %arg13: memref<4x8x32xf32, #tpu.memory_space<vmem>>, %arg14: memref<1x32xf32, #tpu.memory_space<vmem>>, %arg15: memref<1x32xf32, #tpu.memory_space<vmem>>, %arg16: memref<32x64xf32, #tpu.memory_space<vmem>>, %arg17: memref<1x64xf32, #tpu.memory_space<vmem>>, %arg18: memref<64x32xf32, #tpu.memory_space<vmem>>, %arg19: memref<1x32xf32, #tpu.memory_space<vmem>>, %arg20: memref<1x32xf32, #tpu.memory_space<vmem>>, %arg21: memref<1x32xf32, #tpu.memory_space<vmem>>, %arg22: memref<16x32xf32, #tpu.memory_space<vmem>>, %arg23: memref<4x16x16xf32, #tpu.memory_space<vmem>>, %arg24: memref<4x16x32xf32, #tpu.memory_space<vmem>>) attributes {dimension_semantics = [], scalar_prefetch = 0 : i64, scratch_operands = 0 : i64, tpu.core_type = #tpu.core_type<tc>} {
    %c0 = arith.constant 0 : index
    %c0_0 = arith.constant 0 : index
    %0 = vector.load %arg0[%c0, %c0_0] : memref<16x32xf32, #tpu.memory_space<vmem>>, vector<16x32xf32>
    %c0_1 = arith.constant 0 : index
    %c0_2 = arith.constant 0 : index
    %1 = vector.load %arg1[%c0_1, %c0_2] : memref<32x32xf32, #tpu.memory_space<vmem>>, vector<32x32xf32>
    %c0_3 = arith.constant 0 : index
    %c0_4 = arith.constant 0 : index
    %2 = vector.load %arg2[%c0_3, %c0_4] : memref<16x16xf32, #tpu.memory_space<vmem>>, vector<16x16xf32>
    %cst = arith.constant 5.000000e-01 : f32
    %3 = vector.broadcast %cst : f32 to vector<16x16xf32>
    %4 = arith.cmpf olt, %2, %3 : vector<16x16xf32>
    %cst_5 = arith.constant -1.000000e+09 : f32
    %cst_6 = arith.constant 0.000000e+00 : f32
    %5 = vector.broadcast %cst_5 : f32 to vector<16x16xf32>
    %6 = vector.broadcast %cst_6 : f32 to vector<16x16xf32>
    %7 = arith.select %4, %5, %6 : vector<16x16xi1>, vector<16x16xf32>
    %cst_7 = arith.constant 0.000000e+00 : f32
    %8 = vector.broadcast %cst_7 : f32 to vector<16x32xf32>
    %c0_8 = arith.constant 0 : index
    %c0_9 = arith.constant 0 : index
    %c0_10 = arith.constant 0 : index
    %9 = vector.load %arg4[%c0_8, %c0_9, %c0_10] : memref<4x32x8xf32, #tpu.memory_space<vmem>>, vector<1x32x8xf32>
    %10 = vector.shape_cast %9 : vector<1x32x8xf32> to vector<32x8xf32>
    %cst_11 = arith.constant dense<0.000000e+00> : vector<16x8xf32>
    %11 = tpu.matmul %0, %10, %cst_11 {dimension_numbers = #tpu.dot_dimension_numbers<[1], [0], [0], [1], [0, 0, 1, 1], [], []>} : vector<16x32xf32>, vector<32x8xf32>, vector<16x8xf32> -> vector<16x8xf32>
    %c0_12 = arith.constant 0 : index
    %c0_13 = arith.constant 0 : index
    %c0_14 = arith.constant 0 : index
    %12 = vector.load %arg5[%c0_12, %c0_13, %c0_14] : memref<4x32x8xf32, #tpu.memory_space<vmem>>, vector<1x32x8xf32>
    %13 = vector.shape_cast %12 : vector<1x32x8xf32> to vector<32x8xf32>
    %cst_15 = arith.constant dense<0.000000e+00> : vector<16x8xf32>
    %14 = tpu.matmul %0, %13, %cst_15 {dimension_numbers = #tpu.dot_dimension_numbers<[1], [0], [0], [1], [0, 0, 1, 1], [], []>} : vector<16x32xf32>, vector<32x8xf32>, vector<16x8xf32> -> vector<16x8xf32>
    %c0_16 = arith.constant 0 : index
    %c0_17 = arith.constant 0 : index
    %c0_18 = arith.constant 0 : index
    %15 = vector.load %arg6[%c0_16, %c0_17, %c0_18] : memref<4x32x8xf32, #tpu.memory_space<vmem>>, vector<1x32x8xf32>
    %16 = vector.shape_cast %15 : vector<1x32x8xf32> to vector<32x8xf32>
    %cst_19 = arith.constant dense<0.000000e+00> : vector<16x8xf32>
    %17 = tpu.matmul %0, %16, %cst_19 {dimension_numbers = #tpu.dot_dimension_numbers<[1], [0], [0], [1], [0, 0, 1, 1], [], []>} : vector<16x32xf32>, vector<32x8xf32>, vector<16x8xf32> -> vector<16x8xf32>
    %cst_20 = arith.constant dense<0.000000e+00> : vector<16x16xf32>
    %18 = tpu.matmul %11, %14, %cst_20 {dimension_numbers = #tpu.dot_dimension_numbers<[1], [1], [0], [0], [0, 0, 1, 0], [], []>} : vector<16x8xf32>, vector<16x8xf32>, vector<16x16xf32> -> vector<16x16xf32>
    %cst_21 = arith.constant 0.353553385 : f32
    %19 = vector.broadcast %cst_21 : f32 to vector<16x16xf32>
    %20 = arith.mulf %18, %19 : vector<16x16xf32>
    %21 = arith.addf %20, %7 : vector<16x16xf32>
    %cst_22 = arith.constant dense<0xFF800000> : vector<16xf32>
    %22 = vector.multi_reduction <maximumf>, %21, %cst_22 [1] : vector<16x16xf32> to vector<16xf32>
    %23 = vector.shape_cast %22 : vector<16xf32> to vector<16x1xf32>
    %24 = vector.broadcast %23 : vector<16x1xf32> to vector<16x16xf32>
    %25 = arith.subf %21, %24 : vector<16x16xf32>
    %26 = math.exp %25 : vector<16x16xf32>
    %cst_23 = arith.constant dense<0.000000e+00> : vector<16xf32>
    %27 = vector.multi_reduction <add>, %26, %cst_23 [1] : vector<16x16xf32> to vector<16xf32>
    %28 = vector.shape_cast %27 : vector<16xf32> to vector<16x1xf32>
    %29 = tpu.reciprocal %28 {approx = true} : vector<16x1xf32> -> vector<16x1xf32>
    %30 = arith.mulf %28, %29 : vector<16x1xf32>
    %cst_24 = arith.constant 2.000000e+00 : f32
    %31 = vector.broadcast %cst_24 : f32 to vector<16x1xf32>
    %32 = arith.subf %31, %30 : vector<16x1xf32>
    %33 = arith.mulf %29, %32 : vector<16x1xf32>
    %34 = vector.broadcast %33 : vector<16x1xf32> to vector<16x16xf32>
    %35 = arith.mulf %26, %34 : vector<16x16xf32>
    %c0_25 = arith.constant 0 : index
    %c0_26 = arith.constant 0 : index
    %c0_27 = arith.constant 0 : index
    %36 = vector.load %arg23[%c0_25, %c0_26, %c0_27] : memref<4x16x16xf32, #tpu.memory_space<vmem>>, vector<1x16x16xf32>
    %37 = vector.shape_cast %36 : vector<1x16x16xf32> to vector<16x16xf32>
    %38 = vector.shape_cast %35 : vector<16x16xf32> to vector<1x16x16xf32>
    tpu.vector_store %arg23[%c0_25, %c0_26, %c0_27], %38 {strides = array<i32>} : memref<4x16x16xf32, #tpu.memory_space<vmem>>, vector<1x16x16xf32>,
    %cst_28 = arith.constant dense<0.000000e+00> : vector<16x8xf32>
    %39 = tpu.matmul %35, %17, %cst_28 {dimension_numbers = #tpu.dot_dimension_numbers<[1], [0], [0], [1], [0, 0, 1, 1], [], []>} : vector<16x16xf32>, vector<16x8xf32>, vector<16x8xf32> -> vector<16x8xf32>
    %c0_29 = arith.constant 0 : index
    %c0_30 = arith.constant 0 : index
    %c0_31 = arith.constant 0 : index
    %40 = vector.load %arg7[%c0_29, %c0_30, %c0_31] : memref<4x8x32xf32, #tpu.memory_space<vmem>>, vector<1x8x32xf32>
    %41 = vector.shape_cast %40 : vector<1x8x32xf32> to vector<8x32xf32>
    %cst_32 = arith.constant dense<0.000000e+00> : vector<16x32xf32>
    %42 = tpu.matmul %39, %41, %cst_32 {dimension_numbers = #tpu.dot_dimension_numbers<[1], [0], [0], [1], [0, 0, 1, 1], [], []>} : vector<16x8xf32>, vector<8x32xf32>, vector<16x32xf32> -> vector<16x32xf32>
    %43 = arith.addf %8, %42 : vector<16x32xf32>
    %c1 = arith.constant 1 : index
    %c0_33 = arith.constant 0 : index
    %c0_34 = arith.constant 0 : index
    %44 = vector.load %arg4[%c1, %c0_33, %c0_34] : memref<4x32x8xf32, #tpu.memory_space<vmem>>, vector<1x32x8xf32>
    %45 = vector.shape_cast %44 : vector<1x32x8xf32> to vector<32x8xf32>
    %cst_35 = arith.constant dense<0.000000e+00> : vector<16x8xf32>
    %46 = tpu.matmul %0, %45, %cst_35 {dimension_numbers = #tpu.dot_dimension_numbers<[1], [0], [0], [1], [0, 0, 1, 1], [], []>} : vector<16x32xf32>, vector<32x8xf32>, vector<16x8xf32> -> vector<16x8xf32>
    %c1_36 = arith.constant 1 : index
    %c0_37 = arith.constant 0 : index
    %c0_38 = arith.constant 0 : index
    %47 = vector.load %arg5[%c1_36, %c0_37, %c0_38] : memref<4x32x8xf32, #tpu.memory_space<vmem>>, vector<1x32x8xf32>
    %48 = vector.shape_cast %47 : vector<1x32x8xf32> to vector<32x8xf32>
    %cst_39 = arith.constant dense<0.000000e+00> : vector<16x8xf32>
    %49 = tpu.matmul %0, %48, %cst_39 {dimension_numbers = #tpu.dot_dimension_numbers<[1], [0], [0], [1], [0, 0, 1, 1], [], []>} : vector<16x32xf32>, vector<32x8xf32>, vector<16x8xf32> -> vector<16x8xf32>
    %c1_40 = arith.constant 1 : index
    %c0_41 = arith.constant 0 : index
    %c0_42 = arith.constant 0 : index
    %50 = vector.load %arg6[%c1_40, %c0_41, %c0_42] : memref<4x32x8xf32, #tpu.memory_space<vmem>>, vector<1x32x8xf32>
    %51 = vector.shape_cast %50 : vector<1x32x8xf32> to vector<32x8xf32>
    %cst_43 = arith.constant dense<0.000000e+00> : vector<16x8xf32>
    %52 = tpu.matmul %0, %51, %cst_43 {dimension_numbers = #tpu.dot_dimension_numbers<[1], [0], [0], [1], [0, 0, 1, 1], [], []>} : vector<16x32xf32>, vector<32x8xf32>, vector<16x8xf32> -> vector<16x8xf32>
    %cst_44 = arith.constant dense<0.000000e+00> : vector<16x16xf32>
    %53 = tpu.matmul %46, %49, %cst_44 {dimension_numbers = #tpu.dot_dimension_numbers<[1], [1], [0], [0], [0, 0, 1, 0], [], []>} : vector<16x8xf32>, vector<16x8xf32>, vector<16x16xf32> -> vector<16x16xf32>
    %cst_45 = arith.constant 0.353553385 : f32
    %54 = vector.broadcast %cst_45 : f32 to vector<16x16xf32>
    %55 = arith.mulf %53, %54 : vector<16x16xf32>
    %56 = arith.addf %55, %7 : vector<16x16xf32>
    %cst_46 = arith.constant dense<0xFF800000> : vector<16xf32>
    %57 = vector.multi_reduction <maximumf>, %56, %cst_46 [1] : vector<16x16xf32> to vector<16xf32>
    %58 = vector.shape_cast %57 : vector<16xf32> to vector<16x1xf32>
    %59 = vector.broadcast %58 : vector<16x1xf32> to vector<16x16xf32>
    %60 = arith.subf %56, %59 : vector<16x16xf32>
    %61 = math.exp %60 : vector<16x16xf32>
    %cst_47 = arith.constant dense<0.000000e+00> : vector<16xf32>
    %62 = vector.multi_reduction <add>, %61, %cst_47 [1] : vector<16x16xf32> to vector<16xf32>
    %63 = vector.shape_cast %62 : vector<16xf32> to vector<16x1xf32>
    %64 = tpu.reciprocal %63 {approx = true} : vector<16x1xf32> -> vector<16x1xf32>
    %65 = arith.mulf %63, %64 : vector<16x1xf32>
    %cst_48 = arith.constant 2.000000e+00 : f32
    %66 = vector.broadcast %cst_48 : f32 to vector<16x1xf32>
    %67 = arith.subf %66, %65 : vector<16x1xf32>
    %68 = arith.mulf %64, %67 : vector<16x1xf32>
    %69 = vector.broadcast %68 : vector<16x1xf32> to vector<16x16xf32>
    %70 = arith.mulf %61, %69 : vector<16x16xf32>
    %c1_49 = arith.constant 1 : index
    %c0_50 = arith.constant 0 : index
    %c0_51 = arith.constant 0 : index
    %71 = vector.load %arg23[%c1_49, %c0_50, %c0_51] : memref<4x16x16xf32, #tpu.memory_space<vmem>>, vector<1x16x16xf32>
    %72 = vector.shape_cast %71 : vector<1x16x16xf32> to vector<16x16xf32>
    %73 = vector.shape_cast %70 : vector<16x16xf32> to vector<1x16x16xf32>
    tpu.vector_store %arg23[%c1_49, %c0_50, %c0_51], %73 {strides = array<i32>} : memref<4x16x16xf32, #tpu.memory_space<vmem>>, vector<1x16x16xf32>,
    %cst_52 = arith.constant dense<0.000000e+00> : vector<16x8xf32>
    %74 = tpu.matmul %70, %52, %cst_52 {dimension_numbers = #tpu.dot_dimension_numbers<[1], [0], [0], [1], [0, 0, 1, 1], [], []>} : vector<16x16xf32>, vector<16x8xf32>, vector<16x8xf32> -> vector<16x8xf32>
    %c1_53 = arith.constant 1 : index
    %c0_54 = arith.constant 0 : index
    %c0_55 = arith.constant 0 : index
    %75 = vector.load %arg7[%c1_53, %c0_54, %c0_55] : memref<4x8x32xf32, #tpu.memory_space<vmem>>, vector<1x8x32xf32>
    %76 = vector.shape_cast %75 : vector<1x8x32xf32> to vector<8x32xf32>
    %cst_56 = arith.constant dense<0.000000e+00> : vector<16x32xf32>
    %77 = tpu.matmul %74, %76, %cst_56 {dimension_numbers = #tpu.dot_dimension_numbers<[1], [0], [0], [1], [0, 0, 1, 1], [], []>} : vector<16x8xf32>, vector<8x32xf32>, vector<16x32xf32> -> vector<16x32xf32>
    %78 = arith.addf %43, %77 : vector<16x32xf32>
    %c2 = arith.constant 2 : index
    %c0_57 = arith.constant 0 : index
    %c0_58 = arith.constant 0 : index
    %79 = vector.load %arg4[%c2, %c0_57, %c0_58] : memref<4x32x8xf32, #tpu.memory_space<vmem>>, vector<1x32x8xf32>
    %80 = vector.shape_cast %79 : vector<1x32x8xf32> to vector<32x8xf32>
    %cst_59 = arith.constant dense<0.000000e+00> : vector<16x8xf32>
    %81 = tpu.matmul %0, %80, %cst_59 {dimension_numbers = #tpu.dot_dimension_numbers<[1], [0], [0], [1], [0, 0, 1, 1], [], []>} : vector<16x32xf32>, vector<32x8xf32>, vector<16x8xf32> -> vector<16x8xf32>
    %c2_60 = arith.constant 2 : index
    %c0_61 = arith.constant 0 : index
    %c0_62 = arith.constant 0 : index
    %82 = vector.load %arg5[%c2_60, %c0_61, %c0_62] : memref<4x32x8xf32, #tpu.memory_space<vmem>>, vector<1x32x8xf32>
    %83 = vector.shape_cast %82 : vector<1x32x8xf32> to vector<32x8xf32>
    %cst_63 = arith.constant dense<0.000000e+00> : vector<16x8xf32>
    %84 = tpu.matmul %0, %83, %cst_63 {dimension_numbers = #tpu.dot_dimension_numbers<[1], [0], [0], [1], [0, 0, 1, 1], [], []>} : vector<16x32xf32>, vector<32x8xf32>, vector<16x8xf32> -> vector<16x8xf32>
    %c2_64 = arith.constant 2 : index
    %c0_65 = arith.constant 0 : index
    %c0_66 = arith.constant 0 : index
    %85 = vector.load %arg6[%c2_64, %c0_65, %c0_66] : memref<4x32x8xf32, #tpu.memory_space<vmem>>, vector<1x32x8xf32>
    %86 = vector.shape_cast %85 : vector<1x32x8xf32> to vector<32x8xf32>
    %cst_67 = arith.constant dense<0.000000e+00> : vector<16x8xf32>
    %87 = tpu.matmul %0, %86, %cst_67 {dimension_numbers = #tpu.dot_dimension_numbers<[1], [0], [0], [1], [0, 0, 1, 1], [], []>} : vector<16x32xf32>, vector<32x8xf32>, vector<16x8xf32> -> vector<16x8xf32>
    %cst_68 = arith.constant dense<0.000000e+00> : vector<16x16xf32>
    %88 = tpu.matmul %81, %84, %cst_68 {dimension_numbers = #tpu.dot_dimension_numbers<[1], [1], [0], [0], [0, 0, 1, 0], [], []>} : vector<16x8xf32>, vector<16x8xf32>, vector<16x16xf32> -> vector<16x16xf32>
    %cst_69 = arith.constant 0.353553385 : f32
    %89 = vector.broadcast %cst_69 : f32 to vector<16x16xf32>
    %90 = arith.mulf %88, %89 : vector<16x16xf32>
    %91 = arith.addf %90, %7 : vector<16x16xf32>
    %cst_70 = arith.constant dense<0xFF800000> : vector<16xf32>
    %92 = vector.multi_reduction <maximumf>, %91, %cst_70 [1] : vector<16x16xf32> to vector<16xf32>
    %93 = vector.shape_cast %92 : vector<16xf32> to vector<16x1xf32>
    %94 = vector.broadcast %93 : vector<16x1xf32> to vector<16x16xf32>
    %95 = arith.subf %91, %94 : vector<16x16xf32>
    %96 = math.exp %95 : vector<16x16xf32>
    %cst_71 = arith.constant dense<0.000000e+00> : vector<16xf32>
    %97 = vector.multi_reduction <add>, %96, %cst_71 [1] : vector<16x16xf32> to vector<16xf32>
    %98 = vector.shape_cast %97 : vector<16xf32> to vector<16x1xf32>
    %99 = tpu.reciprocal %98 {approx = true} : vector<16x1xf32> -> vector<16x1xf32>
    %100 = arith.mulf %98, %99 : vector<16x1xf32>
    %cst_72 = arith.constant 2.000000e+00 : f32
    %101 = vector.broadcast %cst_72 : f32 to vector<16x1xf32>
    %102 = arith.subf %101, %100 : vector<16x1xf32>
    %103 = arith.mulf %99, %102 : vector<16x1xf32>
    %104 = vector.broadcast %103 : vector<16x1xf32> to vector<16x16xf32>
    %105 = arith.mulf %96, %104 : vector<16x16xf32>
    %c2_73 = arith.constant 2 : index
    %c0_74 = arith.constant 0 : index
    %c0_75 = arith.constant 0 : index
    %106 = vector.load %arg23[%c2_73, %c0_74, %c0_75] : memref<4x16x16xf32, #tpu.memory_space<vmem>>, vector<1x16x16xf32>
    %107 = vector.shape_cast %106 : vector<1x16x16xf32> to vector<16x16xf32>
    %108 = vector.shape_cast %105 : vector<16x16xf32> to vector<1x16x16xf32>
    tpu.vector_store %arg23[%c2_73, %c0_74, %c0_75], %108 {strides = array<i32>} : memref<4x16x16xf32, #tpu.memory_space<vmem>>, vector<1x16x16xf32>,
    %cst_76 = arith.constant dense<0.000000e+00> : vector<16x8xf32>
    %109 = tpu.matmul %105, %87, %cst_76 {dimension_numbers = #tpu.dot_dimension_numbers<[1], [0], [0], [1], [0, 0, 1, 1], [], []>} : vector<16x16xf32>, vector<16x8xf32>, vector<16x8xf32> -> vector<16x8xf32>
    %c2_77 = arith.constant 2 : index
    %c0_78 = arith.constant 0 : index
    %c0_79 = arith.constant 0 : index
    %110 = vector.load %arg7[%c2_77, %c0_78, %c0_79] : memref<4x8x32xf32, #tpu.memory_space<vmem>>, vector<1x8x32xf32>
    %111 = vector.shape_cast %110 : vector<1x8x32xf32> to vector<8x32xf32>
    %cst_80 = arith.constant dense<0.000000e+00> : vector<16x32xf32>
    %112 = tpu.matmul %109, %111, %cst_80 {dimension_numbers = #tpu.dot_dimension_numbers<[1], [0], [0], [1], [0, 0, 1, 1], [], []>} : vector<16x8xf32>, vector<8x32xf32>, vector<16x32xf32> -> vector<16x32xf32>
    %113 = arith.addf %78, %112 : vector<16x32xf32>
    %c3 = arith.constant 3 : index
    %c0_81 = arith.constant 0 : index
    %c0_82 = arith.constant 0 : index
    %114 = vector.load %arg4[%c3, %c0_81, %c0_82] : memref<4x32x8xf32, #tpu.memory_space<vmem>>, vector<1x32x8xf32>
    %115 = vector.shape_cast %114 : vector<1x32x8xf32> to vector<32x8xf32>
    %cst_83 = arith.constant dense<0.000000e+00> : vector<16x8xf32>
    %116 = tpu.matmul %0, %115, %cst_83 {dimension_numbers = #tpu.dot_dimension_numbers<[1], [0], [0], [1], [0, 0, 1, 1], [], []>} : vector<16x32xf32>, vector<32x8xf32>, vector<16x8xf32> -> vector<16x8xf32>
    %c3_84 = arith.constant 3 : index
    %c0_85 = arith.constant 0 : index
    %c0_86 = arith.constant 0 : index
    %117 = vector.load %arg5[%c3_84, %c0_85, %c0_86] : memref<4x32x8xf32, #tpu.memory_space<vmem>>, vector<1x32x8xf32>
    %118 = vector.shape_cast %117 : vector<1x32x8xf32> to vector<32x8xf32>
    %cst_87 = arith.constant dense<0.000000e+00> : vector<16x8xf32>
    %119 = tpu.matmul %0, %118, %cst_87 {dimension_numbers = #tpu.dot_dimension_numbers<[1], [0], [0], [1], [0, 0, 1, 1], [], []>} : vector<16x32xf32>, vector<32x8xf32>, vector<16x8xf32> -> vector<16x8xf32>
    %c3_88 = arith.constant 3 : index
    %c0_89 = arith.constant 0 : index
    %c0_90 = arith.constant 0 : index
    %120 = vector.load %arg6[%c3_88, %c0_89, %c0_90] : memref<4x32x8xf32, #tpu.memory_space<vmem>>, vector<1x32x8xf32>
    %121 = vector.shape_cast %120 : vector<1x32x8xf32> to vector<32x8xf32>
    %cst_91 = arith.constant dense<0.000000e+00> : vector<16x8xf32>
    %122 = tpu.matmul %0, %121, %cst_91 {dimension_numbers = #tpu.dot_dimension_numbers<[1], [0], [0], [1], [0, 0, 1, 1], [], []>} : vector<16x32xf32>, vector<32x8xf32>, vector<16x8xf32> -> vector<16x8xf32>
    %cst_92 = arith.constant dense<0.000000e+00> : vector<16x16xf32>
    %123 = tpu.matmul %116, %119, %cst_92 {dimension_numbers = #tpu.dot_dimension_numbers<[1], [1], [0], [0], [0, 0, 1, 0], [], []>} : vector<16x8xf32>, vector<16x8xf32>, vector<16x16xf32> -> vector<16x16xf32>
    %cst_93 = arith.constant 0.353553385 : f32
    %124 = vector.broadcast %cst_93 : f32 to vector<16x16xf32>
    %125 = arith.mulf %123, %124 : vector<16x16xf32>
    %126 = arith.addf %125, %7 : vector<16x16xf32>
    %cst_94 = arith.constant dense<0xFF800000> : vector<16xf32>
    %127 = vector.multi_reduction <maximumf>, %126, %cst_94 [1] : vector<16x16xf32> to vector<16xf32>
    %128 = vector.shape_cast %127 : vector<16xf32> to vector<16x1xf32>
    %129 = vector.broadcast %128 : vector<16x1xf32> to vector<16x16xf32>
    %130 = arith.subf %126, %129 : vector<16x16xf32>
    %131 = math.exp %130 : vector<16x16xf32>
    %cst_95 = arith.constant dense<0.000000e+00> : vector<16xf32>
    %132 = vector.multi_reduction <add>, %131, %cst_95 [1] : vector<16x16xf32> to vector<16xf32>
    %133 = vector.shape_cast %132 : vector<16xf32> to vector<16x1xf32>
    %134 = tpu.reciprocal %133 {approx = true} : vector<16x1xf32> -> vector<16x1xf32>
    %135 = arith.mulf %133, %134 : vector<16x1xf32>
    %cst_96 = arith.constant 2.000000e+00 : f32
    %136 = vector.broadcast %cst_96 : f32 to vector<16x1xf32>
    %137 = arith.subf %136, %135 : vector<16x1xf32>
    %138 = arith.mulf %134, %137 : vector<16x1xf32>
    %139 = vector.broadcast %138 : vector<16x1xf32> to vector<16x16xf32>
    %140 = arith.mulf %131, %139 : vector<16x16xf32>
    %c3_97 = arith.constant 3 : index
    %c0_98 = arith.constant 0 : index
    %c0_99 = arith.constant 0 : index
    %141 = vector.load %arg23[%c3_97, %c0_98, %c0_99] : memref<4x16x16xf32, #tpu.memory_space<vmem>>, vector<1x16x16xf32>
    %142 = vector.shape_cast %141 : vector<1x16x16xf32> to vector<16x16xf32>
    %143 = vector.shape_cast %140 : vector<16x16xf32> to vector<1x16x16xf32>
    tpu.vector_store %arg23[%c3_97, %c0_98, %c0_99], %143 {strides = array<i32>} : memref<4x16x16xf32, #tpu.memory_space<vmem>>, vector<1x16x16xf32>,
    %cst_100 = arith.constant dense<0.000000e+00> : vector<16x8xf32>
    %144 = tpu.matmul %140, %122, %cst_100 {dimension_numbers = #tpu.dot_dimension_numbers<[1], [0], [0], [1], [0, 0, 1, 1], [], []>} : vector<16x16xf32>, vector<16x8xf32>, vector<16x8xf32> -> vector<16x8xf32>
    %c3_101 = arith.constant 3 : index
    %c0_102 = arith.constant 0 : index
    %c0_103 = arith.constant 0 : index
    %145 = vector.load %arg7[%c3_101, %c0_102, %c0_103] : memref<4x8x32xf32, #tpu.memory_space<vmem>>, vector<1x8x32xf32>
    %146 = vector.shape_cast %145 : vector<1x8x32xf32> to vector<8x32xf32>
    %cst_104 = arith.constant dense<0.000000e+00> : vector<16x32xf32>
    %147 = tpu.matmul %144, %146, %cst_104 {dimension_numbers = #tpu.dot_dimension_numbers<[1], [0], [0], [1], [0, 0, 1, 1], [], []>} : vector<16x8xf32>, vector<8x32xf32>, vector<16x32xf32> -> vector<16x32xf32>
    %148 = arith.addf %113, %147 : vector<16x32xf32>
    %149 = arith.addf %148, %0 : vector<16x32xf32>
    %c0_105 = arith.constant 0 : index
    %c0_106 = arith.constant 0 : index
    %150 = vector.load %arg8[%c0_105, %c0_106] : memref<1x32xf32, #tpu.memory_space<vmem>>, vector<1x32xf32>
    %c0_107 = arith.constant 0 : index
    %c0_108 = arith.constant 0 : index
    %151 = vector.load %arg9[%c0_107, %c0_108] : memref<1x32xf32, #tpu.memory_space<vmem>>, vector<1x32xf32>
    %cst_109 = arith.constant dense<0.000000e+00> : vector<16xf32>
    %152 = vector.multi_reduction <add>, %149, %cst_109 [1] : vector<16x32xf32> to vector<16xf32>
    %153 = vector.shape_cast %152 : vector<16xf32> to vector<16x1xf32>
    %cst_110 = arith.constant 3.200000e+01 : f32
    %154 = vector.broadcast %cst_110 : f32 to vector<16x1xf32>
    %155 = arith.divf %153, %154 : vector<16x1xf32>
    %156 = vector.broadcast %155 : vector<16x1xf32> to vector<16x32xf32>
    %157 = arith.subf %149, %156 : vector<16x32xf32>
    %158 = arith.mulf %157, %157 : vector<16x32xf32>
    %cst_111 = arith.constant dense<0.000000e+00> : vector<16xf32>
    %159 = vector.multi_reduction <add>, %158, %cst_111 [1] : vector<16x32xf32> to vector<16xf32>
    %160 = vector.shape_cast %159 : vector<16xf32> to vector<16x1xf32>
    %cst_112 = arith.constant 3.200000e+01 : f32
    %161 = vector.broadcast %cst_112 : f32 to vector<16x1xf32>
    %162 = arith.divf %160, %161 : vector<16x1xf32>
    %163 = vector.broadcast %155 : vector<16x1xf32> to vector<16x32xf32>
    %164 = arith.subf %149, %163 : vector<16x32xf32>
    %cst_113 = arith.constant 9.99999997E-7 : f32
    %165 = vector.broadcast %cst_113 : f32 to vector<16x1xf32>
    %166 = arith.addf %162, %165 : vector<16x1xf32>
    %167 = math.rsqrt %166 : vector<16x1xf32>
    %168 = vector.broadcast %167 : vector<16x1xf32> to vector<16x32xf32>
    %169 = arith.mulf %164, %168 : vector<16x32xf32>
    %170 = vector.broadcast %150 : vector<1x32xf32> to vector<16x32xf32>
    %171 = arith.mulf %169, %170 : vector<16x32xf32>
    %172 = vector.broadcast %151 : vector<1x32xf32> to vector<16x32xf32>
    %173 = arith.addf %171, %172 : vector<16x32xf32>
    %c0_114 = arith.constant 0 : index
    %c0_115 = arith.constant 0 : index
    %174 = vector.load %arg3[%c0_114, %c0_115] : memref<16x32xf32, #tpu.memory_space<vmem>>, vector<16x32xf32>
    %cst_116 = arith.constant 5.000000e-01 : f32
    %175 = vector.broadcast %cst_116 : f32 to vector<16x32xf32>
    %176 = arith.cmpf olt, %174, %175 : vector<16x32xf32>
    %cst_117 = arith.constant -1.000000e+09 : f32
    %cst_118 = arith.constant 0.000000e+00 : f32
    %177 = vector.broadcast %cst_117 : f32 to vector<16x32xf32>
    %178 = vector.broadcast %cst_118 : f32 to vector<16x32xf32>
    %179 = arith.select %176, %177, %178 : vector<16x32xi1>, vector<16x32xf32>
    %cst_119 = arith.constant 0.000000e+00 : f32
    %180 = vector.broadcast %cst_119 : f32 to vector<16x32xf32>
    %c0_120 = arith.constant 0 : index
    %c0_121 = arith.constant 0 : index
    %c0_122 = arith.constant 0 : index
    %181 = vector.load %arg10[%c0_120, %c0_121, %c0_122] : memref<4x32x8xf32, #tpu.memory_space<vmem>>, vector<1x32x8xf32>
    %182 = vector.shape_cast %181 : vector<1x32x8xf32> to vector<32x8xf32>
    %cst_123 = arith.constant dense<0.000000e+00> : vector<16x8xf32>
    %183 = tpu.matmul %173, %182, %cst_123 {dimension_numbers = #tpu.dot_dimension_numbers<[1], [0], [0], [1], [0, 0, 1, 1], [], []>} : vector<16x32xf32>, vector<32x8xf32>, vector<16x8xf32> -> vector<16x8xf32>
    %c0_124 = arith.constant 0 : index
    %c0_125 = arith.constant 0 : index
    %c0_126 = arith.constant 0 : index
    %184 = vector.load %arg11[%c0_124, %c0_125, %c0_126] : memref<4x32x8xf32, #tpu.memory_space<vmem>>, vector<1x32x8xf32>
    %185 = vector.shape_cast %184 : vector<1x32x8xf32> to vector<32x8xf32>
    %cst_127 = arith.constant dense<0.000000e+00> : vector<32x8xf32>
    %186 = tpu.matmul %1, %185, %cst_127 {dimension_numbers = #tpu.dot_dimension_numbers<[1], [0], [0], [1], [0, 0, 1, 1], [], []>} : vector<32x32xf32>, vector<32x8xf32>, vector<32x8xf32> -> vector<32x8xf32>
    %c0_128 = arith.constant 0 : index
    %c0_129 = arith.constant 0 : index
    %c0_130 = arith.constant 0 : index
    %187 = vector.load %arg12[%c0_128, %c0_129, %c0_130] : memref<4x32x8xf32, #tpu.memory_space<vmem>>, vector<1x32x8xf32>
    %188 = vector.shape_cast %187 : vector<1x32x8xf32> to vector<32x8xf32>
    %cst_131 = arith.constant dense<0.000000e+00> : vector<32x8xf32>
    %189 = tpu.matmul %1, %188, %cst_131 {dimension_numbers = #tpu.dot_dimension_numbers<[1], [0], [0], [1], [0, 0, 1, 1], [], []>} : vector<32x32xf32>, vector<32x8xf32>, vector<32x8xf32> -> vector<32x8xf32>
    %cst_132 = arith.constant dense<0.000000e+00> : vector<16x32xf32>
    %190 = tpu.matmul %183, %186, %cst_132 {dimension_numbers = #tpu.dot_dimension_numbers<[1], [1], [0], [0], [0, 0, 1, 0], [], []>} : vector<16x8xf32>, vector<32x8xf32>, vector<16x32xf32> -> vector<16x32xf32>
    %cst_133 = arith.constant 0.353553385 : f32
    %191 = vector.broadcast %cst_133 : f32 to vector<16x32xf32>
    %192 = arith.mulf %190, %191 : vector<16x32xf32>
    %193 = arith.addf %192, %179 : vector<16x32xf32>
    %cst_134 = arith.constant dense<0xFF800000> : vector<16xf32>
    %194 = vector.multi_reduction <maximumf>, %193, %cst_134 [1] : vector<16x32xf32> to vector<16xf32>
    %195 = vector.shape_cast %194 : vector<16xf32> to vector<16x1xf32>
    %196 = vector.broadcast %195 : vector<16x1xf32> to vector<16x32xf32>
    %197 = arith.subf %193, %196 : vector<16x32xf32>
    %198 = math.exp %197 : vector<16x32xf32>
    %cst_135 = arith.constant dense<0.000000e+00> : vector<16xf32>
    %199 = vector.multi_reduction <add>, %198, %cst_135 [1] : vector<16x32xf32> to vector<16xf32>
    %200 = vector.shape_cast %199 : vector<16xf32> to vector<16x1xf32>
    %201 = tpu.reciprocal %200 {approx = true} : vector<16x1xf32> -> vector<16x1xf32>
    %202 = arith.mulf %200, %201 : vector<16x1xf32>
    %cst_136 = arith.constant 2.000000e+00 : f32
    %203 = vector.broadcast %cst_136 : f32 to vector<16x1xf32>
    %204 = arith.subf %203, %202 : vector<16x1xf32>
    %205 = arith.mulf %201, %204 : vector<16x1xf32>
    %206 = vector.broadcast %205 : vector<16x1xf32> to vector<16x32xf32>
    %207 = arith.mulf %198, %206 : vector<16x32xf32>
    %c0_137 = arith.constant 0 : index
    %c0_138 = arith.constant 0 : index
    %c0_139 = arith.constant 0 : index
    %208 = vector.load %arg24[%c0_137, %c0_138, %c0_139] : memref<4x16x32xf32, #tpu.memory_space<vmem>>, vector<1x16x32xf32>
    %209 = vector.shape_cast %208 : vector<1x16x32xf32> to vector<16x32xf32>
    %210 = vector.shape_cast %207 : vector<16x32xf32> to vector<1x16x32xf32>
    tpu.vector_store %arg24[%c0_137, %c0_138, %c0_139], %210 {strides = array<i32>} : memref<4x16x32xf32, #tpu.memory_space<vmem>>, vector<1x16x32xf32>,
    %cst_140 = arith.constant dense<0.000000e+00> : vector<16x8xf32>
    %211 = tpu.matmul %207, %189, %cst_140 {dimension_numbers = #tpu.dot_dimension_numbers<[1], [0], [0], [1], [0, 0, 1, 1], [], []>} : vector<16x32xf32>, vector<32x8xf32>, vector<16x8xf32> -> vector<16x8xf32>
    %c0_141 = arith.constant 0 : index
    %c0_142 = arith.constant 0 : index
    %c0_143 = arith.constant 0 : index
    %212 = vector.load %arg13[%c0_141, %c0_142, %c0_143] : memref<4x8x32xf32, #tpu.memory_space<vmem>>, vector<1x8x32xf32>
    %213 = vector.shape_cast %212 : vector<1x8x32xf32> to vector<8x32xf32>
    %cst_144 = arith.constant dense<0.000000e+00> : vector<16x32xf32>
    %214 = tpu.matmul %211, %213, %cst_144 {dimension_numbers = #tpu.dot_dimension_numbers<[1], [0], [0], [1], [0, 0, 1, 1], [], []>} : vector<16x8xf32>, vector<8x32xf32>, vector<16x32xf32> -> vector<16x32xf32>
    %215 = arith.addf %180, %214 : vector<16x32xf32>
    %c1_145 = arith.constant 1 : index
    %c0_146 = arith.constant 0 : index
    %c0_147 = arith.constant 0 : index
    %216 = vector.load %arg10[%c1_145, %c0_146, %c0_147] : memref<4x32x8xf32, #tpu.memory_space<vmem>>, vector<1x32x8xf32>
    %217 = vector.shape_cast %216 : vector<1x32x8xf32> to vector<32x8xf32>
    %cst_148 = arith.constant dense<0.000000e+00> : vector<16x8xf32>
    %218 = tpu.matmul %173, %217, %cst_148 {dimension_numbers = #tpu.dot_dimension_numbers<[1], [0], [0], [1], [0, 0, 1, 1], [], []>} : vector<16x32xf32>, vector<32x8xf32>, vector<16x8xf32> -> vector<16x8xf32>
    %c1_149 = arith.constant 1 : index
    %c0_150 = arith.constant 0 : index
    %c0_151 = arith.constant 0 : index
    %219 = vector.load %arg11[%c1_149, %c0_150, %c0_151] : memref<4x32x8xf32, #tpu.memory_space<vmem>>, vector<1x32x8xf32>
    %220 = vector.shape_cast %219 : vector<1x32x8xf32> to vector<32x8xf32>
    %cst_152 = arith.constant dense<0.000000e+00> : vector<32x8xf32>
    %221 = tpu.matmul %1, %220, %cst_152 {dimension_numbers = #tpu.dot_dimension_numbers<[1], [0], [0], [1], [0, 0, 1, 1], [], []>} : vector<32x32xf32>, vector<32x8xf32>, vector<32x8xf32> -> vector<32x8xf32>
    %c1_153 = arith.constant 1 : index
    %c0_154 = arith.constant 0 : index
    %c0_155 = arith.constant 0 : index
    %222 = vector.load %arg12[%c1_153, %c0_154, %c0_155] : memref<4x32x8xf32, #tpu.memory_space<vmem>>, vector<1x32x8xf32>
    %223 = vector.shape_cast %222 : vector<1x32x8xf32> to vector<32x8xf32>
    %cst_156 = arith.constant dense<0.000000e+00> : vector<32x8xf32>
    %224 = tpu.matmul %1, %223, %cst_156 {dimension_numbers = #tpu.dot_dimension_numbers<[1], [0], [0], [1], [0, 0, 1, 1], [], []>} : vector<32x32xf32>, vector<32x8xf32>, vector<32x8xf32> -> vector<32x8xf32>
    %cst_157 = arith.constant dense<0.000000e+00> : vector<16x32xf32>
    %225 = tpu.matmul %218, %221, %cst_157 {dimension_numbers = #tpu.dot_dimension_numbers<[1], [1], [0], [0], [0, 0, 1, 0], [], []>} : vector<16x8xf32>, vector<32x8xf32>, vector<16x32xf32> -> vector<16x32xf32>
    %cst_158 = arith.constant 0.353553385 : f32
    %226 = vector.broadcast %cst_158 : f32 to vector<16x32xf32>
    %227 = arith.mulf %225, %226 : vector<16x32xf32>
    %228 = arith.addf %227, %179 : vector<16x32xf32>
    %cst_159 = arith.constant dense<0xFF800000> : vector<16xf32>
    %229 = vector.multi_reduction <maximumf>, %228, %cst_159 [1] : vector<16x32xf32> to vector<16xf32>
    %230 = vector.shape_cast %229 : vector<16xf32> to vector<16x1xf32>
    %231 = vector.broadcast %230 : vector<16x1xf32> to vector<16x32xf32>
    %232 = arith.subf %228, %231 : vector<16x32xf32>
    %233 = math.exp %232 : vector<16x32xf32>
    %cst_160 = arith.constant dense<0.000000e+00> : vector<16xf32>
    %234 = vector.multi_reduction <add>, %233, %cst_160 [1] : vector<16x32xf32> to vector<16xf32>
    %235 = vector.shape_cast %234 : vector<16xf32> to vector<16x1xf32>
    %236 = tpu.reciprocal %235 {approx = true} : vector<16x1xf32> -> vector<16x1xf32>
    %237 = arith.mulf %235, %236 : vector<16x1xf32>
    %cst_161 = arith.constant 2.000000e+00 : f32
    %238 = vector.broadcast %cst_161 : f32 to vector<16x1xf32>
    %239 = arith.subf %238, %237 : vector<16x1xf32>
    %240 = arith.mulf %236, %239 : vector<16x1xf32>
    %241 = vector.broadcast %240 : vector<16x1xf32> to vector<16x32xf32>
    %242 = arith.mulf %233, %241 : vector<16x32xf32>
    %c1_162 = arith.constant 1 : index
    %c0_163 = arith.constant 0 : index
    %c0_164 = arith.constant 0 : index
    %243 = vector.load %arg24[%c1_162, %c0_163, %c0_164] : memref<4x16x32xf32, #tpu.memory_space<vmem>>, vector<1x16x32xf32>
    %244 = vector.shape_cast %243 : vector<1x16x32xf32> to vector<16x32xf32>
    %245 = vector.shape_cast %242 : vector<16x32xf32> to vector<1x16x32xf32>
    tpu.vector_store %arg24[%c1_162, %c0_163, %c0_164], %245 {strides = array<i32>} : memref<4x16x32xf32, #tpu.memory_space<vmem>>, vector<1x16x32xf32>,
    %cst_165 = arith.constant dense<0.000000e+00> : vector<16x8xf32>
    %246 = tpu.matmul %242, %224, %cst_165 {dimension_numbers = #tpu.dot_dimension_numbers<[1], [0], [0], [1], [0, 0, 1, 1], [], []>} : vector<16x32xf32>, vector<32x8xf32>, vector<16x8xf32> -> vector<16x8xf32>
    %c1_166 = arith.constant 1 : index
    %c0_167 = arith.constant 0 : index
    %c0_168 = arith.constant 0 : index
    %247 = vector.load %arg13[%c1_166, %c0_167, %c0_168] : memref<4x8x32xf32, #tpu.memory_space<vmem>>, vector<1x8x32xf32>
    %248 = vector.shape_cast %247 : vector<1x8x32xf32> to vector<8x32xf32>
    %cst_169 = arith.constant dense<0.000000e+00> : vector<16x32xf32>
    %249 = tpu.matmul %246, %248, %cst_169 {dimension_numbers = #tpu.dot_dimension_numbers<[1], [0], [0], [1], [0, 0, 1, 1], [], []>} : vector<16x8xf32>, vector<8x32xf32>, vector<16x32xf32> -> vector<16x32xf32>
    %250 = arith.addf %215, %249 : vector<16x32xf32>
    %c2_170 = arith.constant 2 : index
    %c0_171 = arith.constant 0 : index
    %c0_172 = arith.constant 0 : index
    %251 = vector.load %arg10[%c2_170, %c0_171, %c0_172] : memref<4x32x8xf32, #tpu.memory_space<vmem>>, vector<1x32x8xf32>
    %252 = vector.shape_cast %251 : vector<1x32x8xf32> to vector<32x8xf32>
    %cst_173 = arith.constant dense<0.000000e+00> : vector<16x8xf32>
    %253 = tpu.matmul %173, %252, %cst_173 {dimension_numbers = #tpu.dot_dimension_numbers<[1], [0], [0], [1], [0, 0, 1, 1], [], []>} : vector<16x32xf32>, vector<32x8xf32>, vector<16x8xf32> -> vector<16x8xf32>
    %c2_174 = arith.constant 2 : index
    %c0_175 = arith.constant 0 : index
    %c0_176 = arith.constant 0 : index
    %254 = vector.load %arg11[%c2_174, %c0_175, %c0_176] : memref<4x32x8xf32, #tpu.memory_space<vmem>>, vector<1x32x8xf32>
    %255 = vector.shape_cast %254 : vector<1x32x8xf32> to vector<32x8xf32>
    %cst_177 = arith.constant dense<0.000000e+00> : vector<32x8xf32>
    %256 = tpu.matmul %1, %255, %cst_177 {dimension_numbers = #tpu.dot_dimension_numbers<[1], [0], [0], [1], [0, 0, 1, 1], [], []>} : vector<32x32xf32>, vector<32x8xf32>, vector<32x8xf32> -> vector<32x8xf32>
    %c2_178 = arith.constant 2 : index
    %c0_179 = arith.constant 0 : index
    %c0_180 = arith.constant 0 : index
    %257 = vector.load %arg12[%c2_178, %c0_179, %c0_180] : memref<4x32x8xf32, #tpu.memory_space<vmem>>, vector<1x32x8xf32>
    %258 = vector.shape_cast %257 : vector<1x32x8xf32> to vector<32x8xf32>
    %cst_181 = arith.constant dense<0.000000e+00> : vector<32x8xf32>
    %259 = tpu.matmul %1, %258, %cst_181 {dimension_numbers = #tpu.dot_dimension_numbers<[1], [0], [0], [1], [0, 0, 1, 1], [], []>} : vector<32x32xf32>, vector<32x8xf32>, vector<32x8xf32> -> vector<32x8xf32>
    %cst_182 = arith.constant dense<0.000000e+00> : vector<16x32xf32>
    %260 = tpu.matmul %253, %256, %cst_182 {dimension_numbers = #tpu.dot_dimension_numbers<[1], [1], [0], [0], [0, 0, 1, 0], [], []>} : vector<16x8xf32>, vector<32x8xf32>, vector<16x32xf32> -> vector<16x32xf32>
    %cst_183 = arith.constant 0.353553385 : f32
    %261 = vector.broadcast %cst_183 : f32 to vector<16x32xf32>
    %262 = arith.mulf %260, %261 : vector<16x32xf32>
    %263 = arith.addf %262, %179 : vector<16x32xf32>
    %cst_184 = arith.constant dense<0xFF800000> : vector<16xf32>
    %264 = vector.multi_reduction <maximumf>, %263, %cst_184 [1] : vector<16x32xf32> to vector<16xf32>
    %265 = vector.shape_cast %264 : vector<16xf32> to vector<16x1xf32>
    %266 = vector.broadcast %265 : vector<16x1xf32> to vector<16x32xf32>
    %267 = arith.subf %263, %266 : vector<16x32xf32>
    %268 = math.exp %267 : vector<16x32xf32>
    %cst_185 = arith.constant dense<0.000000e+00> : vector<16xf32>
    %269 = vector.multi_reduction <add>, %268, %cst_185 [1] : vector<16x32xf32> to vector<16xf32>
    %270 = vector.shape_cast %269 : vector<16xf32> to vector<16x1xf32>
    %271 = tpu.reciprocal %270 {approx = true} : vector<16x1xf32> -> vector<16x1xf32>
    %272 = arith.mulf %270, %271 : vector<16x1xf32>
    %cst_186 = arith.constant 2.000000e+00 : f32
    %273 = vector.broadcast %cst_186 : f32 to vector<16x1xf32>
    %274 = arith.subf %273, %272 : vector<16x1xf32>
    %275 = arith.mulf %271, %274 : vector<16x1xf32>
    %276 = vector.broadcast %275 : vector<16x1xf32> to vector<16x32xf32>
    %277 = arith.mulf %268, %276 : vector<16x32xf32>
    %c2_187 = arith.constant 2 : index
    %c0_188 = arith.constant 0 : index
    %c0_189 = arith.constant 0 : index
    %278 = vector.load %arg24[%c2_187, %c0_188, %c0_189] : memref<4x16x32xf32, #tpu.memory_space<vmem>>, vector<1x16x32xf32>
    %279 = vector.shape_cast %278 : vector<1x16x32xf32> to vector<16x32xf32>
    %280 = vector.shape_cast %277 : vector<16x32xf32> to vector<1x16x32xf32>
    tpu.vector_store %arg24[%c2_187, %c0_188, %c0_189], %280 {strides = array<i32>} : memref<4x16x32xf32, #tpu.memory_space<vmem>>, vector<1x16x32xf32>,
    %cst_190 = arith.constant dense<0.000000e+00> : vector<16x8xf32>
    %281 = tpu.matmul %277, %259, %cst_190 {dimension_numbers = #tpu.dot_dimension_numbers<[1], [0], [0], [1], [0, 0, 1, 1], [], []>} : vector<16x32xf32>, vector<32x8xf32>, vector<16x8xf32> -> vector<16x8xf32>
    %c2_191 = arith.constant 2 : index
    %c0_192 = arith.constant 0 : index
    %c0_193 = arith.constant 0 : index
    %282 = vector.load %arg13[%c2_191, %c0_192, %c0_193] : memref<4x8x32xf32, #tpu.memory_space<vmem>>, vector<1x8x32xf32>
    %283 = vector.shape_cast %282 : vector<1x8x32xf32> to vector<8x32xf32>
    %cst_194 = arith.constant dense<0.000000e+00> : vector<16x32xf32>
    %284 = tpu.matmul %281, %283, %cst_194 {dimension_numbers = #tpu.dot_dimension_numbers<[1], [0], [0], [1], [0, 0, 1, 1], [], []>} : vector<16x8xf32>, vector<8x32xf32>, vector<16x32xf32> -> vector<16x32xf32>
    %285 = arith.addf %250, %284 : vector<16x32xf32>
    %c3_195 = arith.constant 3 : index
    %c0_196 = arith.constant 0 : index
    %c0_197 = arith.constant 0 : index
    %286 = vector.load %arg10[%c3_195, %c0_196, %c0_197] : memref<4x32x8xf32, #tpu.memory_space<vmem>>, vector<1x32x8xf32>
    %287 = vector.shape_cast %286 : vector<1x32x8xf32> to vector<32x8xf32>
    %cst_198 = arith.constant dense<0.000000e+00> : vector<16x8xf32>
    %288 = tpu.matmul %173, %287, %cst_198 {dimension_numbers = #tpu.dot_dimension_numbers<[1], [0], [0], [1], [0, 0, 1, 1], [], []>} : vector<16x32xf32>, vector<32x8xf32>, vector<16x8xf32> -> vector<16x8xf32>
    %c3_199 = arith.constant 3 : index
    %c0_200 = arith.constant 0 : index
    %c0_201 = arith.constant 0 : index
    %289 = vector.load %arg11[%c3_199, %c0_200, %c0_201] : memref<4x32x8xf32, #tpu.memory_space<vmem>>, vector<1x32x8xf32>
    %290 = vector.shape_cast %289 : vector<1x32x8xf32> to vector<32x8xf32>
    %cst_202 = arith.constant dense<0.000000e+00> : vector<32x8xf32>
    %291 = tpu.matmul %1, %290, %cst_202 {dimension_numbers = #tpu.dot_dimension_numbers<[1], [0], [0], [1], [0, 0, 1, 1], [], []>} : vector<32x32xf32>, vector<32x8xf32>, vector<32x8xf32> -> vector<32x8xf32>
    %c3_203 = arith.constant 3 : index
    %c0_204 = arith.constant 0 : index
    %c0_205 = arith.constant 0 : index
    %292 = vector.load %arg12[%c3_203, %c0_204, %c0_205] : memref<4x32x8xf32, #tpu.memory_space<vmem>>, vector<1x32x8xf32>
    %293 = vector.shape_cast %292 : vector<1x32x8xf32> to vector<32x8xf32>
    %cst_206 = arith.constant dense<0.000000e+00> : vector<32x8xf32>
    %294 = tpu.matmul %1, %293, %cst_206 {dimension_numbers = #tpu.dot_dimension_numbers<[1], [0], [0], [1], [0, 0, 1, 1], [], []>} : vector<32x32xf32>, vector<32x8xf32>, vector<32x8xf32> -> vector<32x8xf32>
    %cst_207 = arith.constant dense<0.000000e+00> : vector<16x32xf32>
    %295 = tpu.matmul %288, %291, %cst_207 {dimension_numbers = #tpu.dot_dimension_numbers<[1], [1], [0], [0], [0, 0, 1, 0], [], []>} : vector<16x8xf32>, vector<32x8xf32>, vector<16x32xf32> -> vector<16x32xf32>
    %cst_208 = arith.constant 0.353553385 : f32
    %296 = vector.broadcast %cst_208 : f32 to vector<16x32xf32>
    %297 = arith.mulf %295, %296 : vector<16x32xf32>
    %298 = arith.addf %297, %179 : vector<16x32xf32>
    %cst_209 = arith.constant dense<0xFF800000> : vector<16xf32>
    %299 = vector.multi_reduction <maximumf>, %298, %cst_209 [1] : vector<16x32xf32> to vector<16xf32>
    %300 = vector.shape_cast %299 : vector<16xf32> to vector<16x1xf32>
    %301 = vector.broadcast %300 : vector<16x1xf32> to vector<16x32xf32>
    %302 = arith.subf %298, %301 : vector<16x32xf32>
    %303 = math.exp %302 : vector<16x32xf32>
    %cst_210 = arith.constant dense<0.000000e+00> : vector<16xf32>
    %304 = vector.multi_reduction <add>, %303, %cst_210 [1] : vector<16x32xf32> to vector<16xf32>
    %305 = vector.shape_cast %304 : vector<16xf32> to vector<16x1xf32>
    %306 = tpu.reciprocal %305 {approx = true} : vector<16x1xf32> -> vector<16x1xf32>
    %307 = arith.mulf %305, %306 : vector<16x1xf32>
    %cst_211 = arith.constant 2.000000e+00 : f32
    %308 = vector.broadcast %cst_211 : f32 to vector<16x1xf32>
    %309 = arith.subf %308, %307 : vector<16x1xf32>
    %310 = arith.mulf %306, %309 : vector<16x1xf32>
    %311 = vector.broadcast %310 : vector<16x1xf32> to vector<16x32xf32>
    %312 = arith.mulf %303, %311 : vector<16x32xf32>
    %c3_212 = arith.constant 3 : index
    %c0_213 = arith.constant 0 : index
    %c0_214 = arith.constant 0 : index
    %313 = vector.load %arg24[%c3_212, %c0_213, %c0_214] : memref<4x16x32xf32, #tpu.memory_space<vmem>>, vector<1x16x32xf32>
    %314 = vector.shape_cast %313 : vector<1x16x32xf32> to vector<16x32xf32>
    %315 = vector.shape_cast %312 : vector<16x32xf32> to vector<1x16x32xf32>
    tpu.vector_store %arg24[%c3_212, %c0_213, %c0_214], %315 {strides = array<i32>} : memref<4x16x32xf32, #tpu.memory_space<vmem>>, vector<1x16x32xf32>,
    %cst_215 = arith.constant dense<0.000000e+00> : vector<16x8xf32>
    %316 = tpu.matmul %312, %294, %cst_215 {dimension_numbers = #tpu.dot_dimension_numbers<[1], [0], [0], [1], [0, 0, 1, 1], [], []>} : vector<16x32xf32>, vector<32x8xf32>, vector<16x8xf32> -> vector<16x8xf32>
    %c3_216 = arith.constant 3 : index
    %c0_217 = arith.constant 0 : index
    %c0_218 = arith.constant 0 : index
    %317 = vector.load %arg13[%c3_216, %c0_217, %c0_218] : memref<4x8x32xf32, #tpu.memory_space<vmem>>, vector<1x8x32xf32>
    %318 = vector.shape_cast %317 : vector<1x8x32xf32> to vector<8x32xf32>
    %cst_219 = arith.constant dense<0.000000e+00> : vector<16x32xf32>
    %319 = tpu.matmul %316, %318, %cst_219 {dimension_numbers = #tpu.dot_dimension_numbers<[1], [0], [0], [1], [0, 0, 1, 1], [], []>} : vector<16x8xf32>, vector<8x32xf32>, vector<16x32xf32> -> vector<16x32xf32>
    %320 = arith.addf %285, %319 : vector<16x32xf32>
    %321 = arith.addf %320, %173 : vector<16x32xf32>
    %c0_220 = arith.constant 0 : index
    %c0_221 = arith.constant 0 : index
    %322 = vector.load %arg14[%c0_220, %c0_221] : memref<1x32xf32, #tpu.memory_space<vmem>>, vector<1x32xf32>
    %c0_222 = arith.constant 0 : index
    %c0_223 = arith.constant 0 : index
    %323 = vector.load %arg15[%c0_222, %c0_223] : memref<1x32xf32, #tpu.memory_space<vmem>>, vector<1x32xf32>
    %cst_224 = arith.constant dense<0.000000e+00> : vector<16xf32>
    %324 = vector.multi_reduction <add>, %321, %cst_224 [1] : vector<16x32xf32> to vector<16xf32>
    %325 = vector.shape_cast %324 : vector<16xf32> to vector<16x1xf32>
    %cst_225 = arith.constant 3.200000e+01 : f32
    %326 = vector.broadcast %cst_225 : f32 to vector<16x1xf32>
    %327 = arith.divf %325, %326 : vector<16x1xf32>
    %328 = vector.broadcast %327 : vector<16x1xf32> to vector<16x32xf32>
    %329 = arith.subf %321, %328 : vector<16x32xf32>
    %330 = arith.mulf %329, %329 : vector<16x32xf32>
    %cst_226 = arith.constant dense<0.000000e+00> : vector<16xf32>
    %331 = vector.multi_reduction <add>, %330, %cst_226 [1] : vector<16x32xf32> to vector<16xf32>
    %332 = vector.shape_cast %331 : vector<16xf32> to vector<16x1xf32>
    %cst_227 = arith.constant 3.200000e+01 : f32
    %333 = vector.broadcast %cst_227 : f32 to vector<16x1xf32>
    %334 = arith.divf %332, %333 : vector<16x1xf32>
    %335 = vector.broadcast %327 : vector<16x1xf32> to vector<16x32xf32>
    %336 = arith.subf %321, %335 : vector<16x32xf32>
    %cst_228 = arith.constant 9.99999997E-7 : f32
    %337 = vector.broadcast %cst_228 : f32 to vector<16x1xf32>
    %338 = arith.addf %334, %337 : vector<16x1xf32>
    %339 = math.rsqrt %338 : vector<16x1xf32>
    %340 = vector.broadcast %339 : vector<16x1xf32> to vector<16x32xf32>
    %341 = arith.mulf %336, %340 : vector<16x32xf32>
    %342 = vector.broadcast %322 : vector<1x32xf32> to vector<16x32xf32>
    %343 = arith.mulf %341, %342 : vector<16x32xf32>
    %344 = vector.broadcast %323 : vector<1x32xf32> to vector<16x32xf32>
    %345 = arith.addf %343, %344 : vector<16x32xf32>
    %c0_229 = arith.constant 0 : index
    %c0_230 = arith.constant 0 : index
    %346 = vector.load %arg16[%c0_229, %c0_230] : memref<32x64xf32, #tpu.memory_space<vmem>>, vector<32x64xf32>
    %cst_231 = arith.constant dense<0.000000e+00> : vector<16x64xf32>
    %347 = tpu.matmul %345, %346, %cst_231 {dimension_numbers = #tpu.dot_dimension_numbers<[1], [0], [0], [1], [0, 0, 1, 1], [], []>} : vector<16x32xf32>, vector<32x64xf32>, vector<16x64xf32> -> vector<16x64xf32>
    %c0_232 = arith.constant 0 : index
    %c0_233 = arith.constant 0 : index
    %348 = vector.load %arg17[%c0_232, %c0_233] : memref<1x64xf32, #tpu.memory_space<vmem>>, vector<1x64xf32>
    %349 = vector.broadcast %348 : vector<1x64xf32> to vector<16x64xf32>
    %350 = arith.addf %347, %349 : vector<16x64xf32>
    %cst_234 = arith.constant 0.000000e+00 : f32
    %351 = vector.broadcast %cst_234 : f32 to vector<16x64xf32>
    %352 = arith.maximumf %350, %351 : vector<16x64xf32>
    %c0_235 = arith.constant 0 : index
    %c0_236 = arith.constant 0 : index
    %353 = vector.load %arg18[%c0_235, %c0_236] : memref<64x32xf32, #tpu.memory_space<vmem>>, vector<64x32xf32>
    %cst_237 = arith.constant dense<0.000000e+00> : vector<16x32xf32>
    %354 = tpu.matmul %352, %353, %cst_237 {dimension_numbers = #tpu.dot_dimension_numbers<[1], [0], [0], [1], [0, 0, 1, 1], [], []>} : vector<16x64xf32>, vector<64x32xf32>, vector<16x32xf32> -> vector<16x32xf32>
    %c0_238 = arith.constant 0 : index
    %c0_239 = arith.constant 0 : index
    %355 = vector.load %arg19[%c0_238, %c0_239] : memref<1x32xf32, #tpu.memory_space<vmem>>, vector<1x32xf32>
    %356 = vector.broadcast %355 : vector<1x32xf32> to vector<16x32xf32>
    %357 = arith.addf %354, %356 : vector<16x32xf32>
    %358 = arith.addf %357, %345 : vector<16x32xf32>
    %c0_240 = arith.constant 0 : index
    %c0_241 = arith.constant 0 : index
    %359 = vector.load %arg20[%c0_240, %c0_241] : memref<1x32xf32, #tpu.memory_space<vmem>>, vector<1x32xf32>
    %c0_242 = arith.constant 0 : index
    %c0_243 = arith.constant 0 : index
    %360 = vector.load %arg21[%c0_242, %c0_243] : memref<1x32xf32, #tpu.memory_space<vmem>>, vector<1x32xf32>
    %cst_244 = arith.constant dense<0.000000e+00> : vector<16xf32>
    %361 = vector.multi_reduction <add>, %358, %cst_244 [1] : vector<16x32xf32> to vector<16xf32>
    %362 = vector.shape_cast %361 : vector<16xf32> to vector<16x1xf32>
    %cst_245 = arith.constant 3.200000e+01 : f32
    %363 = vector.broadcast %cst_245 : f32 to vector<16x1xf32>
    %364 = arith.divf %362, %363 : vector<16x1xf32>
    %365 = vector.broadcast %364 : vector<16x1xf32> to vector<16x32xf32>
    %366 = arith.subf %358, %365 : vector<16x32xf32>
    %367 = arith.mulf %366, %366 : vector<16x32xf32>
    %cst_246 = arith.constant dense<0.000000e+00> : vector<16xf32>
    %368 = vector.multi_reduction <add>, %367, %cst_246 [1] : vector<16x32xf32> to vector<16xf32>
    %369 = vector.shape_cast %368 : vector<16xf32> to vector<16x1xf32>
    %cst_247 = arith.constant 3.200000e+01 : f32
    %370 = vector.broadcast %cst_247 : f32 to vector<16x1xf32>
    %371 = arith.divf %369, %370 : vector<16x1xf32>
    %372 = vector.broadcast %364 : vector<16x1xf32> to vector<16x32xf32>
    %373 = arith.subf %358, %372 : vector<16x32xf32>
    %cst_248 = arith.constant 9.99999997E-7 : f32
    %374 = vector.broadcast %cst_248 : f32 to vector<16x1xf32>
    %375 = arith.addf %371, %374 : vector<16x1xf32>
    %376 = math.rsqrt %375 : vector<16x1xf32>
    %377 = vector.broadcast %376 : vector<16x1xf32> to vector<16x32xf32>
    %378 = arith.mulf %373, %377 : vector<16x32xf32>
    %379 = vector.broadcast %359 : vector<1x32xf32> to vector<16x32xf32>
    %380 = arith.mulf %378, %379 : vector<16x32xf32>
    %381 = vector.broadcast %360 : vector<1x32xf32> to vector<16x32xf32>
    %382 = arith.addf %380, %381 : vector<16x32xf32>
    %c0_249 = arith.constant 0 : index
    %c0_250 = arith.constant 0 : index
    %383 = vector.load %arg22[%c0_249, %c0_250] : memref<16x32xf32, #tpu.memory_space<vmem>>, vector<16x32xf32>
    tpu.vector_store %arg22[%c0_249, %c0_250], %382 {strides = array<i32>} : memref<16x32xf32, #tpu.memory_space<vmem>>, vector<16x32xf32>,
    return
  }
}

</mosaic_0001>

<llo_original>
// kernel: decoder_layer.1
$region0: #{decoder_layer.1}
  #allocation0 [shape = 'u32[]', space=smem, size = 0x4, offset = 0x4, fixed_abs, tag = 'smem constant byte address 0x4 - core index']
  #allocation1 [shape = 'u32[72,128]{1,0:T(1,128)}', space=vmem, size = 0x9000, scoped, tag = 'internal scratch']
  %s0 = inlined_call_operand.vmem [shape: f32[16,32], index: 0, kind: input, shape index: {}]
  %s1 = inlined_call_operand.vmem [shape: f32[32,32], index: 1, kind: input, shape index: {}]
  %s2 = inlined_call_operand.vmem [shape: f32[16,16], index: 2, kind: input, shape index: {}]
  %s3 = inlined_call_operand.vmem [shape: f32[16,32], index: 3, kind: input, shape index: {}]
  %s4 = inlined_call_operand.vmem [shape: f32[4,32,8], index: 4, kind: input, shape index: {}]
  %s5 = inlined_call_operand.vmem [shape: f32[4,32,8], index: 5, kind: input, shape index: {}]
  %s6 = inlined_call_operand.vmem [shape: f32[4,32,8], index: 6, kind: input, shape index: {}]
  %s7 = inlined_call_operand.vmem [shape: f32[4,8,32], index: 7, kind: input, shape index: {}]
  %s8 = inlined_call_operand.vmem [shape: f32[1,32], index: 8, kind: input, shape index: {}]
  %s9 = inlined_call_operand.vmem [shape: f32[1,32], index: 9, kind: input, shape index: {}]
  %s10 = inlined_call_operand.vmem [shape: f32[4,32,8], index: 10, kind: input, shape index: {}]
  %s11 = inlined_call_operand.vmem [shape: f32[4,32,8], index: 11, kind: input, shape index: {}]
  %s12 = inlined_call_operand.vmem [shape: f32[4,32,8], index: 12, kind: input, shape index: {}]
  %s13 = inlined_call_operand.vmem [shape: f32[4,8,32], index: 13, kind: input, shape index: {}]
  %s14 = inlined_call_operand.vmem [shape: f32[1,32], index: 14, kind: input, shape index: {}]
  %s15 = inlined_call_operand.vmem [shape: f32[1,32], index: 15, kind: input, shape index: {}]
  %s16 = inlined_call_operand.vmem [shape: f32[32,64], index: 16, kind: input, shape index: {}]
  %s17 = inlined_call_operand.vmem [shape: f32[1,64], index: 17, kind: input, shape index: {}]
  %s18 = inlined_call_operand.vmem [shape: f32[64,32], index: 18, kind: input, shape index: {}]
  %s19 = inlined_call_operand.vmem [shape: f32[1,32], index: 19, kind: input, shape index: {}]
  %s20 = inlined_call_operand.vmem [shape: f32[1,32], index: 20, kind: input, shape index: {}]
  %s21 = inlined_call_operand.vmem [shape: f32[1,32], index: 21, kind: input, shape index: {}]
  %s22 = inlined_call_operand.hbm [shape: f32[16,32], index: 22, kind: output, shape index: {0}]
  %s23 = inlined_call_operand.vmem [shape: f32[4,16,16], index: 23, kind: output, shape index: {1}]
  %s24 = inlined_call_operand.vmem [shape: f32[4,16,32], index: 24, kind: output, shape index: {2}]
  %25 = xla_tuple %s22, %s23, %s24
  %s26 = sld [smem:[#allocation0]]
  $region114: #{decoder_layer.1} parent=0
    _
  %s28 = ssub.s32 1, %s26
  %s29 = scalar_select 0, %s28, %s26
  $region1: #{decoder_layer.1} parent=0
    #allocation2 [shape = 'u8[8192]{0}', space=vmem, size = 0x2000, scoped, tag = 'output window, operand 0, single buffered']
    #allocation3 [shape = 's32[1]{0}', space=sflag, size = 0x4, scoped, tag = 'scoped memory for decoder_layer.1']
    %30 = vsyncpa [#allocation3], 0
    // Predicated region
    $region2: #{decoder_layer.1} parent=1 // pred_check
      _
    $region3: #{decoder_layer.1} parent=1 // pred_check_branch
      %32 = sbr.rel (0) target = $region5
    $region4: #{decoder_layer.1} parent=1 // pred_region
      _
    $region5: #{decoder_layer.1} parent=1 // pred_fallthru
      _
    // Predicated region
    $region6: #{decoder_layer.1} parent=1 // pred_check
      _
    $region7: #{decoder_layer.1} parent=1 // pred_check_branch
      %34 = sbr.rel (0) target = $region9
    $region8: #{decoder_layer.1} parent=1 // pred_region
      _
    $region9: #{decoder_layer.1} parent=1 // pred_fallthru
      _
    // Predicated region
    $region10: #{decoder_layer.1} parent=1 // pred_check
      _
    $region11: #{decoder_layer.1} parent=1 // pred_check_branch
      %36 = sbr.rel (0) target = $region13
    $region12: #{decoder_layer.1} parent=1 // pred_region
      _
    $region13: #{decoder_layer.1} parent=1 // pred_fallthru
      _
    // Predicated region
    $region14: #{decoder_layer.1} parent=1 // pred_check
      _
    $region15: #{decoder_layer.1} parent=1 // pred_check_branch
      %38 = sbr.rel (0) target = $region17
    $region16: #{decoder_layer.1} parent=1 // pred_region
      _
    $region17: #{decoder_layer.1} parent=1 // pred_fallthru
      _
    // Predicated region
    $region18: #{decoder_layer.1} parent=1 // pred_check
      _
    $region19: #{decoder_layer.1} parent=1 // pred_check_branch
      %40 = sbr.rel (0) target = $region21
    $region20: #{decoder_layer.1} parent=1 // pred_region
      _
    $region21: #{decoder_layer.1} parent=1 // pred_fallthru
      _
    // Predicated region
    $region22: #{decoder_layer.1} parent=1 // pred_check
      _
    $region23: #{decoder_layer.1} parent=1 // pred_check_branch
      %42 = sbr.rel (0) target = $region25
    $region24: #{decoder_layer.1} parent=1 // pred_region
      _
    $region25: #{decoder_layer.1} parent=1 // pred_fallthru
      _
    // Predicated region
    $region26: #{decoder_layer.1} parent=1 // pred_check
      _
    $region27: #{decoder_layer.1} parent=1 // pred_check_branch
      %44 = sbr.rel (0) target = $region29
    $region28: #{decoder_layer.1} parent=1 // pred_region
      _
    $region29: #{decoder_layer.1} parent=1 // pred_fallthru
      _
    // Predicated region
    $region30: #{decoder_layer.1} parent=1 // pred_check
      _
    $region31: #{decoder_layer.1} parent=1 // pred_check_branch
      %46 = sbr.rel (0) target = $region33
    $region32: #{decoder_layer.1} parent=1 // pred_region
      _
    $region33: #{decoder_layer.1} parent=1 // pred_fallthru
      _
    // Predicated region
    $region34: #{decoder_layer.1} parent=1 // pred_check
      _
    $region35: #{decoder_layer.1} parent=1 // pred_check_branch
      %48 = sbr.rel (0) target = $region37
    $region36: #{decoder_layer.1} parent=1 // pred_region
      _
    $region37: #{decoder_layer.1} parent=1 // pred_fallthru
      _
    // Predicated region
    $region38: #{decoder_layer.1} parent=1 // pred_check
      _
    $region39: #{decoder_layer.1} parent=1 // pred_check_branch
      %50 = sbr.rel (0) target = $region41
    $region40: #{decoder_layer.1} parent=1 // pred_region
      _
    $region41: #{decoder_layer.1} parent=1 // pred_fallthru
      _
    // Predicated region
    $region42: #{decoder_layer.1} parent=1 // pred_check
      _
    $region43: #{decoder_layer.1} parent=1 // pred_check_branch
      %52 = sbr.rel (0) target = $region45
    $region44: #{decoder_layer.1} parent=1 // pred_region
      _
    $region45: #{decoder_layer.1} parent=1 // pred_fallthru
      _
    // Predicated region
    $region46: #{decoder_layer.1} parent=1 // pred_check
      _
    $region47: #{decoder_layer.1} parent=1 // pred_check_branch
      %54 = sbr.rel (0) target = $region49
    $region48: #{decoder_layer.1} parent=1 // pred_region
      _
    $region49: #{decoder_layer.1} parent=1 // pred_fallthru
      _
    // Predicated region
    $region50: #{decoder_layer.1} parent=1 // pred_check
      _
    $region51: #{decoder_layer.1} parent=1 // pred_check_branch
      %56 = sbr.rel (0) target = $region53
    $region52: #{decoder_layer.1} parent=1 // pred_region
      _
    $region53: #{decoder_layer.1} parent=1 // pred_fallthru
      _
    // Predicated region
    $region54: #{decoder_layer.1} parent=1 // pred_check
      _
    $region55: #{decoder_layer.1} parent=1 // pred_check_branch
      %58 = sbr.rel (0) target = $region57
    $region56: #{decoder_layer.1} parent=1 // pred_region
      _
    $region57: #{decoder_layer.1} parent=1 // pred_fallthru
      _
    // Predicated region
    $region58: #{decoder_layer.1} parent=1 // pred_check
      _
    $region59: #{decoder_layer.1} parent=1 // pred_check_branch
      %60 = sbr.rel (0) target = $region61
    $region60: #{decoder_layer.1} parent=1 // pred_region
      _
    $region61: #{decoder_layer.1} parent=1 // pred_fallthru
      _
    // Predicated region
    $region62: #{decoder_layer.1} parent=1 // pred_check
      _
    $region63: #{decoder_layer.1} parent=1 // pred_check_branch
      %62 = sbr.rel (0) target = $region65
    $region64: #{decoder_layer.1} parent=1 // pred_region
      _
    $region65: #{decoder_layer.1} parent=1 // pred_fallthru
      _
    // Predicated region
    $region66: #{decoder_layer.1} parent=1 // pred_check
      _
    $region67: #{decoder_layer.1} parent=1 // pred_check_branch
      %64 = sbr.rel (0) target = $region69
    $region68: #{decoder_layer.1} parent=1 // pred_region
      _
    $region69: #{decoder_layer.1} parent=1 // pred_fallthru
      _
    // Predicated region
    $region70: #{decoder_layer.1} parent=1 // pred_check
      _
    $region71: #{decoder_layer.1} parent=1 // pred_check_branch
      %66 = sbr.rel (0) target = $region73
    $region72: #{decoder_layer.1} parent=1 // pred_region
      _
    $region73: #{decoder_layer.1} parent=1 // pred_fallthru
      _
    // Predicated region
    $region74: #{decoder_layer.1} parent=1 // pred_check
      _
    $region75: #{decoder_layer.1} parent=1 // pred_check_branch
      %68 = sbr.rel (0) target = $region77
    $region76: #{decoder_layer.1} parent=1 // pred_region
      _
    $region77: #{decoder_layer.1} parent=1 // pred_fallthru
      _
    // Predicated region
    $region78: #{decoder_layer.1} parent=1 // pred_check
      _
    $region79: #{decoder_layer.1} parent=1 // pred_check_branch
      %70 = sbr.rel (0) target = $region81
    $region80: #{decoder_layer.1} parent=1 // pred_region
      _
    $region81: #{decoder_layer.1} parent=1 // pred_fallthru
      _
    // Predicated region
    $region82: #{decoder_layer.1} parent=1 // pred_check
      _
    $region83: #{decoder_layer.1} parent=1 // pred_check_branch
      %72 = sbr.rel (0) target = $region85
    $region84: #{decoder_layer.1} parent=1 // pred_region
      _
    $region85: #{decoder_layer.1} parent=1 // pred_fallthru
      _
    // Predicated region
    $region86: #{decoder_layer.1} parent=1 // pred_check
      _
    $region87: #{decoder_layer.1} parent=1 // pred_check_branch
      %74 = sbr.rel (0) target = $region89
    $region88: #{decoder_layer.1} parent=1 // pred_region
      _
    $region89: #{decoder_layer.1} parent=1 // pred_fallthru
      _
    %v75 = vld [vmem:[%s0] sm:$0xff]
    %v76 = vld [vmem:[%s0 + $0x8] sm:$0xff]
    %v77 = vld [vmem:[%s1] sm:$0xff]
    %v78 = vld [vmem:[%s1 + $0x8] sm:$0xff]
    %v79 = vld [vmem:[%s1 + $0x10] sm:$0xff]
    %v80 = vld [vmem:[%s1 + $0x18] sm:$0xff]
    %v81 = vld [vmem:[%s2] sm:$0xff]
    %v82 = vld [vmem:[%s2 + $0x8] sm:$0xff]
    %vm83 = vcmp.lt.f32.partialorder %v81, 0.5
    %vm84 = vcmp.lt.f32.partialorder %v82, 0.5
    %v85 = vsel %vm83, -1e+09, 0.0
    %v86 = vsel %vm84, -1e+09, 0.0
    %v87 = vld [vmem:[%s4] sm:$0xff]
    %v88 = vld [vmem:[%s4 + $0x8] sm:$0xff]
    %v89 = vld [vmem:[%s4 + $0x10] sm:$0xff]
    %v90 = vld [vmem:[%s4 + $0x18] sm:$0xff]
    %vm91 = vcmask 261120
    %v93 = vsel %vm91, %v75, 0
    %v96 = vsel %vm91, %v76, 0
    %98 = vmatpush.msra.mxu0 0.0
    %99 = vmatpush.msra.mxu0 0.0
    %100 = vmatpush.msra.mxu0 0.0
    %101 = vmatpush.msra.mxu0 0.0
    %102 = vmatpush.msra.mxu0 0.0
    %103 = vmatpush.msra.mxu0 0.0
    %104 = vmatpush.msra.mxu0 0.0
    %105 = vmatpush.msra.mxu0 0.0
    %106 = vmatpush.msra.mxu0 0.0
    %107 = vmatpush.msra.mxu0 0.0
    %108 = vmatpush.msra.mxu0 0.0
    %109 = vmatpush.msra.mxu0 0.0
    %110 = vmatpush.msra.mxu0 %v90
    %111 = vmatpush.msra.mxu0 %v89
    %112 = vmatpush.msra.mxu0 %v88
    %113 = vmatpush.msra.mxu0 %v87
    %114 = vmatmul.f32.gmra.mxu0 %v93
    %v115 = vpop.f32.mrf.mxu0
    %v116 = vadd.f32 0.0, %v115
    %117 = vmatmul.f32.gmra.mxu0 %v96
    %v118 = vpop.f32.mrf.mxu0
    %v119 = vadd.f32 0.0, %v118
    %120 = vdwg.mxu0
    %v121 = vld [vmem:[%s5] sm:$0xff]
    %v122 = vld [vmem:[%s5 + $0x8] sm:$0xff]
    %v123 = vld [vmem:[%s5 + $0x10] sm:$0xff]
    %v124 = vld [vmem:[%s5 + $0x18] sm:$0xff]
    %125 = vmatpush.msra.mxu0 0.0
    %126 = vmatpush.msra.mxu0 0.0
    %127 = vmatpush.msra.mxu0 0.0
    %128 = vmatpush.msra.mxu0 0.0
    %129 = vmatpush.msra.mxu0 0.0
    %130 = vmatpush.msra.mxu0 0.0
    %131 = vmatpush.msra.mxu0 0.0
    %132 = vmatpush.msra.mxu0 0.0
    %133 = vmatpush.msra.mxu0 0.0
    %134 = vmatpush.msra.mxu0 0.0
    %135 = vmatpush.msra.mxu0 0.0
    %136 = vmatpush.msra.mxu0 0.0
    %137 = vmatpush.msra.mxu0 %v124
    %138 = vmatpush.msra.mxu0 %v123
    %139 = vmatpush.msra.mxu0 %v122
    %140 = vmatpush.msra.mxu0 %v121
    %141 = vmatmul.f32.gmra.mxu0 %v93
    %v142 = vpop.f32.mrf.mxu0
    %v143 = vadd.f32 0.0, %v142
    %144 = vmatmul.f32.gmra.mxu0 %v96
    %v145 = vpop.f32.mrf.mxu0
    %v146 = vadd.f32 0.0, %v145
    %147 = vdwg.mxu0
    %v148 = vld [vmem:[%s6] sm:$0xff]
    %v149 = vld [vmem:[%s6 + $0x8] sm:$0xff]
    %v150 = vld [vmem:[%s6 + $0x10] sm:$0xff]
    %v151 = vld [vmem:[%s6 + $0x18] sm:$0xff]
    %152 = vmatpush.msra.mxu0 0.0
    %153 = vmatpush.msra.mxu0 0.0
    %154 = vmatpush.msra.mxu0 0.0
    %155 = vmatpush.msra.mxu0 0.0
    %156 = vmatpush.msra.mxu0 0.0
    %157 = vmatpush.msra.mxu0 0.0
    %158 = vmatpush.msra.mxu0 0.0
    %159 = vmatpush.msra.mxu0 0.0
    %160 = vmatpush.msra.mxu0 0.0
    %161 = vmatpush.msra.mxu0 0.0
    %162 = vmatpush.msra.mxu0 0.0
    %163 = vmatpush.msra.mxu0 0.0
    %164 = vmatpush.msra.mxu0 %v151
    %165 = vmatpush.msra.mxu0 %v150
    %166 = vmatpush.msra.mxu0 %v149
    %167 = vmatpush.msra.mxu0 %v148
    %168 = vmatmul.f32.gmra.mxu0 %v93
    %v169 = vpop.f32.mrf.mxu0
    %v170 = vadd.f32 0.0, %v169
    %171 = vmatmul.f32.gmra.mxu0 %v96
    %v172 = vpop.f32.mrf.mxu0
    %v173 = vadd.f32 0.0, %v172
    %174 = vdwg.mxu0
    %vm175 = vcmask 64512
    %v177 = vsel %vm175, %v116, 0
    %v180 = vsel %vm175, %v119, 0
    %v183 = vsel %vm175, %v143, 0
    %v186 = vsel %vm175, %v146, 0
    %188 = vmatpush.xpose.msra.mxu0 0.0
    %189 = vmatpush.xpose.msra.mxu0 0.0
    %190 = vmatpush.xpose.msra.mxu0 0.0
    %191 = vmatpush.xpose.msra.mxu0 0.0
    %192 = vmatpush.xpose.msra.mxu0 0.0
    %193 = vmatpush.xpose.msra.mxu0 0.0
    %194 = vmatpush.xpose.msra.mxu0 0.0
    %195 = vmatpush.xpose.msra.mxu0 0.0
    %196 = vmatpush.xpose.msra.mxu0 0.0
    %197 = vmatpush.xpose.msra.mxu0 0.0
    %198 = vmatpush.xpose.msra.mxu0 0.0
    %199 = vmatpush.xpose.msra.mxu0 0.0
    %200 = vmatpush.xpose.msra.mxu0 0.0
    %201 = vmatpush.xpose.msra.mxu0 0.0
    %202 = vmatpush.xpose.msra.mxu0 %v186
    %203 = vmatpush.xpose.msra.mxu0 %v183
    %204 = vmatmul.f32.gmra.mxu0 %v177
    %v205 = vpop.f32.mrf.mxu0
    %v206 = vadd.f32 0.0, %v205
    %207 = vmatmul.f32.gmra.mxu0 %v180
    %v208 = vpop.f32.mrf.mxu0
    %v209 = vadd.f32 0.0, %v208
    %210 = vdwg.mxu0
    %v211 = vmul.f32 %v206, 0.35355338
    %v212 = vmul.f32 %v209, 0.35355338
    %v213 = vadd.f32 %v211, %v85
    %v214 = vadd.f32 %v212, %v86
    %vm215 = vcmask 130048
    %v216 = vsel %vm215, %v213, -inf
    %217 = vmax.xlane.f32.xlu0 %v216
    %v218 = vpop.xlane.xlu0 %217
    %v219 = vsel %vm215, %v214, -inf
    %220 = vmax.xlane.f32.xlu0 %v219
    %v221 = vpop.xlane.xlu0 %220
    %v222 = vsub.f32 %v213, %v218
    %v223 = vsub.f32 %v214, %v221
    %v224 = vmul.f32 %v222, 1.442695
    %v225 = vpow.pop %v224
    %v226 = vmul.f32 %v223, 1.442695
    %v227 = vpow.pop %v226
    %v228 = vsel %vm215, %v225, 0.0
    %229 = vadd.xlane.f32.xlu0 %v228
    %v230 = vpop.xlane.xlu0 %229
    %v231 = vsel %vm215, %v227, 0.0
    %232 = vadd.xlane.f32.xlu0 %v231
    %v233 = vpop.xlane.xlu0 %232
    %v234 = vrcp.pop %v230
    %v235 = vrcp.pop %v233
    %v236 = vmul.f32 %v230, %v234
    %v237 = vmul.f32 %v233, %v235
    %v238 = vsub.f32 2.0, %v236
    %v239 = vsub.f32 2.0, %v237
    %v240 = vmul.f32 %v234, %v238
    %v241 = vmul.f32 %v235, %v239
    %v242 = vmul.f32 %v225, %v240
    %v243 = vmul.f32 %v227, %v241
    %244 = vst.msk [vmem:[%s23] sm:$0xff] %vm215, %v242
    %245 = vst.msk [vmem:[%s23 + $0x8] sm:$0xff] %vm215, %v243
    %v247 = vsel %vm215, %v242, 0
    %v250 = vsel %vm215, %v243, 0
    %252 = vmatpush.msra.mxu0 0.0
    %253 = vmatpush.msra.mxu0 0.0
    %254 = vmatpush.msra.mxu0 0.0
    %255 = vmatpush.msra.mxu0 0.0
    %256 = vmatpush.msra.mxu0 0.0
    %257 = vmatpush.msra.mxu0 0.0
    %258 = vmatpush.msra.mxu0 0.0
    %259 = vmatpush.msra.mxu0 0.0
    %260 = vmatpush.msra.mxu0 0.0
    %261 = vmatpush.msra.mxu0 0.0
    %262 = vmatpush.msra.mxu0 0.0
    %263 = vmatpush.msra.mxu0 0.0
    %264 = vmatpush.msra.mxu0 0.0
    %265 = vmatpush.msra.mxu0 0.0
    %266 = vmatpush.msra.mxu0 %v173
    %267 = vmatpush.msra.mxu0 %v170
    %268 = vmatmul.f32.gmra.mxu0 %v247
    %v269 = vpop.f32.mrf.mxu0
    %v270 = vadd.f32 0.0, %v269
    %271 = vmatmul.f32.gmra.mxu0 %v250
    %v272 = vpop.f32.mrf.mxu0
    %v273 = vadd.f32 0.0, %v272
    %274 = vdwg.mxu0
    %v275 = vld [vmem:[%s7] sm:$0xff]
    %s276 = scalar_lea.vmem %s4, 32
    %v277 = vld [vmem:[%s276] sm:$0xff]
    %v278 = vld [vmem:[%s276 + $0x8] sm:$0xff]
    %v279 = vld [vmem:[%s276 + $0x10] sm:$0xff]
    %v280 = vld [vmem:[%s276 + $0x18] sm:$0xff]
    %281 = vmatpush.msra.mxu0 0.0
    %282 = vmatpush.msra.mxu0 0.0
    %283 = vmatpush.msra.mxu0 0.0
    %284 = vmatpush.msra.mxu0 0.0
    %285 = vmatpush.msra.mxu0 0.0
    %286 = vmatpush.msra.mxu0 0.0
    %287 = vmatpush.msra.mxu0 0.0
    %288 = vmatpush.msra.mxu0 0.0
    %289 = vmatpush.msra.mxu0 0.0
    %290 = vmatpush.msra.mxu0 0.0
    %291 = vmatpush.msra.mxu0 0.0
    %292 = vmatpush.msra.mxu0 0.0
    %293 = vmatpush.msra.mxu0 %v280
    %294 = vmatpush.msra.mxu0 %v279
    %295 = vmatpush.msra.mxu0 %v278
    %296 = vmatpush.msra.mxu0 %v277
    %297 = vmatmul.f32.gmra.mxu0 %v93
    %v298 = vpop.f32.mrf.mxu0
    %v299 = vadd.f32 0.0, %v298
    %300 = vmatmul.f32.gmra.mxu0 %v96
    %v301 = vpop.f32.mrf.mxu0
    %v302 = vadd.f32 0.0, %v301
    %303 = vdwg.mxu0
    %s304 = scalar_lea.vmem %s5, 32
    %v305 = vld [vmem:[%s304] sm:$0xff]
    %v306 = vld [vmem:[%s304 + $0x8] sm:$0xff]
    %v307 = vld [vmem:[%s304 + $0x10] sm:$0xff]
    %v308 = vld [vmem:[%s304 + $0x18] sm:$0xff]
    %309 = vmatpush.msra.mxu0 0.0
    %310 = vmatpush.msra.mxu0 0.0
    %311 = vmatpush.msra.mxu0 0.0
    %312 = vmatpush.msra.mxu0 0.0
    %313 = vmatpush.msra.mxu0 0.0
    %314 = vmatpush.msra.mxu0 0.0
    %315 = vmatpush.msra.mxu0 0.0
    %316 = vmatpush.msra.mxu0 0.0
    %317 = vmatpush.msra.mxu0 0.0
    %318 = vmatpush.msra.mxu0 0.0
    %319 = vmatpush.msra.mxu0 0.0
    %320 = vmatpush.msra.mxu0 0.0
    %321 = vmatpush.msra.mxu0 %v308
    %322 = vmatpush.msra.mxu0 %v307
    %323 = vmatpush.msra.mxu0 %v306
    %324 = vmatpush.msra.mxu0 %v305
    %325 = vmatmul.f32.gmra.mxu0 %v93
    %v326 = vpop.f32.mrf.mxu0
    %v327 = vadd.f32 0.0, %v326
    %328 = vmatmul.f32.gmra.mxu0 %v96
    %v329 = vpop.f32.mrf.mxu0
    %v330 = vadd.f32 0.0, %v329
    %331 = vdwg.mxu0
    %s332 = scalar_lea.vmem %s6, 32
    %v333 = vld [vmem:[%s332] sm:$0xff]
    %v334 = vld [vmem:[%s332 + $0x8] sm:$0xff]
    %v335 = vld [vmem:[%s332 + $0x10] sm:$0xff]
    %v336 = vld [vmem:[%s332 + $0x18] sm:$0xff]
    %337 = vmatpush.msra.mxu0 0.0
    %338 = vmatpush.msra.mxu0 0.0
    %339 = vmatpush.msra.mxu0 0.0
    %340 = vmatpush.msra.mxu0 0.0
    %341 = vmatpush.msra.mxu0 0.0
    %342 = vmatpush.msra.mxu0 0.0
    %343 = vmatpush.msra.mxu0 0.0
    %344 = vmatpush.msra.mxu0 0.0
    %345 = vmatpush.msra.mxu0 0.0
    %346 = vmatpush.msra.mxu0 0.0
    %347 = vmatpush.msra.mxu0 0.0
    %348 = vmatpush.msra.mxu0 0.0
    %349 = vmatpush.msra.mxu0 %v336
    %350 = vmatpush.msra.mxu0 %v335
    %351 = vmatpush.msra.mxu0 %v334
    %352 = vmatpush.msra.mxu0 %v333
    %353 = vmatmul.f32.gmra.mxu0 %v93
    %v354 = vpop.f32.mrf.mxu0
    %v355 = vadd.f32 0.0, %v354
    %356 = vmatmul.f32.gmra.mxu0 %v96
    %v357 = vpop.f32.mrf.mxu0
    %v358 = vadd.f32 0.0, %v357
    %359 = vdwg.mxu0
    %v361 = vsel %vm175, %v299, 0
    %v364 = vsel %vm175, %v302, 0
    %v367 = vsel %vm175, %v327, 0
    %v370 = vsel %vm175, %v330, 0
    %372 = vmatpush.xpose.msra.mxu0 0.0
    %373 = vmatpush.xpose.msra.mxu0 0.0
    %374 = vmatpush.xpose.msra.mxu0 0.0
    %375 = vmatpush.xpose.msra.mxu0 0.0
    %376 = vmatpush.xpose.msra.mxu0 0.0
    %377 = vmatpush.xpose.msra.mxu0 0.0
    %378 = vmatpush.xpose.msra.mxu0 0.0
    %379 = vmatpush.xpose.msra.mxu0 0.0
    %380 = vmatpush.xpose.msra.mxu0 0.0
    %381 = vmatpush.xpose.msra.mxu0 0.0
    %382 = vmatpush.xpose.msra.mxu0 0.0
    %383 = vmatpush.xpose.msra.mxu0 0.0
    %384 = vmatpush.xpose.msra.mxu0 0.0
    %385 = vmatpush.xpose.msra.mxu0 0.0
    %386 = vmatpush.xpose.msra.mxu0 %v370
    %387 = vmatpush.xpose.msra.mxu0 %v367
    %388 = vmatmul.f32.gmra.mxu0 %v361
    %v389 = vpop.f32.mrf.mxu0
    %v390 = vadd.f32 0.0, %v389
    %391 = vmatmul.f32.gmra.mxu0 %v364
    %v392 = vpop.f32.mrf.mxu0
    %v393 = vadd.f32 0.0, %v392
    %394 = vdwg.mxu0
    %v395 = vmul.f32 %v390, 0.35355338
    %v396 = vmul.f32 %v393, 0.35355338
    %v397 = vadd.f32 %v395, %v85
    %v398 = vadd.f32 %v396, %v86
    %v399 = vsel %vm215, %v397, -inf
    %400 = vmax.xlane.f32.xlu0 %v399
    %v401 = vpop.xlane.xlu0 %400
    %v402 = vsel %vm215, %v398, -inf
    %403 = vmax.xlane.f32.xlu0 %v402
    %v404 = vpop.xlane.xlu0 %403
    %v405 = vsub.f32 %v397, %v401
    %v406 = vsub.f32 %v398, %v404
    %v407 = vmul.f32 %v405, 1.442695
    %v408 = vpow.pop %v407
    %v409 = vmul.f32 %v406, 1.442695
    %v410 = vpow.pop %v409
    %v411 = vsel %vm215, %v408, 0.0
    %412 = vadd.xlane.f32.xlu0 %v411
    %v413 = vpop.xlane.xlu0 %412
    %v414 = vsel %vm215, %v410, 0.0
    %415 = vadd.xlane.f32.xlu0 %v414
    %v416 = vpop.xlane.xlu0 %415
    %v417 = vrcp.pop %v413
    %v418 = vrcp.pop %v416
    %v419 = vmul.f32 %v413, %v417
    %v420 = vmul.f32 %v416, %v418
    %v421 = vsub.f32 2.0, %v419
    %v422 = vsub.f32 2.0, %v420
    %v423 = vmul.f32 %v417, %v421
    %v424 = vmul.f32 %v418, %v422
    %v425 = vmul.f32 %v408, %v423
    %v426 = vmul.f32 %v410, %v424
    %s427 = scalar_lea.vmem %s23, 16
    %428 = vst.msk [vmem:[%s427] sm:$0xff] %vm215, %v425
    %429 = vst.msk [vmem:[%s427 + $0x8] sm:$0xff] %vm215, %v426
    %v431 = vsel %vm215, %v425, 0
    %v434 = vsel %vm215, %v426, 0
    %436 = vmatpush.msra.mxu0 0.0
    %437 = vmatpush.msra.mxu0 0.0
    %438 = vmatpush.msra.mxu0 0.0
    %439 = vmatpush.msra.mxu0 0.0
    %440 = vmatpush.msra.mxu0 0.0
    %441 = vmatpush.msra.mxu0 0.0
    %442 = vmatpush.msra.mxu0 0.0
    %443 = vmatpush.msra.mxu0 0.0
    %444 = vmatpush.msra.mxu0 0.0
    %445 = vmatpush.msra.mxu0 0.0
    %446 = vmatpush.msra.mxu0 0.0
    %447 = vmatpush.msra.mxu0 0.0
    %448 = vmatpush.msra.mxu0 0.0
    %449 = vmatpush.msra.mxu0 0.0
    %450 = vmatpush.msra.mxu0 %v358
    %451 = vmatpush.msra.mxu0 %v355
    %452 = vmatmul.f32.gmra.mxu0 %v431
    %v453 = vpop.f32.mrf.mxu0
    %v454 = vadd.f32 0.0, %v453
    %455 = vmatmul.f32.gmra.mxu0 %v434
    %v456 = vpop.f32.mrf.mxu0
    %v457 = vadd.f32 0.0, %v456
    %458 = vdwg.mxu0
    %s459 = scalar_lea.vmem %s7, 8
    %v460 = vld [vmem:[%s459] sm:$0xff]
    %v462 = vsel %vm175, %v454, 0
    %v465 = vsel %vm175, %v457, 0
    %467 = vmatpush.msra.mxu0 0.0
    %468 = vmatpush.msra.mxu0 0.0
    %469 = vmatpush.msra.mxu0 0.0
    %470 = vmatpush.msra.mxu0 0.0
    %471 = vmatpush.msra.mxu0 0.0
    %472 = vmatpush.msra.mxu0 0.0
    %473 = vmatpush.msra.mxu0 0.0
    %474 = vmatpush.msra.mxu0 0.0
    %475 = vmatpush.msra.mxu0 0.0
    %476 = vmatpush.msra.mxu0 0.0
    %477 = vmatpush.msra.mxu0 0.0
    %478 = vmatpush.msra.mxu0 0.0
    %479 = vmatpush.msra.mxu0 0.0
    %480 = vmatpush.msra.mxu0 0.0
    %481 = vmatpush.msra.mxu0 0.0
    %482 = vmatpush.msra.mxu0 %v460
    %483 = vmatmul.f32.gmra.mxu0 %v462
    %v484 = vpop.f32.mrf.mxu0
    %v485 = vadd.f32 0.0, %v484
    %486 = vmatmul.f32.gmra.mxu0 %v465
    %v487 = vpop.f32.mrf.mxu0
    %v488 = vadd.f32 0.0, %v487
    %489 = vdwg.mxu0
    %v491 = vsel %vm175, %v270, 0
    %v494 = vsel %vm175, %v273, 0
    %496 = vmatpush.msra.mxu0 0.0
    %497 = vmatpush.msra.mxu0 0.0
    %498 = vmatpush.msra.mxu0 0.0
    %499 = vmatpush.msra.mxu0 0.0
    %500 = vmatpush.msra.mxu0 0.0
    %501 = vmatpush.msra.mxu0 0.0
    %502 = vmatpush.msra.mxu0 0.0
    %503 = vmatpush.msra.mxu0 0.0
    %504 = vmatpush.msra.mxu0 0.0
    %505 = vmatpush.msra.mxu0 0.0
    %506 = vmatpush.msra.mxu0 0.0
    %507 = vmatpush.msra.mxu0 0.0
    %508 = vmatpush.msra.mxu0 0.0
    %509 = vmatpush.msra.mxu0 0.0
    %510 = vmatpush.msra.mxu0 0.0
    %511 = vmatpush.msra.mxu0 %v275
    %512 = vmatmul.f32.gmra.mxu0 %v491
    %v513 = vpop.f32.mrf.mxu0
    %v514 = vadd.f32 %v485, %v513
    %515 = vmatmul.f32.gmra.mxu0 %v494
    %v516 = vpop.f32.mrf.mxu0
    %v517 = vadd.f32 %v488, %v516
    %518 = vdwg.mxu0
    %s519 = scalar_lea.vmem %s4, 64
    %v520 = vld [vmem:[%s519] sm:$0xff]
    %v521 = vld [vmem:[%s519 + $0x8] sm:$0xff]
    %v522 = vld [vmem:[%s519 + $0x10] sm:$0xff]
    %v523 = vld [vmem:[%s519 + $0x18] sm:$0xff]
    %524 = vmatpush.msra.mxu0 0.0
    %525 = vmatpush.msra.mxu0 0.0
    %526 = vmatpush.msra.mxu0 0.0
    %527 = vmatpush.msra.mxu0 0.0
    %528 = vmatpush.msra.mxu0 0.0
    %529 = vmatpush.msra.mxu0 0.0
    %530 = vmatpush.msra.mxu0 0.0
    %531 = vmatpush.msra.mxu0 0.0
    %532 = vmatpush.msra.mxu0 0.0
    %533 = vmatpush.msra.mxu0 0.0
    %534 = vmatpush.msra.mxu0 0.0
    %535 = vmatpush.msra.mxu0 0.0
    %536 = vmatpush.msra.mxu0 %v523
    %537 = vmatpush.msra.mxu0 %v522
    %538 = vmatpush.msra.mxu0 %v521
    %539 = vmatpush.msra.mxu0 %v520
    %540 = vmatmul.f32.gmra.mxu0 %v93
    %v541 = vpop.f32.mrf.mxu0
    %v542 = vadd.f32 0.0, %v541
    %543 = vmatmul.f32.gmra.mxu0 %v96
    %v544 = vpop.f32.mrf.mxu0
    %v545 = vadd.f32 0.0, %v544
    %546 = vdwg.mxu0
    %s547 = scalar_lea.vmem %s5, 64
    %v548 = vld [vmem:[%s547] sm:$0xff]
    %v549 = vld [vmem:[%s547 + $0x8] sm:$0xff]
    %v550 = vld [vmem:[%s547 + $0x10] sm:$0xff]
    %v551 = vld [vmem:[%s547 + $0x18] sm:$0xff]
    %552 = vmatpush.msra.mxu0 0.0
    %553 = vmatpush.msra.mxu0 0.0
    %554 = vmatpush.msra.mxu0 0.0
    %555 = vmatpush.msra.mxu0 0.0
    %556 = vmatpush.msra.mxu0 0.0
    %557 = vmatpush.msra.mxu0 0.0
    %558 = vmatpush.msra.mxu0 0.0
    %559 = vmatpush.msra.mxu0 0.0
    %560 = vmatpush.msra.mxu0 0.0
    %561 = vmatpush.msra.mxu0 0.0
    %562 = vmatpush.msra.mxu0 0.0
    %563 = vmatpush.msra.mxu0 0.0
    %564 = vmatpush.msra.mxu0 %v551
    %565 = vmatpush.msra.mxu0 %v550
    %566 = vmatpush.msra.mxu0 %v549
    %567 = vmatpush.msra.mxu0 %v548
    %568 = vmatmul.f32.gmra.mxu0 %v93
    %v569 = vpop.f32.mrf.mxu0
    %v570 = vadd.f32 0.0, %v569
    %571 = vmatmul.f32.gmra.mxu0 %v96
    %v572 = vpop.f32.mrf.mxu0
    %v573 = vadd.f32 0.0, %v572
    %574 = vdwg.mxu0
    %s575 = scalar_lea.vmem %s6, 64
    %v576 = vld [vmem:[%s575] sm:$0xff]
    %v577 = vld [vmem:[%s575 + $0x8] sm:$0xff]
    %v578 = vld [vmem:[%s575 + $0x10] sm:$0xff]
    %v579 = vld [vmem:[%s575 + $0x18] sm:$0xff]
    %580 = vmatpush.msra.mxu0 0.0
    %581 = vmatpush.msra.mxu0 0.0
    %582 = vmatpush.msra.mxu0 0.0
    %583 = vmatpush.msra.mxu0 0.0
    %584 = vmatpush.msra.mxu0 0.0
    %585 = vmatpush.msra.mxu0 0.0
    %586 = vmatpush.msra.mxu0 0.0
    %587 = vmatpush.msra.mxu0 0.0
    %588 = vmatpush.msra.mxu0 0.0
    %589 = vmatpush.msra.mxu0 0.0
    %590 = vmatpush.msra.mxu0 0.0
    %591 = vmatpush.msra.mxu0 0.0
    %592 = vmatpush.msra.mxu0 %v579
    %593 = vmatpush.msra.mxu0 %v578
    %594 = vmatpush.msra.mxu0 %v577
    %595 = vmatpush.msra.mxu0 %v576
    %596 = vmatmul.f32.gmra.mxu0 %v93
    %v597 = vpop.f32.mrf.mxu0
    %v598 = vadd.f32 0.0, %v597
    %599 = vmatmul.f32.gmra.mxu0 %v96
    %v600 = vpop.f32.mrf.mxu0
    %v601 = vadd.f32 0.0, %v600
    %602 = vdwg.mxu0
    %v604 = vsel %vm175, %v542, 0
    %v607 = vsel %vm175, %v545, 0
    %v610 = vsel %vm175, %v570, 0
    %v613 = vsel %vm175, %v573, 0
    %615 = vmatpush.xpose.msra.mxu0 0.0
    %616 = vmatpush.xpose.msra.mxu0 0.0
    %617 = vmatpush.xpose.msra.mxu0 0.0
    %618 = vmatpush.xpose.msra.mxu0 0.0
    %619 = vmatpush.xpose.msra.mxu0 0.0
    %620 = vmatpush.xpose.msra.mxu0 0.0
    %621 = vmatpush.xpose.msra.mxu0 0.0
    %622 = vmatpush.xpose.msra.mxu0 0.0
    %623 = vmatpush.xpose.msra.mxu0 0.0
    %624 = vmatpush.xpose.msra.mxu0 0.0
    %625 = vmatpush.xpose.msra.mxu0 0.0
    %626 = vmatpush.xpose.msra.mxu0 0.0
    %627 = vmatpush.xpose.msra.mxu0 0.0
    %628 = vmatpush.xpose.msra.mxu0 0.0
    %629 = vmatpush.xpose.msra.mxu0 %v613
    %630 = vmatpush.xpose.msra.mxu0 %v610
    %631 = vmatmul.f32.gmra.mxu0 %v604
    %v632 = vpop.f32.mrf.mxu0
    %v633 = vadd.f32 0.0, %v632
    %634 = vmatmul.f32.gmra.mxu0 %v607
    %v635 = vpop.f32.mrf.mxu0
    %v636 = vadd.f32 0.0, %v635
    %637 = vdwg.mxu0
    %v638 = vmul.f32 %v633, 0.35355338
    %v639 = vmul.f32 %v636, 0.35355338
    %v640 = vadd.f32 %v638, %v85
    %v641 = vadd.f32 %v639, %v86
    %v642 = vsel %vm215, %v640, -inf
    %643 = vmax.xlane.f32.xlu0 %v642
    %v644 = vpop.xlane.xlu0 %643
    %v645 = vsel %vm215, %v641, -inf
    %646 = vmax.xlane.f32.xlu0 %v645
    %v647 = vpop.xlane.xlu0 %646
    %v648 = vsub.f32 %v640, %v644
    %v649 = vsub.f32 %v641, %v647
    %v650 = vmul.f32 %v648, 1.442695
    %v651 = vpow.pop %v650
    %v652 = vmul.f32 %v649, 1.442695
    %v653 = vpow.pop %v652
    %v654 = vsel %vm215, %v651, 0.0
    %655 = vadd.xlane.f32.xlu0 %v654
    %v656 = vpop.xlane.xlu0 %655
    %v657 = vsel %vm215, %v653, 0.0
    %658 = vadd.xlane.f32.xlu0 %v657
    %v659 = vpop.xlane.xlu0 %658
    %v660 = vrcp.pop %v656
    %v661 = vrcp.pop %v659
    %v662 = vmul.f32 %v656, %v660
    %v663 = vmul.f32 %v659, %v661
    %v664 = vsub.f32 2.0, %v662
    %v665 = vsub.f32 2.0, %v663
    %v666 = vmul.f32 %v660, %v664
    %v667 = vmul.f32 %v661, %v665
    %v668 = vmul.f32 %v651, %v666
    %v669 = vmul.f32 %v653, %v667
    %s670 = scalar_lea.vmem %s23, 32
    %671 = vst.msk [vmem:[%s670] sm:$0xff] %vm215, %v668
    %672 = vst.msk [vmem:[%s670 + $0x8] sm:$0xff] %vm215, %v669
    %v674 = vsel %vm215, %v668, 0
    %v677 = vsel %vm215, %v669, 0
    %679 = vmatpush.msra.mxu0 0.0
    %680 = vmatpush.msra.mxu0 0.0
    %681 = vmatpush.msra.mxu0 0.0
    %682 = vmatpush.msra.mxu0 0.0
    %683 = vmatpush.msra.mxu0 0.0
    %684 = vmatpush.msra.mxu0 0.0
    %685 = vmatpush.msra.mxu0 0.0
    %686 = vmatpush.msra.mxu0 0.0
    %687 = vmatpush.msra.mxu0 0.0
    %688 = vmatpush.msra.mxu0 0.0
    %689 = vmatpush.msra.mxu0 0.0
    %690 = vmatpush.msra.mxu0 0.0
    %691 = vmatpush.msra.mxu0 0.0
    %692 = vmatpush.msra.mxu0 0.0
    %693 = vmatpush.msra.mxu0 %v601
    %694 = vmatpush.msra.mxu0 %v598
    %695 = vmatmul.f32.gmra.mxu0 %v674
    %v696 = vpop.f32.mrf.mxu0
    %v697 = vadd.f32 0.0, %v696
    %698 = vmatmul.f32.gmra.mxu0 %v677
    %v699 = vpop.f32.mrf.mxu0
    %v700 = vadd.f32 0.0, %v699
    %701 = vdwg.mxu0
    %s702 = scalar_lea.vmem %s7, 16
    %v703 = vld [vmem:[%s702] sm:$0xff]
    %v705 = vsel %vm175, %v697, 0
    %v708 = vsel %vm175, %v700, 0
    %710 = vmatpush.msra.mxu0 0.0
    %711 = vmatpush.msra.mxu0 0.0
    %712 = vmatpush.msra.mxu0 0.0
    %713 = vmatpush.msra.mxu0 0.0
    %714 = vmatpush.msra.mxu0 0.0
    %715 = vmatpush.msra.mxu0 0.0
    %716 = vmatpush.msra.mxu0 0.0
    %717 = vmatpush.msra.mxu0 0.0
    %718 = vmatpush.msra.mxu0 0.0
    %719 = vmatpush.msra.mxu0 0.0
    %720 = vmatpush.msra.mxu0 0.0
    %721 = vmatpush.msra.mxu0 0.0
    %722 = vmatpush.msra.mxu0 0.0
    %723 = vmatpush.msra.mxu0 0.0
    %724 = vmatpush.msra.mxu0 0.0
    %725 = vmatpush.msra.mxu0 %v703
    %726 = vmatmul.f32.gmra.mxu0 %v705
    %v727 = vpop.f32.mrf.mxu0
    %v728 = vadd.f32 0.0, %v727
    %729 = vmatmul.f32.gmra.mxu0 %v708
    %v730 = vpop.f32.mrf.mxu0
    %v731 = vadd.f32 0.0, %v730
    %732 = vdwg.mxu0
    %v733 = vadd.f32 %v514, %v728
    %v734 = vadd.f32 %v517, %v731
    %s735 = scalar_lea.vmem %s4, 96
    %v736 = vld [vmem:[%s735] sm:$0xff]
    %v737 = vld [vmem:[%s735 + $0x8] sm:$0xff]
    %v738 = vld [vmem:[%s735 + $0x10] sm:$0xff]
    %v739 = vld [vmem:[%s735 + $0x18] sm:$0xff]
    %740 = vmatpush.msra.mxu0 0.0
    %741 = vmatpush.msra.mxu0 0.0
    %742 = vmatpush.msra.mxu0 0.0
    %743 = vmatpush.msra.mxu0 0.0
    %744 = vmatpush.msra.mxu0 0.0
    %745 = vmatpush.msra.mxu0 0.0
    %746 = vmatpush.msra.mxu0 0.0
    %747 = vmatpush.msra.mxu0 0.0
    %748 = vmatpush.msra.mxu0 0.0
    %749 = vmatpush.msra.mxu0 0.0
    %750 = vmatpush.msra.mxu0 0.0
    %751 = vmatpush.msra.mxu0 0.0
    %752 = vmatpush.msra.mxu0 %v739
    %753 = vmatpush.msra.mxu0 %v738
    %754 = vmatpush.msra.mxu0 %v737
    %755 = vmatpush.msra.mxu0 %v736
    %756 = vmatmul.f32.gmra.mxu0 %v93
    %v757 = vpop.f32.mrf.mxu0
    %v758 = vadd.f32 0.0, %v757
    %759 = vmatmul.f32.gmra.mxu0 %v96
    %v760 = vpop.f32.mrf.mxu0
    %v761 = vadd.f32 0.0, %v760
    %762 = vdwg.mxu0
    %s763 = scalar_lea.vmem %s5, 96
    %v764 = vld [vmem:[%s763] sm:$0xff]
    %v765 = vld [vmem:[%s763 + $0x8] sm:$0xff]
    %v766 = vld [vmem:[%s763 + $0x10] sm:$0xff]
    %v767 = vld [vmem:[%s763 + $0x18] sm:$0xff]
    %768 = vmatpush.msra.mxu0 0.0
    %769 = vmatpush.msra.mxu0 0.0
    %770 = vmatpush.msra.mxu0 0.0
    %771 = vmatpush.msra.mxu0 0.0
    %772 = vmatpush.msra.mxu0 0.0
    %773 = vmatpush.msra.mxu0 0.0
    %774 = vmatpush.msra.mxu0 0.0
    %775 = vmatpush.msra.mxu0 0.0
    %776 = vmatpush.msra.mxu0 0.0
    %777 = vmatpush.msra.mxu0 0.0
    %778 = vmatpush.msra.mxu0 0.0
    %779 = vmatpush.msra.mxu0 0.0
    %780 = vmatpush.msra.mxu0 %v767
    %781 = vmatpush.msra.mxu0 %v766
    %782 = vmatpush.msra.mxu0 %v765
    %783 = vmatpush.msra.mxu0 %v764
    %784 = vmatmul.f32.gmra.mxu0 %v93
    %v785 = vpop.f32.mrf.mxu0
    %v786 = vadd.f32 0.0, %v785
    %787 = vmatmul.f32.gmra.mxu0 %v96
    %v788 = vpop.f32.mrf.mxu0
    %v789 = vadd.f32 0.0, %v788
    %790 = vdwg.mxu0
    %s791 = scalar_lea.vmem %s6, 96
    %v792 = vld [vmem:[%s791] sm:$0xff]
    %v793 = vld [vmem:[%s791 + $0x8] sm:$0xff]
    %v794 = vld [vmem:[%s791 + $0x10] sm:$0xff]
    %v795 = vld [vmem:[%s791 + $0x18] sm:$0xff]
    %796 = vmatpush.msra.mxu0 0.0
    %797 = vmatpush.msra.mxu0 0.0
    %798 = vmatpush.msra.mxu0 0.0
    %799 = vmatpush.msra.mxu0 0.0
    %800 = vmatpush.msra.mxu0 0.0
    %801 = vmatpush.msra.mxu0 0.0
    %802 = vmatpush.msra.mxu0 0.0
    %803 = vmatpush.msra.mxu0 0.0
    %804 = vmatpush.msra.mxu0 0.0
    %805 = vmatpush.msra.mxu0 0.0
    %806 = vmatpush.msra.mxu0 0.0
    %807 = vmatpush.msra.mxu0 0.0
    %808 = vmatpush.msra.mxu0 %v795
    %809 = vmatpush.msra.mxu0 %v794
    %810 = vmatpush.msra.mxu0 %v793
    %811 = vmatpush.msra.mxu0 %v792
    %812 = vmatmul.f32.gmra.mxu0 %v93
    %v813 = vpop.f32.mrf.mxu0
    %v814 = vadd.f32 0.0, %v813
    %815 = vmatmul.f32.gmra.mxu0 %v96
    %v816 = vpop.f32.mrf.mxu0
    %v817 = vadd.f32 0.0, %v816
    %818 = vdwg.mxu0
    %v820 = vsel %vm175, %v758, 0
    %v823 = vsel %vm175, %v761, 0
    %v826 = vsel %vm175, %v786, 0
    %v829 = vsel %vm175, %v789, 0
    %831 = vmatpush.xpose.msra.mxu0 0.0
    %832 = vmatpush.xpose.msra.mxu0 0.0
    %833 = vmatpush.xpose.msra.mxu0 0.0
    %834 = vmatpush.xpose.msra.mxu0 0.0
    %835 = vmatpush.xpose.msra.mxu0 0.0
    %836 = vmatpush.xpose.msra.mxu0 0.0
    %837 = vmatpush.xpose.msra.mxu0 0.0
    %838 = vmatpush.xpose.msra.mxu0 0.0
    %839 = vmatpush.xpose.msra.mxu0 0.0
    %840 = vmatpush.xpose.msra.mxu0 0.0
    %841 = vmatpush.xpose.msra.mxu0 0.0
    %842 = vmatpush.xpose.msra.mxu0 0.0
    %843 = vmatpush.xpose.msra.mxu0 0.0
    %844 = vmatpush.xpose.msra.mxu0 0.0
    %845 = vmatpush.xpose.msra.mxu0 %v829
    %846 = vmatpush.xpose.msra.mxu0 %v826
    %847 = vmatmul.f32.gmra.mxu0 %v820
    %v848 = vpop.f32.mrf.mxu0
    %v849 = vadd.f32 0.0, %v848
    %850 = vmatmul.f32.gmra.mxu0 %v823
    %v851 = vpop.f32.mrf.mxu0
    %v852 = vadd.f32 0.0, %v851
    %853 = vdwg.mxu0
    %v854 = vmul.f32 %v849, 0.35355338
    %v855 = vmul.f32 %v852, 0.35355338
    %v856 = vadd.f32 %v854, %v85
    %v857 = vadd.f32 %v855, %v86
    %v858 = vsel %vm215, %v856, -inf
    %859 = vmax.xlane.f32.xlu0 %v858
    %v860 = vpop.xlane.xlu0 %859
    %v861 = vsel %vm215, %v857, -inf
    %862 = vmax.xlane.f32.xlu0 %v861
    %v863 = vpop.xlane.xlu0 %862
    %v864 = vsub.f32 %v856, %v860
    %v865 = vsub.f32 %v857, %v863
    %v866 = vmul.f32 %v864, 1.442695
    %v867 = vpow.pop %v866
    %v868 = vmul.f32 %v865, 1.442695
    %v869 = vpow.pop %v868
    %v870 = vsel %vm215, %v867, 0.0
    %871 = vadd.xlane.f32.xlu0 %v870
    %v872 = vpop.xlane.xlu0 %871
    %v873 = vsel %vm215, %v869, 0.0
    %874 = vadd.xlane.f32.xlu0 %v873
    %v875 = vpop.xlane.xlu0 %874
    %v876 = vrcp.pop %v872
    %v877 = vrcp.pop %v875
    %v878 = vmul.f32 %v872, %v876
    %v879 = vmul.f32 %v875, %v877
    %v880 = vsub.f32 2.0, %v878
    %v881 = vsub.f32 2.0, %v879
    %v882 = vmul.f32 %v876, %v880
    %v883 = vmul.f32 %v877, %v881
    %v884 = vmul.f32 %v867, %v882
    %v885 = vmul.f32 %v869, %v883
    %s886 = scalar_lea.vmem %s23, 48
    %887 = vst.msk [vmem:[%s886] sm:$0xff] %vm215, %v884
    %888 = vst.msk [vmem:[%s886 + $0x8] sm:$0xff] %vm215, %v885
    %v890 = vsel %vm215, %v884, 0
    %v893 = vsel %vm215, %v885, 0
    %895 = vmatpush.msra.mxu0 0.0
    %896 = vmatpush.msra.mxu0 0.0
    %897 = vmatpush.msra.mxu0 0.0
    %898 = vmatpush.msra.mxu0 0.0
    %899 = vmatpush.msra.mxu0 0.0
    %900 = vmatpush.msra.mxu0 0.0
    %901 = vmatpush.msra.mxu0 0.0
    %902 = vmatpush.msra.mxu0 0.0
    %903 = vmatpush.msra.mxu0 0.0
    %904 = vmatpush.msra.mxu0 0.0
    %905 = vmatpush.msra.mxu0 0.0
    %906 = vmatpush.msra.mxu0 0.0
    %907 = vmatpush.msra.mxu0 0.0
    %908 = vmatpush.msra.mxu0 0.0
    %909 = vmatpush.msra.mxu0 %v817
    %910 = vmatpush.msra.mxu0 %v814
    %911 = vmatmul.f32.gmra.mxu0 %v890
    %v912 = vpop.f32.mrf.mxu0
    %v913 = vadd.f32 0.0, %v912
    %914 = vmatmul.f32.gmra.mxu0 %v893
    %v915 = vpop.f32.mrf.mxu0
    %v916 = vadd.f32 0.0, %v915
    %917 = vdwg.mxu0
    %s918 = scalar_lea.vmem %s7, 24
    %v919 = vld [vmem:[%s918] sm:$0xff]
    %v921 = vsel %vm175, %v913, 0
    %v924 = vsel %vm175, %v916, 0
    %926 = vmatpush.msra.mxu0 0.0
    %927 = vmatpush.msra.mxu0 0.0
    %928 = vmatpush.msra.mxu0 0.0
    %929 = vmatpush.msra.mxu0 0.0
    %930 = vmatpush.msra.mxu0 0.0
    %931 = vmatpush.msra.mxu0 0.0
    %932 = vmatpush.msra.mxu0 0.0
    %933 = vmatpush.msra.mxu0 0.0
    %934 = vmatpush.msra.mxu0 0.0
    %935 = vmatpush.msra.mxu0 0.0
    %936 = vmatpush.msra.mxu0 0.0
    %937 = vmatpush.msra.mxu0 0.0
    %938 = vmatpush.msra.mxu0 0.0
    %939 = vmatpush.msra.mxu0 0.0
    %940 = vmatpush.msra.mxu0 0.0
    %941 = vmatpush.msra.mxu0 %v919
    %942 = vmatmul.f32.gmra.mxu0 %v921
    %v943 = vpop.f32.mrf.mxu0
    %v944 = vadd.f32 0.0, %v943
    %945 = vmatmul.f32.gmra.mxu0 %v924
    %v946 = vpop.f32.mrf.mxu0
    %v947 = vadd.f32 0.0, %v946
    %948 = vdwg.mxu0
    %v949 = vadd.f32 %v733, %v944
    %v950 = vadd.f32 %v734, %v947
    %v951 = vadd.f32 %v949, %v75
    %v952 = vadd.f32 %v950, %v76
    %v953 = vld [vmem:[%s8] sm:$0x1]
    %v954 = vld [vmem:[%s9] sm:$0x1]
    %v955 = vsel %vm91, %v951, 0.0
    %956 = vadd.xlane.f32.xlu0 %v955
    %v957 = vpop.xlane.xlu0 %956
    %v958 = vsel %vm91, %v952, 0.0
    %959 = vadd.xlane.f32.xlu0 %v958
    %v960 = vpop.xlane.xlu0 %959
    %v961 = vrcp.pop 32.0
    %v962 = vmul.f32 32.0, %v961
    %v963 = vsub.f32 1.0, %v962
    %v964 = vmul.f32 %v961, %v963
    %v965 = vadd.f32 %v961, %v964
    %vm966 = vweird.f32 %v961
    %v967 = vsel %vm966, %v961, %v965
    %v968 = vmul.f32 %v957, %v967
    %v969 = vmul.f32 %v960, %v967
    %v970 = vsub.f32 %v951, %v968
    %v971 = vsub.f32 %v952, %v969
    %v972 = vmul.f32 %v970, %v970
    %v973 = vmul.f32 %v971, %v971
    %v974 = vsel %vm91, %v972, 0.0
    %975 = vadd.xlane.f32.xlu0 %v974
    %v976 = vpop.xlane.xlu0 %975
    %v977 = vsel %vm91, %v973, 0.0
    %978 = vadd.xlane.f32.xlu0 %v977
    %v979 = vpop.xlane.xlu0 %978
    %v980 = vmul.f32 %v976, %v967
    %v981 = vmul.f32 %v979, %v967
    %v982 = vadd.f32 %v980, 1e-06
    %v983 = vadd.f32 %v981, 1e-06
    %v984 = vrsqrt.pop %v982
    %v985 = vmul.f32 %v984, %v982
    %v986 = vmul.f32 %v985, %v984
    %v987 = vmul.f32 0.5, %v986
    %v988 = vsub.f32 1.5, %v987
    %v989 = vmul.f32 %v984, %v988
    %vm990 = vweird.f32 %v982
    %vm991 = vweird.f32 %v984
    %vm992 = vmor %vm990, %vm991
    %v993 = vsel %vm992, %v984, %v989
    %v994 = vrsqrt.pop %v983
    %v995 = vmul.f32 %v994, %v983
    %v996 = vmul.f32 %v995, %v994
    %v997 = vmul.f32 0.5, %v996
    %v998 = vsub.f32 1.5, %v997
    %v999 = vmul.f32 %v994, %v998
    %vm1000 = vweird.f32 %v983
    %vm1001 = vweird.f32 %v994
    %vm1002 = vmor %vm1000, %vm1001
    %v1003 = vsel %vm1002, %v994, %v999
    %v1004 = vmul.f32 %v970, %v993
    %v1005 = vmul.f32 %v971, %v1003
    %v1007 = vperm.slane %v953, 0
    %v1009 = vmul.f32 %v1004, %v1007
    %v1010 = vmul.f32 %v1005, %v1007
    %v1012 = vperm.slane %v954, 0
    %v1014 = vadd.f32 %v1009, %v1012
    %v1015 = vadd.f32 %v1010, %v1012
    %v1016 = vld [vmem:[%s3] sm:$0xff]
    %v1017 = vld [vmem:[%s3 + $0x8] sm:$0xff]
    %vm1018 = vcmp.lt.f32.partialorder %v1016, 0.5
    %vm1019 = vcmp.lt.f32.partialorder %v1017, 0.5
    %v1020 = vsel %vm1018, -1e+09, 0.0
    %v1021 = vsel %vm1019, -1e+09, 0.0
    %v1022 = vld [vmem:[%s10] sm:$0xff]
    %v1023 = vld [vmem:[%s10 + $0x8] sm:$0xff]
    %v1024 = vld [vmem:[%s10 + $0x10] sm:$0xff]
    %v1025 = vld [vmem:[%s10 + $0x18] sm:$0xff]
    %v1027 = vsel %vm91, %v1014, 0
    %v1030 = vsel %vm91, %v1015, 0
    %1032 = vmatpush.msra.mxu0 0.0
    %1033 = vmatpush.msra.mxu0 0.0
    %1034 = vmatpush.msra.mxu0 0.0
    %1035 = vmatpush.msra.mxu0 0.0
    %1036 = vmatpush.msra.mxu0 0.0
    %1037 = vmatpush.msra.mxu0 0.0
    %1038 = vmatpush.msra.mxu0 0.0
    %1039 = vmatpush.msra.mxu0 0.0
    %1040 = vmatpush.msra.mxu0 0.0
    %1041 = vmatpush.msra.mxu0 0.0
    %1042 = vmatpush.msra.mxu0 0.0
    %1043 = vmatpush.msra.mxu0 0.0
    %1044 = vmatpush.msra.mxu0 %v1025
    %1045 = vmatpush.msra.mxu0 %v1024
    %1046 = vmatpush.msra.mxu0 %v1023
    %1047 = vmatpush.msra.mxu0 %v1022
    %1048 = vmatmul.f32.gmra.mxu0 %v1027
    %v1049 = vpop.f32.mrf.mxu0
    %v1050 = vadd.f32 0.0, %v1049
    %1051 = vmatmul.f32.gmra.mxu0 %v1030
    %v1052 = vpop.f32.mrf.mxu0
    %v1053 = vadd.f32 0.0, %v1052
    %1054 = vdwg.mxu0
    %v1055 = vld [vmem:[%s11] sm:$0xff]
    %v1056 = vld [vmem:[%s11 + $0x8] sm:$0xff]
    %v1057 = vld [vmem:[%s11 + $0x10] sm:$0xff]
    %v1058 = vld [vmem:[%s11 + $0x18] sm:$0xff]
    %v1060 = vsel %vm91, %v77, 0
    %v1063 = vsel %vm91, %v78, 0
    %v1066 = vsel %vm91, %v79, 0
    %v1069 = vsel %vm91, %v80, 0
    %1071 = vmatpush.msra.mxu0 0.0
    %1072 = vmatpush.msra.mxu0 0.0
    %1073 = vmatpush.msra.mxu0 0.0
    %1074 = vmatpush.msra.mxu0 0.0
    %1075 = vmatpush.msra.mxu0 0.0
    %1076 = vmatpush.msra.mxu0 0.0
    %1077 = vmatpush.msra.mxu0 0.0
    %1078 = vmatpush.msra.mxu0 0.0
    %1079 = vmatpush.msra.mxu0 0.0
    %1080 = vmatpush.msra.mxu0 0.0
    %1081 = vmatpush.msra.mxu0 0.0
    %1082 = vmatpush.msra.mxu0 0.0
    %1083 = vmatpush.msra.mxu0 %v1058
    %1084 = vmatpush.msra.mxu0 %v1057
    %1085 = vmatpush.msra.mxu0 %v1056
    %1086 = vmatpush.msra.mxu0 %v1055
    %1087 = vmatmul.f32.gmra.mxu0 %v1060
    %v1088 = vpop.f32.mrf.mxu0
    %v1089 = vadd.f32 0.0, %v1088
    %1090 = vmatmul.f32.gmra.mxu0 %v1063
    %v1091 = vpop.f32.mrf.mxu0
    %v1092 = vadd.f32 0.0, %v1091
    %1093 = vmatmul.f32.gmra.mxu0 %v1066
    %v1094 = vpop.f32.mrf.mxu0
    %v1095 = vadd.f32 0.0, %v1094
    %1096 = vmatmul.f32.gmra.mxu0 %v1069
    %v1097 = vpop.f32.mrf.mxu0
    %v1098 = vadd.f32 0.0, %v1097
    %1099 = vdwg.mxu0
    %v1100 = vld [vmem:[%s12] sm:$0xff]
    %v1101 = vld [vmem:[%s12 + $0x8] sm:$0xff]
    %v1102 = vld [vmem:[%s12 + $0x10] sm:$0xff]
    %v1103 = vld [vmem:[%s12 + $0x18] sm:$0xff]
    %1104 = vmatpush.msra.mxu0 0.0
    %1105 = vmatpush.msra.mxu0 0.0
    %1106 = vmatpush.msra.mxu0 0.0
    %1107 = vmatpush.msra.mxu0 0.0
    %1108 = vmatpush.msra.mxu0 0.0
    %1109 = vmatpush.msra.mxu0 0.0
    %1110 = vmatpush.msra.mxu0 0.0
    %1111 = vmatpush.msra.mxu0 0.0
    %1112 = vmatpush.msra.mxu0 0.0
    %1113 = vmatpush.msra.mxu0 0.0
    %1114 = vmatpush.msra.mxu0 0.0
    %1115 = vmatpush.msra.mxu0 0.0
    %1116 = vmatpush.msra.mxu0 %v1103
    %1117 = vmatpush.msra.mxu0 %v1102
    %1118 = vmatpush.msra.mxu0 %v1101
    %1119 = vmatpush.msra.mxu0 %v1100
    %1120 = vmatmul.f32.gmra.mxu0 %v1060
    %v1121 = vpop.f32.mrf.mxu0
    %v1122 = vadd.f32 0.0, %v1121
    %1123 = vmatmul.f32.gmra.mxu0 %v1063
    %v1124 = vpop.f32.mrf.mxu0
    %v1125 = vadd.f32 0.0, %v1124
    %1126 = vmatmul.f32.gmra.mxu0 %v1066
    %v1127 = vpop.f32.mrf.mxu0
    %v1128 = vadd.f32 0.0, %v1127
    %1129 = vmatmul.f32.gmra.mxu0 %v1069
    %v1130 = vpop.f32.mrf.mxu0
    %v1131 = vadd.f32 0.0, %v1130
    %1132 = vdwg.mxu0
    %v1134 = vsel %vm175, %v1050, 0
    %v1137 = vsel %vm175, %v1053, 0
    %v1140 = vsel %vm175, %v1089, 0
    %v1143 = vsel %vm175, %v1092, 0
    %v1146 = vsel %vm175, %v1095, 0
    %v1149 = vsel %vm175, %v1098, 0
    %1151 = vmatpush.xpose.msra.mxu0 0.0
    %1152 = vmatpush.xpose.msra.mxu0 0.0
    %1153 = vmatpush.xpose.msra.mxu0 0.0
    %1154 = vmatpush.xpose.msra.mxu0 0.0
    %1155 = vmatpush.xpose.msra.mxu0 0.0
    %1156 = vmatpush.xpose.msra.mxu0 0.0
    %1157 = vmatpush.xpose.msra.mxu0 0.0
    %1158 = vmatpush.xpose.msra.mxu0 0.0
    %1159 = vmatpush.xpose.msra.mxu0 0.0
    %1160 = vmatpush.xpose.msra.mxu0 0.0
    %1161 = vmatpush.xpose.msra.mxu0 0.0
    %1162 = vmatpush.xpose.msra.mxu0 0.0
    %1163 = vmatpush.xpose.msra.mxu0 %v1149
    %1164 = vmatpush.xpose.msra.mxu0 %v1146
    %1165 = vmatpush.xpose.msra.mxu0 %v1143
    %1166 = vmatpush.xpose.msra.mxu0 %v1140
    %1167 = vmatmul.f32.gmra.mxu0 %v1134
    %v1168 = vpop.f32.mrf.mxu0
    %v1169 = vadd.f32 0.0, %v1168
    %1170 = vmatmul.f32.gmra.mxu0 %v1137
    %v1171 = vpop.f32.mrf.mxu0
    %v1172 = vadd.f32 0.0, %v1171
    %1173 = vdwg.mxu0
    %v1174 = vmul.f32 %v1169, 0.35355338
    %v1175 = vmul.f32 %v1172, 0.35355338
    %v1176 = vadd.f32 %v1174, %v1020
    %v1177 = vadd.f32 %v1175, %v1021
    %v1178 = vsel %vm91, %v1176, -inf
    %1179 = vmax.xlane.f32.xlu0 %v1178
    %v1180 = vpop.xlane.xlu0 %1179
    %v1181 = vsel %vm91, %v1177, -inf
    %1182 = vmax.xlane.f32.xlu0 %v1181
    %v1183 = vpop.xlane.xlu0 %1182
    %v1184 = vsub.f32 %v1176, %v1180
    %v1185 = vsub.f32 %v1177, %v1183
    %v1186 = vmul.f32 %v1184, 1.442695
    %v1187 = vpow.pop %v1186
    %v1188 = vmul.f32 %v1185, 1.442695
    %v1189 = vpow.pop %v1188
    %v1190 = vsel %vm91, %v1187, 0.0
    %1191 = vadd.xlane.f32.xlu0 %v1190
    %v1192 = vpop.xlane.xlu0 %1191
    %v1193 = vsel %vm91, %v1189, 0.0
    %1194 = vadd.xlane.f32.xlu0 %v1193
    %v1195 = vpop.xlane.xlu0 %1194
    %v1196 = vrcp.pop %v1192
    %v1197 = vrcp.pop %v1195
    %v1198 = vmul.f32 %v1192, %v1196
    %v1199 = vmul.f32 %v1195, %v1197
    %v1200 = vsub.f32 2.0, %v1198
    %v1201 = vsub.f32 2.0, %v1199
    %v1202 = vmul.f32 %v1196, %v1200
    %v1203 = vmul.f32 %v1197, %v1201
    %v1204 = vmul.f32 %v1187, %v1202
    %v1205 = vmul.f32 %v1189, %v1203
    %1206 = vst.msk [vmem:[%s24] sm:$0xff] %vm91, %v1204
    %1207 = vst.msk [vmem:[%s24 + $0x8] sm:$0xff] %vm91, %v1205
    %v1209 = vsel %vm91, %v1204, 0
    %v1212 = vsel %vm91, %v1205, 0
    %1214 = vmatpush.msra.mxu0 0.0
    %1215 = vmatpush.msra.mxu0 0.0
    %1216 = vmatpush.msra.mxu0 0.0
    %1217 = vmatpush.msra.mxu0 0.0
    %1218 = vmatpush.msra.mxu0 0.0
    %1219 = vmatpush.msra.mxu0 0.0
    %1220 = vmatpush.msra.mxu0 0.0
    %1221 = vmatpush.msra.mxu0 0.0
    %1222 = vmatpush.msra.mxu0 0.0
    %1223 = vmatpush.msra.mxu0 0.0
    %1224 = vmatpush.msra.mxu0 0.0
    %1225 = vmatpush.msra.mxu0 0.0
    %1226 = vmatpush.msra.mxu0 %v1131
    %1227 = vmatpush.msra.mxu0 %v1128
    %1228 = vmatpush.msra.mxu0 %v1125
    %1229 = vmatpush.msra.mxu0 %v1122
    %1230 = vmatmul.f32.gmra.mxu0 %v1209
    %v1231 = vpop.f32.mrf.mxu0
    %v1232 = vadd.f32 0.0, %v1231
    %1233 = vmatmul.f32.gmra.mxu0 %v1212
    %v1234 = vpop.f32.mrf.mxu0
    %v1235 = vadd.f32 0.0, %v1234
    %1236 = vdwg.mxu0
    %v1237 = vld [vmem:[%s13] sm:$0xff]
    %s1238 = scalar_lea.vmem %s10, 32
    %v1239 = vld [vmem:[%s1238] sm:$0xff]
    %v1240 = vld [vmem:[%s1238 + $0x8] sm:$0xff]
    %v1241 = vld [vmem:[%s1238 + $0x10] sm:$0xff]
    %v1242 = vld [vmem:[%s1238 + $0x18] sm:$0xff]
    %1243 = vmatpush.msra.mxu0 0.0
    %1244 = vmatpush.msra.mxu0 0.0
    %1245 = vmatpush.msra.mxu0 0.0
    %1246 = vmatpush.msra.mxu0 0.0
    %1247 = vmatpush.msra.mxu0 0.0
    %1248 = vmatpush.msra.mxu0 0.0
    %1249 = vmatpush.msra.mxu0 0.0
    %1250 = vmatpush.msra.mxu0 0.0
    %1251 = vmatpush.msra.mxu0 0.0
    %1252 = vmatpush.msra.mxu0 0.0
    %1253 = vmatpush.msra.mxu0 0.0
    %1254 = vmatpush.msra.mxu0 0.0
    %1255 = vmatpush.msra.mxu0 %v1242
    %1256 = vmatpush.msra.mxu0 %v1241
    %1257 = vmatpush.msra.mxu0 %v1240
    %1258 = vmatpush.msra.mxu0 %v1239
    %1259 = vmatmul.f32.gmra.mxu0 %v1027
    %v1260 = vpop.f32.mrf.mxu0
    %v1261 = vadd.f32 0.0, %v1260
    %1262 = vmatmul.f32.gmra.mxu0 %v1030
    %v1263 = vpop.f32.mrf.mxu0
    %v1264 = vadd.f32 0.0, %v1263
    %1265 = vdwg.mxu0
    %s1266 = scalar_lea.vmem %s11, 32
    %v1267 = vld [vmem:[%s1266] sm:$0xff]
    %v1268 = vld [vmem:[%s1266 + $0x8] sm:$0xff]
    %v1269 = vld [vmem:[%s1266 + $0x10] sm:$0xff]
    %v1270 = vld [vmem:[%s1266 + $0x18] sm:$0xff]
    %1271 = vmatpush.msra.mxu0 0.0
    %1272 = vmatpush.msra.mxu0 0.0
    %1273 = vmatpush.msra.mxu0 0.0
    %1274 = vmatpush.msra.mxu0 0.0
    %1275 = vmatpush.msra.mxu0 0.0
    %1276 = vmatpush.msra.mxu0 0.0
    %1277 = vmatpush.msra.mxu0 0.0
    %1278 = vmatpush.msra.mxu0 0.0
    %1279 = vmatpush.msra.mxu0 0.0
    %1280 = vmatpush.msra.mxu0 0.0
    %1281 = vmatpush.msra.mxu0 0.0
    %1282 = vmatpush.msra.mxu0 0.0
    %1283 = vmatpush.msra.mxu0 %v1270
    %1284 = vmatpush.msra.mxu0 %v1269
    %1285 = vmatpush.msra.mxu0 %v1268
    %1286 = vmatpush.msra.mxu0 %v1267
    %1287 = vmatmul.f32.gmra.mxu0 %v1060
    %v1288 = vpop.f32.mrf.mxu0
    %v1289 = vadd.f32 0.0, %v1288
    %1290 = vmatmul.f32.gmra.mxu0 %v1063
    %v1291 = vpop.f32.mrf.mxu0
    %v1292 = vadd.f32 0.0, %v1291
    %1293 = vmatmul.f32.gmra.mxu0 %v1066
    %v1294 = vpop.f32.mrf.mxu0
    %v1295 = vadd.f32 0.0, %v1294
    %1296 = vmatmul.f32.gmra.mxu0 %v1069
    %v1297 = vpop.f32.mrf.mxu0
    %v1298 = vadd.f32 0.0, %v1297
    %1299 = vdwg.mxu0
    %s1300 = scalar_lea.vmem %s12, 32
    %v1301 = vld [vmem:[%s1300] sm:$0xff]
    %v1302 = vld [vmem:[%s1300 + $0x8] sm:$0xff]
    %v1303 = vld [vmem:[%s1300 + $0x10] sm:$0xff]
    %v1304 = vld [vmem:[%s1300 + $0x18] sm:$0xff]
    %1305 = vmatpush.msra.mxu0 0.0
    %1306 = vmatpush.msra.mxu0 0.0
    %1307 = vmatpush.msra.mxu0 0.0
    %1308 = vmatpush.msra.mxu0 0.0
    %1309 = vmatpush.msra.mxu0 0.0
    %1310 = vmatpush.msra.mxu0 0.0
    %1311 = vmatpush.msra.mxu0 0.0
    %1312 = vmatpush.msra.mxu0 0.0
    %1313 = vmatpush.msra.mxu0 0.0
    %1314 = vmatpush.msra.mxu0 0.0
    %1315 = vmatpush.msra.mxu0 0.0
    %1316 = vmatpush.msra.mxu0 0.0
    %1317 = vmatpush.msra.mxu0 %v1304
    %1318 = vmatpush.msra.mxu0 %v1303
    %1319 = vmatpush.msra.mxu0 %v1302
    %1320 = vmatpush.msra.mxu0 %v1301
    %1321 = vmatmul.f32.gmra.mxu0 %v1060
    %v1322 = vpop.f32.mrf.mxu0
    %v1323 = vadd.f32 0.0, %v1322
    %1324 = vmatmul.f32.gmra.mxu0 %v1063
    %v1325 = vpop.f32.mrf.mxu0
    %v1326 = vadd.f32 0.0, %v1325
    %1327 = vmatmul.f32.gmra.mxu0 %v1066
    %v1328 = vpop.f32.mrf.mxu0
    %v1329 = vadd.f32 0.0, %v1328
    %1330 = vmatmul.f32.gmra.mxu0 %v1069
    %v1331 = vpop.f32.mrf.mxu0
    %v1332 = vadd.f32 0.0, %v1331
    %1333 = vdwg.mxu0
    %v1335 = vsel %vm175, %v1261, 0
    %v1338 = vsel %vm175, %v1264, 0
    %v1341 = vsel %vm175, %v1289, 0
    %v1344 = vsel %vm175, %v1292, 0
    %v1347 = vsel %vm175, %v1295, 0
    %v1350 = vsel %vm175, %v1298, 0
    %1352 = vmatpush.xpose.msra.mxu0 0.0
    %1353 = vmatpush.xpose.msra.mxu0 0.0
    %1354 = vmatpush.xpose.msra.mxu0 0.0
    %1355 = vmatpush.xpose.msra.mxu0 0.0
    %1356 = vmatpush.xpose.msra.mxu0 0.0
    %1357 = vmatpush.xpose.msra.mxu0 0.0
    %1358 = vmatpush.xpose.msra.mxu0 0.0
    %1359 = vmatpush.xpose.msra.mxu0 0.0
    %1360 = vmatpush.xpose.msra.mxu0 0.0
    %1361 = vmatpush.xpose.msra.mxu0 0.0
    %1362 = vmatpush.xpose.msra.mxu0 0.0
    %1363 = vmatpush.xpose.msra.mxu0 0.0
    %1364 = vmatpush.xpose.msra.mxu0 %v1350
    %1365 = vmatpush.xpose.msra.mxu0 %v1347
    %1366 = vmatpush.xpose.msra.mxu0 %v1344
    %1367 = vmatpush.xpose.msra.mxu0 %v1341
    %1368 = vmatmul.f32.gmra.mxu0 %v1335
    %v1369 = vpop.f32.mrf.mxu0
    %v1370 = vadd.f32 0.0, %v1369
    %1371 = vmatmul.f32.gmra.mxu0 %v1338
    %v1372 = vpop.f32.mrf.mxu0
    %v1373 = vadd.f32 0.0, %v1372
    %1374 = vdwg.mxu0
    %v1375 = vmul.f32 %v1370, 0.35355338
    %v1376 = vmul.f32 %v1373, 0.35355338
    %v1377 = vadd.f32 %v1375, %v1020
    %v1378 = vadd.f32 %v1376, %v1021
    %v1379 = vsel %vm91, %v1377, -inf
    %1380 = vmax.xlane.f32.xlu0 %v1379
    %v1381 = vpop.xlane.xlu0 %1380
    %v1382 = vsel %vm91, %v1378, -inf
    %1383 = vmax.xlane.f32.xlu0 %v1382
    %v1384 = vpop.xlane.xlu0 %1383
    %v1385 = vsub.f32 %v1377, %v1381
    %v1386 = vsub.f32 %v1378, %v1384
    %v1387 = vmul.f32 %v1385, 1.442695
    %v1388 = vpow.pop %v1387
    %v1389 = vmul.f32 %v1386, 1.442695
    %v1390 = vpow.pop %v1389
    %v1391 = vsel %vm91, %v1388, 0.0
    %1392 = vadd.xlane.f32.xlu0 %v1391
    %v1393 = vpop.xlane.xlu0 %1392
    %v1394 = vsel %vm91, %v1390, 0.0
    %1395 = vadd.xlane.f32.xlu0 %v1394
    %v1396 = vpop.xlane.xlu0 %1395
    %v1397 = vrcp.pop %v1393
    %v1398 = vrcp.pop %v1396
    %v1399 = vmul.f32 %v1393, %v1397
    %v1400 = vmul.f32 %v1396, %v1398
    %v1401 = vsub.f32 2.0, %v1399
    %v1402 = vsub.f32 2.0, %v1400
    %v1403 = vmul.f32 %v1397, %v1401
    %v1404 = vmul.f32 %v1398, %v1402
    %v1405 = vmul.f32 %v1388, %v1403
    %v1406 = vmul.f32 %v1390, %v1404
    %s1407 = scalar_lea.vmem %s24, 16
    %1408 = vst.msk [vmem:[%s1407] sm:$0xff] %vm91, %v1405
    %1409 = vst.msk [vmem:[%s1407 + $0x8] sm:$0xff] %vm91, %v1406
    %v1411 = vsel %vm91, %v1405, 0
    %v1414 = vsel %vm91, %v1406, 0
    %1416 = vmatpush.msra.mxu0 0.0
    %1417 = vmatpush.msra.mxu0 0.0
    %1418 = vmatpush.msra.mxu0 0.0
    %1419 = vmatpush.msra.mxu0 0.0
    %1420 = vmatpush.msra.mxu0 0.0
    %1421 = vmatpush.msra.mxu0 0.0
    %1422 = vmatpush.msra.mxu0 0.0
    %1423 = vmatpush.msra.mxu0 0.0
    %1424 = vmatpush.msra.mxu0 0.0
    %1425 = vmatpush.msra.mxu0 0.0
    %1426 = vmatpush.msra.mxu0 0.0
    %1427 = vmatpush.msra.mxu0 0.0
    %1428 = vmatpush.msra.mxu0 %v1332
    %1429 = vmatpush.msra.mxu0 %v1329
    %1430 = vmatpush.msra.mxu0 %v1326
    %1431 = vmatpush.msra.mxu0 %v1323
    %1432 = vmatmul.f32.gmra.mxu0 %v1411
    %v1433 = vpop.f32.mrf.mxu0
    %v1434 = vadd.f32 0.0, %v1433
    %1435 = vmatmul.f32.gmra.mxu0 %v1414
    %v1436 = vpop.f32.mrf.mxu0
    %v1437 = vadd.f32 0.0, %v1436
    %1438 = vdwg.mxu0
    %s1439 = scalar_lea.vmem %s13, 8
    %v1440 = vld [vmem:[%s1439] sm:$0xff]
    %v1442 = vsel %vm175, %v1434, 0
    %v1445 = vsel %vm175, %v1437, 0
    %1447 = vmatpush.msra.mxu0 0.0
    %1448 = vmatpush.msra.mxu0 0.0
    %1449 = vmatpush.msra.mxu0 0.0
    %1450 = vmatpush.msra.mxu0 0.0
    %1451 = vmatpush.msra.mxu0 0.0
    %1452 = vmatpush.msra.mxu0 0.0
    %1453 = vmatpush.msra.mxu0 0.0
    %1454 = vmatpush.msra.mxu0 0.0
    %1455 = vmatpush.msra.mxu0 0.0
    %1456 = vmatpush.msra.mxu0 0.0
    %1457 = vmatpush.msra.mxu0 0.0
    %1458 = vmatpush.msra.mxu0 0.0
    %1459 = vmatpush.msra.mxu0 0.0
    %1460 = vmatpush.msra.mxu0 0.0
    %1461 = vmatpush.msra.mxu0 0.0
    %1462 = vmatpush.msra.mxu0 %v1440
    %1463 = vmatmul.f32.gmra.mxu0 %v1442
    %v1464 = vpop.f32.mrf.mxu0
    %v1465 = vadd.f32 0.0, %v1464
    %1466 = vmatmul.f32.gmra.mxu0 %v1445
    %v1467 = vpop.f32.mrf.mxu0
    %v1468 = vadd.f32 0.0, %v1467
    %1469 = vdwg.mxu0
    %v1471 = vsel %vm175, %v1232, 0
    %v1474 = vsel %vm175, %v1235, 0
    %1476 = vmatpush.msra.mxu0 0.0
    %1477 = vmatpush.msra.mxu0 0.0
    %1478 = vmatpush.msra.mxu0 0.0
    %1479 = vmatpush.msra.mxu0 0.0
    %1480 = vmatpush.msra.mxu0 0.0
    %1481 = vmatpush.msra.mxu0 0.0
    %1482 = vmatpush.msra.mxu0 0.0
    %1483 = vmatpush.msra.mxu0 0.0
    %1484 = vmatpush.msra.mxu0 0.0
    %1485 = vmatpush.msra.mxu0 0.0
    %1486 = vmatpush.msra.mxu0 0.0
    %1487 = vmatpush.msra.mxu0 0.0
    %1488 = vmatpush.msra.mxu0 0.0
    %1489 = vmatpush.msra.mxu0 0.0
    %1490 = vmatpush.msra.mxu0 0.0
    %1491 = vmatpush.msra.mxu0 %v1237
    %1492 = vmatmul.f32.gmra.mxu0 %v1471
    %v1493 = vpop.f32.mrf.mxu0
    %v1494 = vadd.f32 %v1465, %v1493
    %1495 = vmatmul.f32.gmra.mxu0 %v1474
    %v1496 = vpop.f32.mrf.mxu0
    %v1497 = vadd.f32 %v1468, %v1496
    %1498 = vdwg.mxu0
    %s1499 = scalar_lea.vmem %s10, 64
    %v1500 = vld [vmem:[%s1499] sm:$0xff]
    %v1501 = vld [vmem:[%s1499 + $0x8] sm:$0xff]
    %v1502 = vld [vmem:[%s1499 + $0x10] sm:$0xff]
    %v1503 = vld [vmem:[%s1499 + $0x18] sm:$0xff]
    %1504 = vmatpush.msra.mxu0 0.0
    %1505 = vmatpush.msra.mxu0 0.0
    %1506 = vmatpush.msra.mxu0 0.0
    %1507 = vmatpush.msra.mxu0 0.0
    %1508 = vmatpush.msra.mxu0 0.0
    %1509 = vmatpush.msra.mxu0 0.0
    %1510 = vmatpush.msra.mxu0 0.0
    %1511 = vmatpush.msra.mxu0 0.0
    %1512 = vmatpush.msra.mxu0 0.0
    %1513 = vmatpush.msra.mxu0 0.0
    %1514 = vmatpush.msra.mxu0 0.0
    %1515 = vmatpush.msra.mxu0 0.0
    %1516 = vmatpush.msra.mxu0 %v1503
    %1517 = vmatpush.msra.mxu0 %v1502
    %1518 = vmatpush.msra.mxu0 %v1501
    %1519 = vmatpush.msra.mxu0 %v1500
    %1520 = vmatmul.f32.gmra.mxu0 %v1027
    %v1521 = vpop.f32.mrf.mxu0
    %v1522 = vadd.f32 0.0, %v1521
    %1523 = vmatmul.f32.gmra.mxu0 %v1030
    %v1524 = vpop.f32.mrf.mxu0
    %v1525 = vadd.f32 0.0, %v1524
    %1526 = vdwg.mxu0
    %s1527 = scalar_lea.vmem %s11, 64
    %v1528 = vld [vmem:[%s1527] sm:$0xff]
    %v1529 = vld [vmem:[%s1527 + $0x8] sm:$0xff]
    %v1530 = vld [vmem:[%s1527 + $0x10] sm:$0xff]
    %v1531 = vld [vmem:[%s1527 + $0x18] sm:$0xff]
    %1532 = vmatpush.msra.mxu0 0.0
    %1533 = vmatpush.msra.mxu0 0.0
    %1534 = vmatpush.msra.mxu0 0.0
    %1535 = vmatpush.msra.mxu0 0.0
    %1536 = vmatpush.msra.mxu0 0.0
    %1537 = vmatpush.msra.mxu0 0.0
    %1538 = vmatpush.msra.mxu0 0.0
    %1539 = vmatpush.msra.mxu0 0.0
    %1540 = vmatpush.msra.mxu0 0.0
    %1541 = vmatpush.msra.mxu0 0.0
    %1542 = vmatpush.msra.mxu0 0.0
    %1543 = vmatpush.msra.mxu0 0.0
    %1544 = vmatpush.msra.mxu0 %v1531
    %1545 = vmatpush.msra.mxu0 %v1530
    %1546 = vmatpush.msra.mxu0 %v1529
    %1547 = vmatpush.msra.mxu0 %v1528
    %1548 = vmatmul.f32.gmra.mxu0 %v1060
    %v1549 = vpop.f32.mrf.mxu0
    %v1550 = vadd.f32 0.0, %v1549
    %1551 = vmatmul.f32.gmra.mxu0 %v1063
    %v1552 = vpop.f32.mrf.mxu0
    %v1553 = vadd.f32 0.0, %v1552
    %1554 = vmatmul.f32.gmra.mxu0 %v1066
    %v1555 = vpop.f32.mrf.mxu0
    %v1556 = vadd.f32 0.0, %v1555
    %1557 = vmatmul.f32.gmra.mxu0 %v1069
    %v1558 = vpop.f32.mrf.mxu0
    %v1559 = vadd.f32 0.0, %v1558
    %1560 = vdwg.mxu0
    %s1561 = scalar_lea.vmem %s12, 64
    %v1562 = vld [vmem:[%s1561] sm:$0xff]
    %v1563 = vld [vmem:[%s1561 + $0x8] sm:$0xff]
    %v1564 = vld [vmem:[%s1561 + $0x10] sm:$0xff]
    %v1565 = vld [vmem:[%s1561 + $0x18] sm:$0xff]
    %1566 = vmatpush.msra.mxu0 0.0
    %1567 = vmatpush.msra.mxu0 0.0
    %1568 = vmatpush.msra.mxu0 0.0
    %1569 = vmatpush.msra.mxu0 0.0
    %1570 = vmatpush.msra.mxu0 0.0
    %1571 = vmatpush.msra.mxu0 0.0
    %1572 = vmatpush.msra.mxu0 0.0
    %1573 = vmatpush.msra.mxu0 0.0
    %1574 = vmatpush.msra.mxu0 0.0
    %1575 = vmatpush.msra.mxu0 0.0
    %1576 = vmatpush.msra.mxu0 0.0
    %1577 = vmatpush.msra.mxu0 0.0
    %1578 = vmatpush.msra.mxu0 %v1565
    %1579 = vmatpush.msra.mxu0 %v1564
    %1580 = vmatpush.msra.mxu0 %v1563
    %1581 = vmatpush.msra.mxu0 %v1562
    %1582 = vmatmul.f32.gmra.mxu0 %v1060
    %v1583 = vpop.f32.mrf.mxu0
    %v1584 = vadd.f32 0.0, %v1583
    %1585 = vmatmul.f32.gmra.mxu0 %v1063
    %v1586 = vpop.f32.mrf.mxu0
    %v1587 = vadd.f32 0.0, %v1586
    %1588 = vmatmul.f32.gmra.mxu0 %v1066
    %v1589 = vpop.f32.mrf.mxu0
    %v1590 = vadd.f32 0.0, %v1589
    %1591 = vmatmul.f32.gmra.mxu0 %v1069
    %v1592 = vpop.f32.mrf.mxu0
    %v1593 = vadd.f32 0.0, %v1592
    %1594 = vdwg.mxu0
    %v1596 = vsel %vm175, %v1522, 0
    %v1599 = vsel %vm175, %v1525, 0
    %v1602 = vsel %vm175, %v1550, 0
    %v1605 = vsel %vm175, %v1553, 0
    %v1608 = vsel %vm175, %v1556, 0
    %v1611 = vsel %vm175, %v1559, 0
    %1613 = vmatpush.xpose.msra.mxu0 0.0
    %1614 = vmatpush.xpose.msra.mxu0 0.0
    %1615 = vmatpush.xpose.msra.mxu0 0.0
    %1616 = vmatpush.xpose.msra.mxu0 0.0
    %1617 = vmatpush.xpose.msra.mxu0 0.0
    %1618 = vmatpush.xpose.msra.mxu0 0.0
    %1619 = vmatpush.xpose.msra.mxu0 0.0
    %1620 = vmatpush.xpose.msra.mxu0 0.0
    %1621 = vmatpush.xpose.msra.mxu0 0.0
    %1622 = vmatpush.xpose.msra.mxu0 0.0
    %1623 = vmatpush.xpose.msra.mxu0 0.0
    %1624 = vmatpush.xpose.msra.mxu0 0.0
    %1625 = vmatpush.xpose.msra.mxu0 %v1611
    %1626 = vmatpush.xpose.msra.mxu0 %v1608
    %1627 = vmatpush.xpose.msra.mxu0 %v1605
    %1628 = vmatpush.xpose.msra.mxu0 %v1602
    %1629 = vmatmul.f32.gmra.mxu0 %v1596
    %v1630 = vpop.f32.mrf.mxu0
    %v1631 = vadd.f32 0.0, %v1630
    %1632 = vmatmul.f32.gmra.mxu0 %v1599
    %v1633 = vpop.f32.mrf.mxu0
    %v1634 = vadd.f32 0.0, %v1633
    %1635 = vdwg.mxu0
    %v1636 = vmul.f32 %v1631, 0.35355338
    %v1637 = vmul.f32 %v1634, 0.35355338
    %v1638 = vadd.f32 %v1636, %v1020
    %v1639 = vadd.f32 %v1637, %v1021
    %v1640 = vsel %vm91, %v1638, -inf
    %1641 = vmax.xlane.f32.xlu0 %v1640
    %v1642 = vpop.xlane.xlu0 %1641
    %v1643 = vsel %vm91, %v1639, -inf
    %1644 = vmax.xlane.f32.xlu0 %v1643
    %v1645 = vpop.xlane.xlu0 %1644
    %v1646 = vsub.f32 %v1638, %v1642
    %v1647 = vsub.f32 %v1639, %v1645
    %v1648 = vmul.f32 %v1646, 1.442695
    %v1649 = vpow.pop %v1648
    %v1650 = vmul.f32 %v1647, 1.442695
    %v1651 = vpow.pop %v1650
    %v1652 = vsel %vm91, %v1649, 0.0
    %1653 = vadd.xlane.f32.xlu0 %v1652
    %v1654 = vpop.xlane.xlu0 %1653
    %v1655 = vsel %vm91, %v1651, 0.0
    %1656 = vadd.xlane.f32.xlu0 %v1655
    %v1657 = vpop.xlane.xlu0 %1656
    %v1658 = vrcp.pop %v1654
    %v1659 = vrcp.pop %v1657
    %v1660 = vmul.f32 %v1654, %v1658
    %v1661 = vmul.f32 %v1657, %v1659
    %v1662 = vsub.f32 2.0, %v1660
    %v1663 = vsub.f32 2.0, %v1661
    %v1664 = vmul.f32 %v1658, %v1662
    %v1665 = vmul.f32 %v1659, %v1663
    %v1666 = vmul.f32 %v1649, %v1664
    %v1667 = vmul.f32 %v1651, %v1665
    %s1668 = scalar_lea.vmem %s24, 32
    %1669 = vst.msk [vmem:[%s1668] sm:$0xff] %vm91, %v1666
    %1670 = vst.msk [vmem:[%s1668 + $0x8] sm:$0xff] %vm91, %v1667
    %v1672 = vsel %vm91, %v1666, 0
    %v1675 = vsel %vm91, %v1667, 0
    %1677 = vmatpush.msra.mxu0 0.0
    %1678 = vmatpush.msra.mxu0 0.0
    %1679 = vmatpush.msra.mxu0 0.0
    %1680 = vmatpush.msra.mxu0 0.0
    %1681 = vmatpush.msra.mxu0 0.0
    %1682 = vmatpush.msra.mxu0 0.0
    %1683 = vmatpush.msra.mxu0 0.0
    %1684 = vmatpush.msra.mxu0 0.0
    %1685 = vmatpush.msra.mxu0 0.0
    %1686 = vmatpush.msra.mxu0 0.0
    %1687 = vmatpush.msra.mxu0 0.0
    %1688 = vmatpush.msra.mxu0 0.0
    %1689 = vmatpush.msra.mxu0 %v1593
    %1690 = vmatpush.msra.mxu0 %v1590
    %1691 = vmatpush.msra.mxu0 %v1587
    %1692 = vmatpush.msra.mxu0 %v1584
    %1693 = vmatmul.f32.gmra.mxu0 %v1672
    %v1694 = vpop.f32.mrf.mxu0
    %v1695 = vadd.f32 0.0, %v1694
    %1696 = vmatmul.f32.gmra.mxu0 %v1675
    %v1697 = vpop.f32.mrf.mxu0
    %v1698 = vadd.f32 0.0, %v1697
    %1699 = vdwg.mxu0
    %s1700 = scalar_lea.vmem %s13, 16
    %v1701 = vld [vmem:[%s1700] sm:$0xff]
    %v1703 = vsel %vm175, %v1695, 0
    %v1706 = vsel %vm175, %v1698, 0
    %1708 = vmatpush.msra.mxu0 0.0
    %1709 = vmatpush.msra.mxu0 0.0
    %1710 = vmatpush.msra.mxu0 0.0
    %1711 = vmatpush.msra.mxu0 0.0
    %1712 = vmatpush.msra.mxu0 0.0
    %1713 = vmatpush.msra.mxu0 0.0
    %1714 = vmatpush.msra.mxu0 0.0
    %1715 = vmatpush.msra.mxu0 0.0
    %1716 = vmatpush.msra.mxu0 0.0
    %1717 = vmatpush.msra.mxu0 0.0
    %1718 = vmatpush.msra.mxu0 0.0
    %1719 = vmatpush.msra.mxu0 0.0
    %1720 = vmatpush.msra.mxu0 0.0
    %1721 = vmatpush.msra.mxu0 0.0
    %1722 = vmatpush.msra.mxu0 0.0
    %1723 = vmatpush.msra.mxu0 %v1701
    %1724 = vmatmul.f32.gmra.mxu0 %v1703
    %v1725 = vpop.f32.mrf.mxu0
    %v1726 = vadd.f32 0.0, %v1725
    %1727 = vmatmul.f32.gmra.mxu0 %v1706
    %v1728 = vpop.f32.mrf.mxu0
    %v1729 = vadd.f32 0.0, %v1728
    %1730 = vdwg.mxu0
    %v1731 = vadd.f32 %v1494, %v1726
    %v1732 = vadd.f32 %v1497, %v1729
    %s1733 = scalar_lea.vmem %s10, 96
    %v1734 = vld [vmem:[%s1733] sm:$0xff]
    %v1735 = vld [vmem:[%s1733 + $0x8] sm:$0xff]
    %v1736 = vld [vmem:[%s1733 + $0x10] sm:$0xff]
    %v1737 = vld [vmem:[%s1733 + $0x18] sm:$0xff]
    %1738 = vmatpush.msra.mxu0 0.0
    %1739 = vmatpush.msra.mxu0 0.0
    %1740 = vmatpush.msra.mxu0 0.0
    %1741 = vmatpush.msra.mxu0 0.0
    %1742 = vmatpush.msra.mxu0 0.0
    %1743 = vmatpush.msra.mxu0 0.0
    %1744 = vmatpush.msra.mxu0 0.0
    %1745 = vmatpush.msra.mxu0 0.0
    %1746 = vmatpush.msra.mxu0 0.0
    %1747 = vmatpush.msra.mxu0 0.0
    %1748 = vmatpush.msra.mxu0 0.0
    %1749 = vmatpush.msra.mxu0 0.0
    %1750 = vmatpush.msra.mxu0 %v1737
    %1751 = vmatpush.msra.mxu0 %v1736
    %1752 = vmatpush.msra.mxu0 %v1735
    %1753 = vmatpush.msra.mxu0 %v1734
    %1754 = vmatmul.f32.gmra.mxu0 %v1027
    %v1755 = vpop.f32.mrf.mxu0
    %v1756 = vadd.f32 0.0, %v1755
    %1757 = vmatmul.f32.gmra.mxu0 %v1030
    %v1758 = vpop.f32.mrf.mxu0
    %v1759 = vadd.f32 0.0, %v1758
    %1760 = vdwg.mxu0
    %s1761 = scalar_lea.vmem %s11, 96
    %v1762 = vld [vmem:[%s1761] sm:$0xff]
    %v1763 = vld [vmem:[%s1761 + $0x8] sm:$0xff]
    %v1764 = vld [vmem:[%s1761 + $0x10] sm:$0xff]
    %v1765 = vld [vmem:[%s1761 + $0x18] sm:$0xff]
    %1766 = vmatpush.msra.mxu0 0.0
    %1767 = vmatpush.msra.mxu0 0.0
    %1768 = vmatpush.msra.mxu0 0.0
    %1769 = vmatpush.msra.mxu0 0.0
    %1770 = vmatpush.msra.mxu0 0.0
    %1771 = vmatpush.msra.mxu0 0.0
    %1772 = vmatpush.msra.mxu0 0.0
    %1773 = vmatpush.msra.mxu0 0.0
    %1774 = vmatpush.msra.mxu0 0.0
    %1775 = vmatpush.msra.mxu0 0.0
    %1776 = vmatpush.msra.mxu0 0.0
    %1777 = vmatpush.msra.mxu0 0.0
    %1778 = vmatpush.msra.mxu0 %v1765
    %1779 = vmatpush.msra.mxu0 %v1764
    %1780 = vmatpush.msra.mxu0 %v1763
    %1781 = vmatpush.msra.mxu0 %v1762
    %1782 = vmatmul.f32.gmra.mxu0 %v1060
    %v1783 = vpop.f32.mrf.mxu0
    %v1784 = vadd.f32 0.0, %v1783
    %1785 = vmatmul.f32.gmra.mxu0 %v1063
    %v1786 = vpop.f32.mrf.mxu0
    %v1787 = vadd.f32 0.0, %v1786
    %1788 = vmatmul.f32.gmra.mxu0 %v1066
    %v1789 = vpop.f32.mrf.mxu0
    %v1790 = vadd.f32 0.0, %v1789
    %1791 = vmatmul.f32.gmra.mxu0 %v1069
    %v1792 = vpop.f32.mrf.mxu0
    %v1793 = vadd.f32 0.0, %v1792
    %1794 = vdwg.mxu0
    %s1795 = scalar_lea.vmem %s12, 96
    %v1796 = vld [vmem:[%s1795] sm:$0xff]
    %v1797 = vld [vmem:[%s1795 + $0x8] sm:$0xff]
    %v1798 = vld [vmem:[%s1795 + $0x10] sm:$0xff]
    %v1799 = vld [vmem:[%s1795 + $0x18] sm:$0xff]
    %1800 = vmatpush.msra.mxu0 0.0
    %1801 = vmatpush.msra.mxu0 0.0
    %1802 = vmatpush.msra.mxu0 0.0
    %1803 = vmatpush.msra.mxu0 0.0
    %1804 = vmatpush.msra.mxu0 0.0
    %1805 = vmatpush.msra.mxu0 0.0
    %1806 = vmatpush.msra.mxu0 0.0
    %1807 = vmatpush.msra.mxu0 0.0
    %1808 = vmatpush.msra.mxu0 0.0
    %1809 = vmatpush.msra.mxu0 0.0
    %1810 = vmatpush.msra.mxu0 0.0
    %1811 = vmatpush.msra.mxu0 0.0
    %1812 = vmatpush.msra.mxu0 %v1799
    %1813 = vmatpush.msra.mxu0 %v1798
    %1814 = vmatpush.msra.mxu0 %v1797
    %1815 = vmatpush.msra.mxu0 %v1796
    %1816 = vmatmul.f32.gmra.mxu0 %v1060
    %v1817 = vpop.f32.mrf.mxu0
    %v1818 = vadd.f32 0.0, %v1817
    %1819 = vmatmul.f32.gmra.mxu0 %v1063
    %v1820 = vpop.f32.mrf.mxu0
    %v1821 = vadd.f32 0.0, %v1820
    %1822 = vmatmul.f32.gmra.mxu0 %v1066
    %v1823 = vpop.f32.mrf.mxu0
    %v1824 = vadd.f32 0.0, %v1823
    %1825 = vmatmul.f32.gmra.mxu0 %v1069
    %v1826 = vpop.f32.mrf.mxu0
    %v1827 = vadd.f32 0.0, %v1826
    %1828 = vdwg.mxu0
    %v1830 = vsel %vm175, %v1756, 0
    %v1833 = vsel %vm175, %v1759, 0
    %v1836 = vsel %vm175, %v1784, 0
    %v1839 = vsel %vm175, %v1787, 0
    %v1842 = vsel %vm175, %v1790, 0
    %v1845 = vsel %vm175, %v1793, 0
    %1847 = vmatpush.xpose.msra.mxu0 0.0
    %1848 = vmatpush.xpose.msra.mxu0 0.0
    %1849 = vmatpush.xpose.msra.mxu0 0.0
    %1850 = vmatpush.xpose.msra.mxu0 0.0
    %1851 = vmatpush.xpose.msra.mxu0 0.0
    %1852 = vmatpush.xpose.msra.mxu0 0.0
    %1853 = vmatpush.xpose.msra.mxu0 0.0
    %1854 = vmatpush.xpose.msra.mxu0 0.0
    %1855 = vmatpush.xpose.msra.mxu0 0.0
    %1856 = vmatpush.xpose.msra.mxu0 0.0
    %1857 = vmatpush.xpose.msra.mxu0 0.0
    %1858 = vmatpush.xpose.msra.mxu0 0.0
    %1859 = vmatpush.xpose.msra.mxu0 %v1845
    %1860 = vmatpush.xpose.msra.mxu0 %v1842
    %1861 = vmatpush.xpose.msra.mxu0 %v1839
    %1862 = vmatpush.xpose.msra.mxu0 %v1836
    %1863 = vmatmul.f32.gmra.mxu0 %v1830
    %v1864 = vpop.f32.mrf.mxu0
    %v1865 = vadd.f32 0.0, %v1864
    %1866 = vmatmul.f32.gmra.mxu0 %v1833
    %v1867 = vpop.f32.mrf.mxu0
    %v1868 = vadd.f32 0.0, %v1867
    %1869 = vdwg.mxu0
    %v1870 = vmul.f32 %v1865, 0.35355338
    %v1871 = vmul.f32 %v1868, 0.35355338
    %v1872 = vadd.f32 %v1870, %v1020
    %v1873 = vadd.f32 %v1871, %v1021
    %v1874 = vsel %vm91, %v1872, -inf
    %1875 = vmax.xlane.f32.xlu0 %v1874
    %v1876 = vpop.xlane.xlu0 %1875
    %v1877 = vsel %vm91, %v1873, -inf
    %1878 = vmax.xlane.f32.xlu0 %v1877
    %v1879 = vpop.xlane.xlu0 %1878
    %v1880 = vsub.f32 %v1872, %v1876
    %v1881 = vsub.f32 %v1873, %v1879
    %v1882 = vmul.f32 %v1880, 1.442695
    %v1883 = vpow.pop %v1882
    %v1884 = vmul.f32 %v1881, 1.442695
    %v1885 = vpow.pop %v1884
    %v1886 = vsel %vm91, %v1883, 0.0
    %1887 = vadd.xlane.f32.xlu0 %v1886
    %v1888 = vpop.xlane.xlu0 %1887
    %v1889 = vsel %vm91, %v1885, 0.0
    %1890 = vadd.xlane.f32.xlu0 %v1889
    %v1891 = vpop.xlane.xlu0 %1890
    %v1892 = vrcp.pop %v1888
    %v1893 = vrcp.pop %v1891
    %v1894 = vmul.f32 %v1888, %v1892
    %v1895 = vmul.f32 %v1891, %v1893
    %v1896 = vsub.f32 2.0, %v1894
    %v1897 = vsub.f32 2.0, %v1895
    %v1898 = vmul.f32 %v1892, %v1896
    %v1899 = vmul.f32 %v1893, %v1897
    %v1900 = vmul.f32 %v1883, %v1898
    %v1901 = vmul.f32 %v1885, %v1899
    %s1902 = scalar_lea.vmem %s24, 48
    %1903 = vst.msk [vmem:[%s1902] sm:$0xff] %vm91, %v1900
    %1904 = vst.msk [vmem:[%s1902 + $0x8] sm:$0xff] %vm91, %v1901
    %v1906 = vsel %vm91, %v1900, 0
    %v1909 = vsel %vm91, %v1901, 0
    %1911 = vmatpush.msra.mxu0 0.0
    %1912 = vmatpush.msra.mxu0 0.0
    %1913 = vmatpush.msra.mxu0 0.0
    %1914 = vmatpush.msra.mxu0 0.0
    %1915 = vmatpush.msra.mxu0 0.0
    %1916 = vmatpush.msra.mxu0 0.0
    %1917 = vmatpush.msra.mxu0 0.0
    %1918 = vmatpush.msra.mxu0 0.0
    %1919 = vmatpush.msra.mxu0 0.0
    %1920 = vmatpush.msra.mxu0 0.0
    %1921 = vmatpush.msra.mxu0 0.0
    %1922 = vmatpush.msra.mxu0 0.0
    %1923 = vmatpush.msra.mxu0 %v1827
    %1924 = vmatpush.msra.mxu0 %v1824
    %1925 = vmatpush.msra.mxu0 %v1821
    %1926 = vmatpush.msra.mxu0 %v1818
    %1927 = vmatmul.f32.gmra.mxu0 %v1906
    %v1928 = vpop.f32.mrf.mxu0
    %v1929 = vadd.f32 0.0, %v1928
    %1930 = vmatmul.f32.gmra.mxu0 %v1909
    %v1931 = vpop.f32.mrf.mxu0
    %v1932 = vadd.f32 0.0, %v1931
    %1933 = vdwg.mxu0
    %s1934 = scalar_lea.vmem %s13, 24
    %v1935 = vld [vmem:[%s1934] sm:$0xff]
    %v1937 = vsel %vm175, %v1929, 0
    %v1940 = vsel %vm175, %v1932, 0
    %1942 = vmatpush.msra.mxu0 0.0
    %1943 = vmatpush.msra.mxu0 0.0
    %1944 = vmatpush.msra.mxu0 0.0
    %1945 = vmatpush.msra.mxu0 0.0
    %1946 = vmatpush.msra.mxu0 0.0
    %1947 = vmatpush.msra.mxu0 0.0
    %1948 = vmatpush.msra.mxu0 0.0
    %1949 = vmatpush.msra.mxu0 0.0
    %1950 = vmatpush.msra.mxu0 0.0
    %1951 = vmatpush.msra.mxu0 0.0
    %1952 = vmatpush.msra.mxu0 0.0
    %1953 = vmatpush.msra.mxu0 0.0
    %1954 = vmatpush.msra.mxu0 0.0
    %1955 = vmatpush.msra.mxu0 0.0
    %1956 = vmatpush.msra.mxu0 0.0
    %1957 = vmatpush.msra.mxu0 %v1935
    %1958 = vmatmul.f32.gmra.mxu0 %v1937
    %v1959 = vpop.f32.mrf.mxu0
    %v1960 = vadd.f32 0.0, %v1959
    %1961 = vmatmul.f32.gmra.mxu0 %v1940
    %v1962 = vpop.f32.mrf.mxu0
    %v1963 = vadd.f32 0.0, %v1962
    %1964 = vdwg.mxu0
    %v1965 = vadd.f32 %v1731, %v1960
    %v1966 = vadd.f32 %v1732, %v1963
    %v1967 = vadd.f32 %v1965, %v1014
    %v1968 = vadd.f32 %v1966, %v1015
    %v1969 = vld [vmem:[%s14] sm:$0x1]
    %v1970 = vld [vmem:[%s15] sm:$0x1]
    %v1971 = vsel %vm91, %v1967, 0.0
    %1972 = vadd.xlane.f32.xlu0 %v1971
    %v1973 = vpop.xlane.xlu0 %1972
    %v1974 = vsel %vm91, %v1968, 0.0
    %1975 = vadd.xlane.f32.xlu0 %v1974
    %v1976 = vpop.xlane.xlu0 %1975
    %v1977 = vmul.f32 %v1973, %v967
    %v1978 = vmul.f32 %v1976, %v967
    %v1979 = vsub.f32 %v1967, %v1977
    %v1980 = vsub.f32 %v1968, %v1978
    %v1981 = vmul.f32 %v1979, %v1979
    %v1982 = vmul.f32 %v1980, %v1980
    %v1983 = vsel %vm91, %v1981, 0.0
    %1984 = vadd.xlane.f32.xlu0 %v1983
    %v1985 = vpop.xlane.xlu0 %1984
    %v1986 = vsel %vm91, %v1982, 0.0
    %1987 = vadd.xlane.f32.xlu0 %v1986
    %v1988 = vpop.xlane.xlu0 %1987
    %v1989 = vmul.f32 %v1985, %v967
    %v1990 = vmul.f32 %v1988, %v967
    %v1991 = vadd.f32 %v1989, 1e-06
    %v1992 = vadd.f32 %v1990, 1e-06
    %v1993 = vrsqrt.pop %v1991
    %v1994 = vmul.f32 %v1993, %v1991
    %v1995 = vmul.f32 %v1994, %v1993
    %v1996 = vmul.f32 0.5, %v1995
    %v1997 = vsub.f32 1.5, %v1996
    %v1998 = vmul.f32 %v1993, %v1997
    %vm1999 = vweird.f32 %v1991
    %vm2000 = vweird.f32 %v1993
    %vm2001 = vmor %vm1999, %vm2000
    %v2002 = vsel %vm2001, %v1993, %v1998
    %v2003 = vrsqrt.pop %v1992
    %v2004 = vmul.f32 %v2003, %v1992
    %v2005 = vmul.f32 %v2004, %v2003
    %v2006 = vmul.f32 0.5, %v2005
    %v2007 = vsub.f32 1.5, %v2006
    %v2008 = vmul.f32 %v2003, %v2007
    %vm2009 = vweird.f32 %v1992
    %vm2010 = vweird.f32 %v2003
    %vm2011 = vmor %vm2009, %vm2010
    %v2012 = vsel %vm2011, %v2003, %v2008
    %v2013 = vmul.f32 %v1979, %v2002
    %v2014 = vmul.f32 %v1980, %v2012
    %v2016 = vperm.slane %v1969, 0
    %v2018 = vmul.f32 %v2013, %v2016
    %v2019 = vmul.f32 %v2014, %v2016
    %v2021 = vperm.slane %v1970, 0
    %v2023 = vadd.f32 %v2018, %v2021
    %v2024 = vadd.f32 %v2019, %v2021
    %v2025 = vld [vmem:[%s16] sm:$0xff]
    %v2026 = vld [vmem:[%s16 + $0x8] sm:$0xff]
    %v2027 = vld [vmem:[%s16 + $0x10] sm:$0xff]
    %v2028 = vld [vmem:[%s16 + $0x18] sm:$0xff]
    %v2029 = vld [vmem:[%s17] sm:$0x1]
    %v2031 = vperm.slane %v2029, 0
    %v2034 = vsel %vm91, %v2023, 0
    %v2037 = vsel %vm91, %v2024, 0
    %2039 = vmatpush.msra.mxu0 0.0
    %2040 = vmatpush.msra.mxu0 0.0
    %2041 = vmatpush.msra.mxu0 0.0
    %2042 = vmatpush.msra.mxu0 0.0
    %2043 = vmatpush.msra.mxu0 0.0
    %2044 = vmatpush.msra.mxu0 0.0
    %2045 = vmatpush.msra.mxu0 0.0
    %2046 = vmatpush.msra.mxu0 0.0
    %2047 = vmatpush.msra.mxu0 0.0
    %2048 = vmatpush.msra.mxu0 0.0
    %2049 = vmatpush.msra.mxu0 0.0
    %2050 = vmatpush.msra.mxu0 0.0
    %2051 = vmatpush.msra.mxu0 %v2028
    %2052 = vmatpush.msra.mxu0 %v2027
    %2053 = vmatpush.msra.mxu0 %v2026
    %2054 = vmatpush.msra.mxu0 %v2025
    %2055 = vmatmul.f32.gmra.mxu0 %v2034
    %v2056 = vpop.f32.mrf.mxu0
    %v2057 = vadd.f32 %v2031, %v2056
    %2058 = vmatmul.f32.gmra.mxu0 %v2037
    %v2059 = vpop.f32.mrf.mxu0
    %v2060 = vadd.f32 %v2031, %v2059
    %2061 = vdwg.mxu0
    %v2062 = vmax.f32 %v2057, 0.0
    %v2063 = vmax.f32 %v2060, 0.0
    %v2064 = vld [vmem:[%s18] sm:$0xff]
    %v2065 = vld [vmem:[%s18 + $0x8] sm:$0xff]
    %v2066 = vld [vmem:[%s18 + $0x10] sm:$0xff]
    %v2067 = vld [vmem:[%s18 + $0x18] sm:$0xff]
    %v2068 = vld [vmem:[%s18 + $0x20] sm:$0xff]
    %v2069 = vld [vmem:[%s18 + $0x28] sm:$0xff]
    %v2070 = vld [vmem:[%s18 + $0x30] sm:$0xff]
    %v2071 = vld [vmem:[%s18 + $0x38] sm:$0xff]
    %v2072 = vld [vmem:[%s19] sm:$0x1]
    %v2074 = vperm.slane %v2072, 0
    %vm2076 = vcmask 523264
    %v2078 = vsel %vm2076, %v2062, 0
    %v2081 = vsel %vm2076, %v2063, 0
    %2083 = vmatpush.msra.mxu0 0.0
    %2084 = vmatpush.msra.mxu0 0.0
    %2085 = vmatpush.msra.mxu0 0.0
    %2086 = vmatpush.msra.mxu0 0.0
    %2087 = vmatpush.msra.mxu0 0.0
    %2088 = vmatpush.msra.mxu0 0.0
    %2089 = vmatpush.msra.mxu0 0.0
    %2090 = vmatpush.msra.mxu0 0.0
    %2091 = vmatpush.msra.mxu0 %v2071
    %2092 = vmatpush.msra.mxu0 %v2070
    %2093 = vmatpush.msra.mxu0 %v2069
    %2094 = vmatpush.msra.mxu0 %v2068
    %2095 = vmatpush.msra.mxu0 %v2067
    %2096 = vmatpush.msra.mxu0 %v2066
    %2097 = vmatpush.msra.mxu0 %v2065
    %2098 = vmatpush.msra.mxu0 %v2064
    %2099 = vmatmul.f32.gmra.mxu0 %v2078
    %v2100 = vpop.f32.mrf.mxu0
    %v2101 = vadd.f32 %v2074, %v2100
    %2102 = vmatmul.f32.gmra.mxu0 %v2081
    %v2103 = vpop.f32.mrf.mxu0
    %v2104 = vadd.f32 %v2074, %v2103
    %2105 = vdwg.mxu0
    %v2106 = vadd.f32 %v2101, %v2023
    %v2107 = vadd.f32 %v2104, %v2024
    %v2108 = vld [vmem:[%s20] sm:$0x1]
    %v2109 = vld [vmem:[%s21] sm:$0x1]
    %v2110 = vsel %vm91, %v2106, 0.0
    %2111 = vadd.xlane.f32.xlu0 %v2110
    %v2112 = vpop.xlane.xlu0 %2111
    %v2113 = vsel %vm91, %v2107, 0.0
    %2114 = vadd.xlane.f32.xlu0 %v2113
    %v2115 = vpop.xlane.xlu0 %2114
    %v2116 = vmul.f32 %v2112, %v967
    %v2117 = vmul.f32 %v2115, %v967
    %v2118 = vsub.f32 %v2106, %v2116
    %v2119 = vsub.f32 %v2107, %v2117
    %v2120 = vmul.f32 %v2118, %v2118
    %v2121 = vmul.f32 %v2119, %v2119
    %v2122 = vsel %vm91, %v2120, 0.0
    %2123 = vadd.xlane.f32.xlu0 %v2122
    %v2124 = vpop.xlane.xlu0 %2123
    %v2125 = vsel %vm91, %v2121, 0.0
    %2126 = vadd.xlane.f32.xlu0 %v2125
    %v2127 = vpop.xlane.xlu0 %2126
    %v2128 = vmul.f32 %v2124, %v967
    %v2129 = vmul.f32 %v2127, %v967
    %v2130 = vadd.f32 %v2128, 1e-06
    %v2131 = vadd.f32 %v2129, 1e-06
    %v2132 = vrsqrt.pop %v2130
    %v2133 = vmul.f32 %v2132, %v2130
    %v2134 = vmul.f32 %v2133, %v2132
    %v2135 = vmul.f32 0.5, %v2134
    %v2136 = vsub.f32 1.5, %v2135
    %v2137 = vmul.f32 %v2132, %v2136
    %vm2138 = vweird.f32 %v2130
    %vm2139 = vweird.f32 %v2132
    %vm2140 = vmor %vm2138, %vm2139
    %v2141 = vsel %vm2140, %v2132, %v2137
    %v2142 = vrsqrt.pop %v2131
    %v2143 = vmul.f32 %v2142, %v2131
    %v2144 = vmul.f32 %v2143, %v2142
    %v2145 = vmul.f32 0.5, %v2144
    %v2146 = vsub.f32 1.5, %v2145
    %v2147 = vmul.f32 %v2142, %v2146
    %vm2148 = vweird.f32 %v2131
    %vm2149 = vweird.f32 %v2142
    %vm2150 = vmor %vm2148, %vm2149
    %v2151 = vsel %vm2150, %v2142, %v2147
    %v2152 = vmul.f32 %v2118, %v2141
    %v2153 = vmul.f32 %v2119, %v2151
    %v2155 = vperm.slane %v2108, 0
    %v2157 = vmul.f32 %v2152, %v2155
    %v2158 = vmul.f32 %v2153, %v2155
    %v2160 = vperm.slane %v2109, 0
    %v2162 = vadd.f32 %v2157, %v2160
    %v2163 = vadd.f32 %v2158, %v2160
    %2164 = vst.msk [vmem:[#allocation2] sm:$0xff] %vm91, %v2162
    %2165 = vst.msk [vmem:[#allocation2 + $0x8] sm:$0xff] %vm91, %v2163
    // Predicated region
    $region90: #{decoder_layer.1} parent=1 // pred_check
      _
    $region91: #{decoder_layer.1} parent=1 // pred_check_branch
      %2167 = sbr.rel (0) target = $region93
    $region92: #{decoder_layer.1} parent=1 // pred_region
      %2169 = vsyncadd [#allocation3], 0
      %s2170 = sshll.u32 [#allocation2], 4
      %s2171 = int_to_ptr.vmem [resolvable:$true] %s2170
      %s2172 = sshll.u32 %s22, 4
      %s2173 = int_to_ptr.hbm [resolvable:$true] %s2172
      %2178 = dma.vmem_to_hbm [thread:$0]  %s2171, 256, %s2173, [#allocation3], 128, 128, 8
    $region93: #{decoder_layer.1} parent=1 // pred_fallthru
      _
    // Predicated region
    $region94: #{decoder_layer.1} parent=1 // pred_check
      _
    $region95: #{decoder_layer.1} parent=1 // pred_check_branch
      %2180 = sbr.rel (0) target = $region97
    $region96: #{decoder_layer.1} parent=1 // pred_region
      _
    $region97: #{decoder_layer.1} parent=1 // pred_fallthru
      _
    // Predicated region
    $region98: #{decoder_layer.1} parent=1 // pred_check
      _
    $region99: #{decoder_layer.1} parent=1 // pred_check_branch
      %2182 = sbr.rel (0) target = $region101
    $region100: #{decoder_layer.1} parent=1 // pred_region
      _
    $region101: #{decoder_layer.1} parent=1 // pred_fallthru
      _
    // Predicated region
    $region102: #{decoder_layer.1} parent=1 // pred_check
      _
    $region103: #{decoder_layer.1} parent=1 // pred_check_branch
      %2184 = sbr.rel (0) target = $region105
    $region104: #{decoder_layer.1} parent=1 // pred_region
      %2186 = dma.done [#allocation3], 256
    $region105: #{decoder_layer.1} parent=1 // pred_fallthru
      _
    // Predicated region
    $region106: #{decoder_layer.1} parent=1 // pred_check
      _
    $region107: #{decoder_layer.1} parent=1 // pred_check_branch
      %2188 = sbr.rel (0) target = $region109
    $region108: #{decoder_layer.1} parent=1 // pred_region
      _
    $region109: #{decoder_layer.1} parent=1 // pred_fallthru
      _
    // Predicated region
    $region110: #{decoder_layer.1} parent=1 // pred_check
      _
    $region111: #{decoder_layer.1} parent=1 // pred_check_branch
      %2190 = sbr.rel (0) target = $region113
    $region112: #{decoder_layer.1} parent=1 // pred_region
      _
    $region113: #{decoder_layer.1} parent=1 // pred_fallthru
      _
    %2191 = vsyncpa [#allocation3], 1

</llo_original>
